<compile_context>
chip_gen: v5e
topology: v5e:2x2
jax: 0.10.0
libtpu: 0.0.40
codegen_flags: <defaults>
</compile_context>

<pallas_src>
import functools

import jax
import jax.numpy as jnp
import numpy as np
from jax.experimental import pallas as pl
from jax.experimental.pallas import tpu as pltpu


def _residual_block_kernel(x_ref, gsel_ref, gselg_ref, beta_ref,
                           w_ref, b_ref, film_ref, o_ref,
                           *, dim_out, group_size, eps):
    x = x_ref[...].astype(jnp.float32)                        # (tb, dim) f32

    # ---- GroupNorm statistics: two skinny one-hot matmuls (separate dots;
    #      MXU pushes ~ LHS_rows/8 either way, and no concat copy).  HIGHEST
    #      keeps the full f32 multi-pass so sum(x^2) keeps its mantissa. ----
    gsel = gsel_ref[...]                                       # (dim, G) one-hot
    grp_sum = jnp.dot(x, gsel, preferred_element_type=jnp.float32,
                      precision=jax.lax.Precision.HIGHEST)     # (tb, G)
    grp_sumsq = jnp.dot(x * x, gsel, preferred_element_type=jnp.float32,
                        precision=jax.lax.Precision.HIGHEST)   # (tb, G)

    inv_n = 1.0 / group_size
    mean = grp_sum * inv_n
    # TODO(synk): single-pass E[x^2]-mean^2 can lose precision for large-scale
    # activations; switch to a centered second pass if that regime matters.
    var = jnp.maximum(grp_sumsq * inv_n - mean * mean, 0.0)    # cancellation guard
    rstd = jax.lax.rsqrt(var + eps)

    # ---- broadcast per-group stats back to channels, gamma folded into the
    #      one-hot matrix:  xn = x*(rstd*gamma)_c - (mean*rstd*gamma)_c + beta ----
    gselg = gselg_ref[...]                                     # (G, dim) = gsel.T * gamma
    a_c = jnp.dot(rstd, gselg, preferred_element_type=jnp.float32,
                  precision=jax.lax.Precision.HIGHEST)         # (tb, dim)
    b_c = jnp.dot(mean * rstd, gselg, preferred_element_type=jnp.float32,
                  precision=jax.lax.Precision.HIGHEST)         # (tb, dim)
    xn = x * a_c - b_c + beta_ref[...]

    # ---- SiLU (f32 on the VPU; v5e has no bf16 VPU/EUP) ----
    h = xn * jax.nn.sigmoid(xn)

    # ---- Linear: bf16 operands into the MXU, f32 accumulation ----
    y = jnp.dot(h.astype(jnp.bfloat16), w_ref[...],
                preferred_element_type=jnp.float32) + b_ref[...]

    # ---- FiLM: y * (scale + 1) + shift ; scale/shift streamed packed bf16 ----
    film = film_ref[...].astype(jnp.float32)                   # (tb, 2*dim_out)
    y = y * (film[:, :dim_out] + 1.0) + film[:, dim_out:]

    # ---- Residual: fn(x) + x ----
    o_ref[...] = (y + x).astype(o_ref.dtype)


def _pick_batch_tile(B, dim, dim_out, vmem_budget_bytes):
    """Largest row tile that fits the streaming-VMEM budget while leaving
    >= 4 grid steps (>= 2 pipelined steps per TensorCore on a v7x megacore);
    for small B falls back to the largest fitting tile (single-TC chips lose
    nothing from a short grid)."""
    candidates = [c for c in (1024, 512, 256, 128, 64, 32, 16, 8)
                  if c <= B and B % c == 0]
    if not candidates:
        return B
    fallback = None
    for c in candidates:                                   # descending
        stream = 2 * (c * dim * 4 + c * 2 * dim_out * 2 + c * dim_out * 4)
        if stream > vmem_budget_bytes:
            continue
        if fallback is None:
            fallback = c
        if B // c >= 4:
            return c
    return fallback if fallback is not None else candidates[-1]


def residual_block_forward(x, params, scale, shift, *, groups, tb=None, eps=1e-5):
    """Fused Residual(Block) forward.

    x:            (B, dim) activations
    params["w"]:  (dim, dim_out) Linear weight, stored transposed (x @ W + b)
    scale/shift:  (B, dim_out) FiLM parameters (already squeezed)
    Returns (B, dim_out); Residual requires dim_out == dim.
    """
    B, dim = x.shape
    dim_out = params["w"].shape[1]
    assert dim_out == dim, "Residual requires fn(x) to have the same shape as x"
    assert dim % groups == 0
    group_size = dim // groups

    # Physical per-core VMEM (v7x has only 64 MiB; never assume 128 MiB).
    try:
        physical_vmem = int(getattr(pltpu.get_tpu_info(),
                                    "vmem_capacity_bytes", 64 << 20))
    except Exception:
        physical_vmem = 64 << 20

    if tb is None:
        tb = _pick_batch_tile(B, dim, dim_out,
                              vmem_budget_bytes=physical_vmem // 4)
    tb = min(tb, B)
    assert B % tb == 0, "wrapper assumes B divisible by the batch tile"

    # --- grid-invariant constants (plain-JAX glue) ---
    ch = jnp.arange(dim)
    gsel = (ch[:, None] // group_size
            == jnp.arange(groups)[None, :]).astype(jnp.float32)        # (dim, G)
    gamma = params["gamma"].reshape(dim).astype(jnp.float32)
    gselg = gsel.T * gamma[None, :]                                     # (G, dim)
    beta = params["beta"].reshape(1, dim).astype(jnp.float32)
    w = params["w"].astype(jnp.bfloat16)               # bf16 weights into the MXU
    b = params["b"].reshape(1, dim_out).astype(jnp.float32)

    # FiLM scale/shift packed into one bf16 streamed tensor (halves their HBM
    # bytes; this kernel is bandwidth-bound) — cast back to f32 in-kernel.
    film = jnp.concatenate([scale, shift], axis=1).astype(jnp.bfloat16)  # (B, 2*dim_out)

    grid = (B // tb,)

    def vmem_estimate(single_buffer_invariants):
        inv = (dim * groups * 4 + groups * dim * 4 + dim * 4
               + dim * dim_out * 2 + dim_out * 4)
        inv *= 1 if single_buffer_invariants else 2
        stream = 2 * (tb * dim * 4 + tb * 2 * dim_out * 2 + tb * dim_out * 4)
        return int(1.25 * (inv + stream)) + (1 << 20)

    def build(single_buffer_invariants):
        inv_kw = ({"pipeline_mode": pl.Buffered(1)}
                  if single_buffer_invariants else {})
        est = vmem_estimate(single_buffer_invariants)
        vmem_limit = None
        if est > (16 << 20):                       # only raise when needed
            vmem_limit = min(est, physical_vmem - (2 << 20))   # clamp < physical
        kernel = functools.partial(_residual_block_kernel, dim_out=dim_out,
                                   group_size=float(group_size), eps=eps)
        return pl.pallas_call(
            kernel,
            out_shape=jax.ShapeDtypeStruct((B, dim_out), x.dtype),
            grid_spec=pltpu.PrefetchScalarGridSpec(
                num_scalar_prefetch=0,
                grid=grid,
                in_specs=[
                    pl.BlockSpec((tb, dim), lambda i: (i, 0)),                 # x
                    pl.BlockSpec((dim, groups), lambda i: (0, 0), **inv_kw),   # gsel
                    pl.BlockSpec((groups, dim), lambda i: (0, 0), **inv_kw),   # gsel.T*gamma
                    pl.BlockSpec((1, dim), lambda i: (0, 0), **inv_kw),        # beta
                    pl.BlockSpec((dim, dim_out), lambda i: (0, 0), **inv_kw),  # W (bf16)
                    pl.BlockSpec((1, dim_out), lambda i: (0, 0), **inv_kw),    # b
                    pl.BlockSpec((tb, 2 * dim_out), lambda i: (i, 0)),         # film (bf16)
                ],
                out_specs=pl.BlockSpec((tb, dim_out), lambda i: (i, 0)),
            ),
            compiler_params=pltpu.CompilerParams(
                dimension_semantics=("parallel",),
                vmem_limit_bytes=vmem_limit,
            ),
        )

    # Prefer single-buffered invariants (v7x VMEM); fall back cleanly if this
    # jax build does not accept pipeline_mode on a top-level BlockSpec.
    try:
        return build(True)(x, gsel, gselg, beta, w, b, film)
    except Exception:
        return build(False)(x, gsel, gselg, beta, w, b, film)


def _reference(x, params, scale, shift, *, groups, eps=1e-5):
    """Pure-JAX reference mirroring the PyTorch Residual(Block) forward.

    Mirrors the kernel's bf16 boundaries (Linear operands and streamed FiLM
    params) so the correctness check stays tight; everything else is f32.
    """
    B, dim = x.shape
    gs = dim // groups
    xg = x.reshape(B, groups, gs).astype(jnp.float32)
    mean = xg.mean(axis=-1, keepdims=True)
    var = xg.var(axis=-1, keepdims=True)            # biased, like F.group_norm
    xn = ((xg - mean) * jax.lax.rsqrt(var + eps)).reshape(B, dim)
    xn = xn * params["gamma"][None, :] + params["beta"][None, :]
    h = xn * jax.nn.sigmoid(xn)
    y = jnp.dot(h.astype(jnp.bfloat16), params["w"].astype(jnp.bfloat16),
                preferred_element_type=jnp.float32) + params["b"][None, :]
    scale_q = scale.astype(jnp.bfloat16).astype(jnp.float32)
    shift_q = shift.astype(jnp.bfloat16).astype(jnp.float32)
    y = y * (scale_q + 1.0) + shift_q
    return y + x                                     # Residual


if __name__ == "__main__":
    # Small but hardware-friendly shapes: lane-dense feature dims (128 -> the
    # output gets unmasked vst) and a batch giving a 4-step parallel grid
    # (>= 2 software-pipelined steps per TensorCore on a v7x megacore).
    B, dim, dim_out, groups = 256, 128, 128, 8

    key = jax.random.PRNGKey(0)
    kx, kw, kb, kg, kbt, ks, ksh = jax.random.split(key, 7)

    x = jax.random.normal(kx, (B, dim), dtype=jnp.float32)

    params = {
        "w": jax.random.normal(kw, (dim, dim_out), dtype=jnp.float32) * 0.1,   # Linear weight^T
        "b": jax.random.normal(kb, (dim_out,), dtype=jnp.float32) * 0.1,       # Linear bias
        "gamma": 1.0 + 0.1 * jax.random.normal(kg, (dim,), dtype=jnp.float32), # GroupNorm weight
        "beta": 0.1 * jax.random.normal(kbt, (dim,), dtype=jnp.float32),       # GroupNorm bias
    }

    # FiLM params come in as (B, dim_out, 1, 1); squeeze only the trailing
    # singleton axes so B == 1 would not be squeezed away.
    scale_raw = jax.random.normal(ks, (B, dim_out, 1, 1), dtype=jnp.float32)
    shift_raw = jax.random.normal(ksh, (B, dim_out, 1, 1), dtype=jnp.float32)
    scale = jnp.squeeze(scale_raw, axis=(2, 3))     # (B, dim_out)
    shift = jnp.squeeze(shift_raw, axis=(2, 3))

    out = residual_block_forward(x, params, scale, shift, groups=groups)
    out = jax.block_until_ready(out)

    ref = _reference(x, params, scale, shift, groups=groups)
    np.testing.assert_allclose(np.asarray(out), np.asarray(ref), rtol=2e-3, atol=2e-3)

    print("KERNEL_OK")
</pallas_src>

<mosaic_0001>
module attributes {stable_mosaic.version = 11 : i64} {
  func.func @_residual_block_kernel(%arg0: i32, %arg1: memref<64x128xf32, #tpu.memory_space<vmem>>, %arg2: memref<128x8xf32, #tpu.memory_space<vmem>>, %arg3: memref<8x128xf32, #tpu.memory_space<vmem>>, %arg4: memref<1x128xf32, #tpu.memory_space<vmem>>, %arg5: memref<128x128xbf16, #tpu.memory_space<vmem>>, %arg6: memref<1x128xf32, #tpu.memory_space<vmem>>, %arg7: memref<64x256xbf16, #tpu.memory_space<vmem>>, %arg8: memref<64x128xf32, #tpu.memory_space<vmem>>) attributes {dimension_semantics = [#tpu.dimension_semantics<parallel>], iteration_bounds = array<i64: 4>, scalar_prefetch = 0 : i64, scratch_operands = 0 : i64, tpu.core_type = #tpu.core_type<tc>, window_params = [{transform_indices = @transform_0, window_bounds = array<i64: 64, 128>}, {pipeline_mode = #tpu.pipeline_mode<synchronous>, transform_indices = @transform_1, window_bounds = array<i64: 128, 8>}, {pipeline_mode = #tpu.pipeline_mode<synchronous>, transform_indices = @transform_2, window_bounds = array<i64: 8, 128>}, {pipeline_mode = #tpu.pipeline_mode<synchronous>, transform_indices = @transform_3, window_bounds = array<i64: 1, 128>}, {pipeline_mode = #tpu.pipeline_mode<synchronous>, transform_indices = @transform_4, window_bounds = array<i64: 128, 128>}, {pipeline_mode = #tpu.pipeline_mode<synchronous>, transform_indices = @transform_5, window_bounds = array<i64: 1, 128>}, {transform_indices = @transform_6, window_bounds = array<i64: 64, 256>}, {transform_indices = @transform_7, window_bounds = array<i64: 64, 128>}]} {
    %c0 = arith.constant 0 : index
    %c0_0 = arith.constant 0 : index
    %0 = vector.load %arg1[%c0, %c0_0] : memref<64x128xf32, #tpu.memory_space<vmem>>, vector<64x128xf32>
    %c0_1 = arith.constant 0 : index
    %c0_2 = arith.constant 0 : index
    %1 = vector.load %arg2[%c0_1, %c0_2] : memref<128x8xf32, #tpu.memory_space<vmem>>, vector<128x8xf32>
    %cst = arith.constant dense<0.000000e+00> : vector<64x8xf32>
    %2 = tpu.matmul %0, %1, %cst {dimension_numbers = #tpu.dot_dimension_numbers<[1], [0], [0], [1], [0, 0, 1, 1], [], []>, precision = #tpu.contract_precision<fp32>} : vector<64x128xf32>, vector<128x8xf32>, vector<64x8xf32> -> vector<64x8xf32>
    %3 = arith.mulf %0, %0 : vector<64x128xf32>
    %cst_3 = arith.constant dense<0.000000e+00> : vector<64x8xf32>
    %4 = tpu.matmul %3, %1, %cst_3 {dimension_numbers = #tpu.dot_dimension_numbers<[1], [0], [0], [1], [0, 0, 1, 1], [], []>, precision = #tpu.contract_precision<fp32>} : vector<64x128xf32>, vector<128x8xf32>, vector<64x8xf32> -> vector<64x8xf32>
    %cst_4 = arith.constant 6.250000e-02 : f32
    %5 = vector.broadcast %cst_4 : f32 to vector<64x8xf32>
    %6 = arith.mulf %2, %5 : vector<64x8xf32>
    %cst_5 = arith.constant 6.250000e-02 : f32
    %7 = vector.broadcast %cst_5 : f32 to vector<64x8xf32>
    %8 = arith.mulf %4, %7 : vector<64x8xf32>
    %9 = arith.mulf %6, %6 : vector<64x8xf32>
    %10 = arith.subf %8, %9 : vector<64x8xf32>
    %cst_6 = arith.constant 0.000000e+00 : f32
    %11 = vector.broadcast %cst_6 : f32 to vector<64x8xf32>
    %12 = arith.maximumf %10, %11 : vector<64x8xf32>
    %cst_7 = arith.constant 9.99999974E-6 : f32
    %13 = vector.broadcast %cst_7 : f32 to vector<64x8xf32>
    %14 = arith.addf %12, %13 : vector<64x8xf32>
    %15 = math.rsqrt %14 : vector<64x8xf32>
    %c0_8 = arith.constant 0 : index
    %c0_9 = arith.constant 0 : index
    %16 = vector.load %arg3[%c0_8, %c0_9] : memref<8x128xf32, #tpu.memory_space<vmem>>, vector<8x128xf32>
    %cst_10 = arith.constant dense<0.000000e+00> : vector<64x128xf32>
    %17 = tpu.matmul %15, %16, %cst_10 {dimension_numbers = #tpu.dot_dimension_numbers<[1], [0], [0], [1], [0, 0, 1, 1], [], []>, precision = #tpu.contract_precision<fp32>} : vector<64x8xf32>, vector<8x128xf32>, vector<64x128xf32> -> vector<64x128xf32>
    %18 = arith.mulf %6, %15 : vector<64x8xf32>
    %cst_11 = arith.constant dense<0.000000e+00> : vector<64x128xf32>
    %19 = tpu.matmul %18, %16, %cst_11 {dimension_numbers = #tpu.dot_dimension_numbers<[1], [0], [0], [1], [0, 0, 1, 1], [], []>, precision = #tpu.contract_precision<fp32>} : vector<64x8xf32>, vector<8x128xf32>, vector<64x128xf32> -> vector<64x128xf32>
    %20 = arith.mulf %0, %17 : vector<64x128xf32>
    %21 = arith.subf %20, %19 : vector<64x128xf32>
    %c0_12 = arith.constant 0 : index
    %c0_13 = arith.constant 0 : index
    %22 = vector.load %arg4[%c0_12, %c0_13] : memref<1x128xf32, #tpu.memory_space<vmem>>, vector<1x128xf32>
    %23 = vector.broadcast %22 : vector<1x128xf32> to vector<64x128xf32>
    %24 = arith.addf %21, %23 : vector<64x128xf32>
    %25 = arith.negf %24 : vector<64x128xf32>
    %26 = math.exp %25 : vector<64x128xf32>
    %cst_14 = arith.constant 1.000000e+00 : f32
    %27 = vector.broadcast %cst_14 : f32 to vector<64x128xf32>
    %28 = arith.addf %27, %26 : vector<64x128xf32>
    %29 = arith.divf %27, %28 : vector<64x128xf32>
    %30 = arith.mulf %24, %29 : vector<64x128xf32>
    %31 = arith.truncf %30 : vector<64x128xf32> to vector<64x128xbf16>
    %c0_15 = arith.constant 0 : index
    %c0_16 = arith.constant 0 : index
    %32 = vector.load %arg5[%c0_15, %c0_16] : memref<128x128xbf16, #tpu.memory_space<vmem>>, vector<128x128xbf16>
    %cst_17 = arith.constant dense<0.000000e+00> : vector<64x128xf32>
    %33 = tpu.matmul %31, %32, %cst_17 {dimension_numbers = #tpu.dot_dimension_numbers<[1], [0], [0], [1], [0, 0, 1, 1], [], []>} : vector<64x128xbf16>, vector<128x128xbf16>, vector<64x128xf32> -> vector<64x128xf32>
    %c0_18 = arith.constant 0 : index
    %c0_19 = arith.constant 0 : index
    %34 = vector.load %arg6[%c0_18, %c0_19] : memref<1x128xf32, #tpu.memory_space<vmem>>, vector<1x128xf32>
    %35 = vector.broadcast %34 : vector<1x128xf32> to vector<64x128xf32>
    %36 = arith.addf %33, %35 : vector<64x128xf32>
    %c0_20 = arith.constant 0 : index
    %c0_21 = arith.constant 0 : index
    %37 = vector.load %arg7[%c0_20, %c0_21] : memref<64x256xbf16, #tpu.memory_space<vmem>>, vector<64x256xbf16>
    %38 = arith.extf %37 : vector<64x256xbf16> to vector<64x256xf32>
    %39 = vector.extract_strided_slice %38 {offsets = [0, 0], sizes = [64, 128], strides = [1, 1]} : vector<64x256xf32> to vector<64x128xf32>
    %cst_22 = arith.constant 1.000000e+00 : f32
    %40 = vector.broadcast %cst_22 : f32 to vector<64x128xf32>
    %41 = arith.addf %39, %40 : vector<64x128xf32>
    %42 = arith.mulf %36, %41 : vector<64x128xf32>
    %43 = vector.extract_strided_slice %38 {offsets = [0, 128], sizes = [64, 128], strides = [1, 1]} : vector<64x256xf32> to vector<64x128xf32>
    %44 = arith.addf %42, %43 : vector<64x128xf32>
    %45 = arith.addf %44, %0 : vector<64x128xf32>
    %c0_23 = arith.constant 0 : index
    %c0_24 = arith.constant 0 : index
    %46 = vector.load %arg8[%c0_23, %c0_24] : memref<64x128xf32, #tpu.memory_space<vmem>>, vector<64x128xf32>
    tpu.vector_store %arg8[%c0_23, %c0_24], %45 {strides = array<i32>} : memref<64x128xf32, #tpu.memory_space<vmem>>, vector<64x128xf32>,
    return
  }
  func.func @transform_0(%arg0: i32) -> (i32, i32) {
    %c0_i32 = arith.constant 0 : i32
    %c0_i32_0 = arith.constant 0 : i32
    return %arg0, %c0_i32 : i32, i32
  }
  func.func @transform_1(%arg0: i32) -> (i32, i32) {
    %c0_i32 = arith.constant 0 : i32
    %c0_i32_0 = arith.constant 0 : i32
    %c0_i32_1 = arith.constant 0 : i32
    return %c0_i32, %c0_i32_0 : i32, i32
  }
  func.func @transform_2(%arg0: i32) -> (i32, i32) {
    %c0_i32 = arith.constant 0 : i32
    %c0_i32_0 = arith.constant 0 : i32
    %c0_i32_1 = arith.constant 0 : i32
    return %c0_i32, %c0_i32_0 : i32, i32
  }
  func.func @transform_3(%arg0: i32) -> (i32, i32) {
    %c0_i32 = arith.constant 0 : i32
    %c0_i32_0 = arith.constant 0 : i32
    %c0_i32_1 = arith.constant 0 : i32
    return %c0_i32, %c0_i32_0 : i32, i32
  }
  func.func @transform_4(%arg0: i32) -> (i32, i32) {
    %c0_i32 = arith.constant 0 : i32
    %c0_i32_0 = arith.constant 0 : i32
    %c0_i32_1 = arith.constant 0 : i32
    return %c0_i32, %c0_i32_0 : i32, i32
  }
  func.func @transform_5(%arg0: i32) -> (i32, i32) {
    %c0_i32 = arith.constant 0 : i32
    %c0_i32_0 = arith.constant 0 : i32
    %c0_i32_1 = arith.constant 0 : i32
    return %c0_i32, %c0_i32_0 : i32, i32
  }
  func.func @transform_6(%arg0: i32) -> (i32, i32) {
    %c0_i32 = arith.constant 0 : i32
    %c0_i32_0 = arith.constant 0 : i32
    return %arg0, %c0_i32 : i32, i32
  }
  func.func @transform_7(%arg0: i32) -> (i32, i32) {
    %c0_i32 = arith.constant 0 : i32
    %c0_i32_0 = arith.constant 0 : i32
    return %arg0, %c0_i32 : i32, i32
  }
}

module attributes {stable_mosaic.version = 11 : i64} {
  func.func @_residual_block_kernel(%arg0: i32, %arg1: memref<64x128xf32, #tpu.memory_space<vmem>>, %arg2: memref<128x8xf32, #tpu.memory_space<vmem>>, %arg3: memref<8x128xf32, #tpu.memory_space<vmem>>, %arg4: memref<1x128xf32, #tpu.memory_space<vmem>>, %arg5: memref<128x128xbf16, #tpu.memory_space<vmem>>, %arg6: memref<1x128xf32, #tpu.memory_space<vmem>>, %arg7: memref<64x256xbf16, #tpu.memory_space<vmem>>, %arg8: memref<64x128xf32, #tpu.memory_space<vmem>>) attributes {dimension_semantics = [#tpu.dimension_semantics<parallel>], iteration_bounds = array<i64: 4>, scalar_prefetch = 0 : i64, scratch_operands = 0 : i64, tpu.core_type = #tpu.core_type<tc>, window_params = [{transform_indices = @transform_0, window_bounds = array<i64: 64, 128>}, {pipeline_mode = #tpu.pipeline_mode<synchronous>, transform_indices = @transform_1, window_bounds = array<i64: 128, 8>}, {pipeline_mode = #tpu.pipeline_mode<synchronous>, transform_indices = @transform_2, window_bounds = array<i64: 8, 128>}, {pipeline_mode = #tpu.pipeline_mode<synchronous>, transform_indices = @transform_3, window_bounds = array<i64: 1, 128>}, {pipeline_mode = #tpu.pipeline_mode<synchronous>, transform_indices = @transform_4, window_bounds = array<i64: 128, 128>}, {pipeline_mode = #tpu.pipeline_mode<synchronous>, transform_indices = @transform_5, window_bounds = array<i64: 1, 128>}, {transform_indices = @transform_6, window_bounds = array<i64: 64, 256>}, {transform_indices = @transform_7, window_bounds = array<i64: 64, 128>}]} {
    %c0 = arith.constant 0 : index
    %c0_0 = arith.constant 0 : index
    %0 = vector.load %arg1[%c0, %c0_0] : memref<64x128xf32, #tpu.memory_space<vmem>>, vector<64x128xf32>
    %c0_1 = arith.constant 0 : index
    %c0_2 = arith.constant 0 : index
    %1 = vector.load %arg2[%c0_1, %c0_2] : memref<128x8xf32, #tpu.memory_space<vmem>>, vector<128x8xf32>
    %cst = arith.constant dense<0.000000e+00> : vector<64x8xf32>
    %2 = tpu.matmul %0, %1, %cst {dimension_numbers = #tpu.dot_dimension_numbers<[1], [0], [0], [1], [0, 0, 1, 1], [], []>, precision = #tpu.contract_precision<fp32>} : vector<64x128xf32>, vector<128x8xf32>, vector<64x8xf32> -> vector<64x8xf32>
    %3 = arith.mulf %0, %0 : vector<64x128xf32>
    %cst_3 = arith.constant dense<0.000000e+00> : vector<64x8xf32>
    %4 = tpu.matmul %3, %1, %cst_3 {dimension_numbers = #tpu.dot_dimension_numbers<[1], [0], [0], [1], [0, 0, 1, 1], [], []>, precision = #tpu.contract_precision<fp32>} : vector<64x128xf32>, vector<128x8xf32>, vector<64x8xf32> -> vector<64x8xf32>
    %cst_4 = arith.constant 6.250000e-02 : f32
    %5 = vector.broadcast %cst_4 : f32 to vector<64x8xf32>
    %6 = arith.mulf %2, %5 : vector<64x8xf32>
    %cst_5 = arith.constant 6.250000e-02 : f32
    %7 = vector.broadcast %cst_5 : f32 to vector<64x8xf32>
    %8 = arith.mulf %4, %7 : vector<64x8xf32>
    %9 = arith.mulf %6, %6 : vector<64x8xf32>
    %10 = arith.subf %8, %9 : vector<64x8xf32>
    %cst_6 = arith.constant 0.000000e+00 : f32
    %11 = vector.broadcast %cst_6 : f32 to vector<64x8xf32>
    %12 = arith.maximumf %10, %11 : vector<64x8xf32>
    %cst_7 = arith.constant 9.99999974E-6 : f32
    %13 = vector.broadcast %cst_7 : f32 to vector<64x8xf32>
    %14 = arith.addf %12, %13 : vector<64x8xf32>
    %15 = math.rsqrt %14 : vector<64x8xf32>
    %c0_8 = arith.constant 0 : index
    %c0_9 = arith.constant 0 : index
    %16 = vector.load %arg3[%c0_8, %c0_9] : memref<8x128xf32, #tpu.memory_space<vmem>>, vector<8x128xf32>
    %cst_10 = arith.constant dense<0.000000e+00> : vector<64x128xf32>
    %17 = tpu.matmul %15, %16, %cst_10 {dimension_numbers = #tpu.dot_dimension_numbers<[1], [0], [0], [1], [0, 0, 1, 1], [], []>, precision = #tpu.contract_precision<fp32>} : vector<64x8xf32>, vector<8x128xf32>, vector<64x128xf32> -> vector<64x128xf32>
    %18 = arith.mulf %6, %15 : vector<64x8xf32>
    %cst_11 = arith.constant dense<0.000000e+00> : vector<64x128xf32>
    %19 = tpu.matmul %18, %16, %cst_11 {dimension_numbers = #tpu.dot_dimension_numbers<[1], [0], [0], [1], [0, 0, 1, 1], [], []>, precision = #tpu.contract_precision<fp32>} : vector<64x8xf32>, vector<8x128xf32>, vector<64x128xf32> -> vector<64x128xf32>
    %20 = arith.mulf %0, %17 : vector<64x128xf32>
    %21 = arith.subf %20, %19 : vector<64x128xf32>
    %c0_12 = arith.constant 0 : index
    %c0_13 = arith.constant 0 : index
    %22 = vector.load %arg4[%c0_12, %c0_13] : memref<1x128xf32, #tpu.memory_space<vmem>>, vector<1x128xf32>
    %23 = vector.broadcast %22 : vector<1x128xf32> to vector<64x128xf32>
    %24 = arith.addf %21, %23 : vector<64x128xf32>
    %25 = arith.negf %24 : vector<64x128xf32>
    %26 = math.exp %25 : vector<64x128xf32>
    %cst_14 = arith.constant 1.000000e+00 : f32
    %27 = vector.broadcast %cst_14 : f32 to vector<64x128xf32>
    %28 = arith.addf %27, %26 : vector<64x128xf32>
    %29 = arith.divf %27, %28 : vector<64x128xf32>
    %30 = arith.mulf %24, %29 : vector<64x128xf32>
    %31 = arith.truncf %30 : vector<64x128xf32> to vector<64x128xbf16>
    %c0_15 = arith.constant 0 : index
    %c0_16 = arith.constant 0 : index
    %32 = vector.load %arg5[%c0_15, %c0_16] : memref<128x128xbf16, #tpu.memory_space<vmem>>, vector<128x128xbf16>
    %cst_17 = arith.constant dense<0.000000e+00> : vector<64x128xf32>
    %33 = tpu.matmul %31, %32, %cst_17 {dimension_numbers = #tpu.dot_dimension_numbers<[1], [0], [0], [1], [0, 0, 1, 1], [], []>} : vector<64x128xbf16>, vector<128x128xbf16>, vector<64x128xf32> -> vector<64x128xf32>
    %c0_18 = arith.constant 0 : index
    %c0_19 = arith.constant 0 : index
    %34 = vector.load %arg6[%c0_18, %c0_19] : memref<1x128xf32, #tpu.memory_space<vmem>>, vector<1x128xf32>
    %35 = vector.broadcast %34 : vector<1x128xf32> to vector<64x128xf32>
    %36 = arith.addf %33, %35 : vector<64x128xf32>
    %c0_20 = arith.constant 0 : index
    %c0_21 = arith.constant 0 : index
    %37 = vector.load %arg7[%c0_20, %c0_21] : memref<64x256xbf16, #tpu.memory_space<vmem>>, vector<64x256xbf16>
    %38 = arith.extf %37 : vector<64x256xbf16> to vector<64x256xf32>
    %39 = vector.extract_strided_slice %38 {offsets = [0, 0], sizes = [64, 128], strides = [1, 1]} : vector<64x256xf32> to vector<64x128xf32>
    %cst_22 = arith.constant 1.000000e+00 : f32
    %40 = vector.broadcast %cst_22 : f32 to vector<64x128xf32>
    %41 = arith.addf %39, %40 : vector<64x128xf32>
    %42 = arith.mulf %36, %41 : vector<64x128xf32>
    %43 = vector.extract_strided_slice %38 {offsets = [0, 128], sizes = [64, 128], strides = [1, 1]} : vector<64x256xf32> to vector<64x128xf32>
    %44 = arith.addf %42, %43 : vector<64x128xf32>
    %45 = arith.addf %44, %0 : vector<64x128xf32>
    %c0_23 = arith.constant 0 : index
    %c0_24 = arith.constant 0 : index
    %46 = vector.load %arg8[%c0_23, %c0_24] : memref<64x128xf32, #tpu.memory_space<vmem>>, vector<64x128xf32>
    tpu.vector_store %arg8[%c0_23, %c0_24], %45 {strides = array<i32>} : memref<64x128xf32, #tpu.memory_space<vmem>>, vector<64x128xf32>,
    return
  }
  func.func @transform_0(%arg0: i32) -> (i32, i32) {
    %c0_i32 = arith.constant 0 : i32
    %c0_i32_0 = arith.constant 0 : i32
    return %arg0, %c0_i32 : i32, i32
  }
  func.func @transform_1(%arg0: i32) -> (i32, i32) {
    %c0_i32 = arith.constant 0 : i32
    %c0_i32_0 = arith.constant 0 : i32
    %c0_i32_1 = arith.constant 0 : i32
    return %c0_i32, %c0_i32_0 : i32, i32
  }
  func.func @transform_2(%arg0: i32) -> (i32, i32) {
    %c0_i32 = arith.constant 0 : i32
    %c0_i32_0 = arith.constant 0 : i32
    %c0_i32_1 = arith.constant 0 : i32
    return %c0_i32, %c0_i32_0 : i32, i32
  }
  func.func @transform_3(%arg0: i32) -> (i32, i32) {
    %c0_i32 = arith.constant 0 : i32
    %c0_i32_0 = arith.constant 0 : i32
    %c0_i32_1 = arith.constant 0 : i32
    return %c0_i32, %c0_i32_0 : i32, i32
  }
  func.func @transform_4(%arg0: i32) -> (i32, i32) {
    %c0_i32 = arith.constant 0 : i32
    %c0_i32_0 = arith.constant 0 : i32
    %c0_i32_1 = arith.constant 0 : i32
    return %c0_i32, %c0_i32_0 : i32, i32
  }
  func.func @transform_5(%arg0: i32) -> (i32, i32) {
    %c0_i32 = arith.constant 0 : i32
    %c0_i32_0 = arith.constant 0 : i32
    %c0_i32_1 = arith.constant 0 : i32
    return %c0_i32, %c0_i32_0 : i32, i32
  }
  func.func @transform_6(%arg0: i32) -> (i32, i32) {
    %c0_i32 = arith.constant 0 : i32
    %c0_i32_0 = arith.constant 0 : i32
    return %arg0, %c0_i32 : i32, i32
  }
  func.func @transform_7(%arg0: i32) -> (i32, i32) {
    %c0_i32 = arith.constant 0 : i32
    %c0_i32_0 = arith.constant 0 : i32
    return %arg0, %c0_i32 : i32, i32
  }
}

</mosaic_0001>

<llo_original>
// kernel: tpu_custom_call.1
$region0: #{tpu_custom_call.1}
  #allocation0 [shape = 'u32[]', space=smem, size = 0x4, offset = 0x4, fixed_abs, tag = 'smem constant byte address 0x4 - core index']
  #allocation1 [shape = 'u32[72,128]{1,0:T(1,128)}', space=vmem, size = 0x9000, scoped, tag = 'internal scratch']
  %s0 = inlined_call_operand.hbm [shape: f32[256,128], index: 0, kind: input, shape index: {}]
  %s1 = inlined_call_operand.vmem [shape: f32[128,8], index: 1, kind: input, shape index: {}]
  %s2 = inlined_call_operand.vmem [shape: f32[8,128], index: 2, kind: input, shape index: {}]
  %s3 = inlined_call_operand.vmem [shape: f32[1,128], index: 3, kind: input, shape index: {}]
  %s4 = inlined_call_operand.vmem [shape: bf16[128,128], index: 4, kind: input, shape index: {}]
  %s5 = inlined_call_operand.vmem [shape: f32[1,128], index: 5, kind: input, shape index: {}]
  %s6 = inlined_call_operand.hbm [shape: bf16[256,256], index: 6, kind: input, shape index: {}]
  %s7 = inlined_call_operand.hbm [shape: f32[256,128], index: 7, kind: output, shape index: {}]
  %s8 = sld [smem:[#allocation0]]
  $region69: #{tpu_custom_call.1} parent=0
    _
  %s10 = ssub.s32 1, %s8
  %s11 = scalar_select 0, %s10, %s8
  $region1: #{tpu_custom_call.1} parent=0
    #allocation2 [shape = 'u8[65536]{0}', space=vmem, size = 0x10000, scoped, tag = 'input window, operand 0']
    #allocation3 [shape = 's32[2]{0}', space=sflag, size = 0x8, scoped, tag = 'scoped memory for tpu_custom_call.1']
    #allocation4 [shape = 's32[2]{0}', space=sflag, size = 0x8, scoped, tag = 'scoped memory for tpu_custom_call.1']
    #allocation5 [shape = 'u8[65536]{0}', space=vmem, size = 0x10000, scoped, tag = 'input window, operand 6']
    #allocation6 [shape = 's32[2]{0}', space=sflag, size = 0x8, scoped, tag = 'scoped memory for tpu_custom_call.1']
    #allocation7 [shape = 'u8[65536]{0}', space=vmem, size = 0x10000, scoped, tag = 'output window, operand 0']
    %12 = vsyncpa [#allocation3], 0
    %s13 = scalar_lea.sflag [#allocation3], 1
    %14 = vsyncpa %s13, 0
    %15 = vsyncpa [#allocation6], 0
    %s16 = scalar_lea.sflag [#allocation6], 1
    %17 = vsyncpa %s16, 0
    %18 = vsyncpa [#allocation4], 0
    %s19 = scalar_lea.sflag [#allocation4], 1
    %20 = vsyncpa %s19, 0
    loop: start=0, step=1, limit=6
    $region2: #{tpu_custom_call.1} parent=1 // loop_pre_header
      _
    $region3: #{tpu_custom_call.1} parent=1 // loop_header
      %s22 = sphi 0, %s26
      %p23 = scmp.ge.s32.totalorder %s22, 6
      %s32 = sphi 0, %s34
      %s35 = sphi 0, %s32
      %s36 = sphi 0, %s35
      %s52 = sphi 0, %s36
      %s56 = sphi 0, %s56
      %s58 = sphi 0, %s56
      %s59 = sphi 0, %s58
      %s73 = sphi 0, %s59
      %s77 = sphi 0, %s77
      %s79 = sphi 0, %s77
      %s80 = sphi 0, %s79
      %s94 = sphi 0, %s80
      %s98 = sphi 0, %s98
      %s100 = sphi 0, %s98
      %s101 = sphi 0, %s100
      %s115 = sphi 0, %s101
      %s119 = sphi 0, %s119
      %s121 = sphi 0, %s119
      %s122 = sphi 0, %s121
      %s136 = sphi 0, %s122
      %s140 = sphi 0, %s140
      %s142 = sphi 0, %s140
      %s143 = sphi 0, %s142
      %s157 = sphi 0, %s143
      %s163 = sphi 0, %s165
      %s166 = sphi 0, %s163
      %s167 = sphi 0, %s166
      %s183 = sphi 0, %s167
      %s189 = sphi 0, %s191
      %s192 = sphi 0, %s189
      %s193 = sphi 0, %s192
      %s209 = sphi 0, %s193
    $region4: #{tpu_custom_call.1} parent=1 // loop_header_branch
      %25 = sbr.rel (%p23) target = $region8
    $region5: #{tpu_custom_call.1} parent=1 // loop_body
      %s27 = ssub.s32 %s22, 1
      %s28 = ssub.s32 %s22, 2
      %s29 = sadd.s32 %s22, 1
      %s30 = ssub.s32 %s22, %s29
      %p31 = scmp.eq.s32.totalorder %s30, 0
      %s33 = sadd.s32 %s32, 1
      %s34 = scalar_select %p31, %s32, %s33
      %p37 = pneg %p31
      %p38 = scmp.eq.s32.totalorder %s22, 3
      %p39 = por %p37, %p38
      %p40 = scmp.ne.s32.totalorder %s32, %s35
      %p41 = scmp.eq.s32.totalorder %s22, 0
      %p42 = por %p40, %p41
      %p43 = scmp.ne.s32.totalorder %s32, %s35
      %p44 = scmp.eq.s32.totalorder %s27, 3
      %p45 = por %p43, %p44
      %p46 = scmp.ne.s32.totalorder %s35, %s36
      %p47 = scmp.eq.s32.totalorder %s27, 0
      %p48 = por %p46, %p47
      %p49 = scmp.ne.s32.totalorder %s35, %s36
      %p50 = scmp.eq.s32.totalorder %s28, 3
      %p51 = por %p49, %p50
      %p53 = scmp.ne.s32.totalorder %s36, %s52
      %p54 = scmp.eq.s32.totalorder %s28, 0
      %p55 = por %p53, %p54
      %s57 = sadd.s32 %s56, 1
      %p60 = scmp.eq.s32.totalorder %s22, 3
      %p61 = scmp.ne.s32.totalorder %s56, %s58
      %p62 = scmp.eq.s32.totalorder %s22, 0
      %p63 = por %p61, %p62
      %p64 = scmp.ne.s32.totalorder %s56, %s58
      %p65 = scmp.eq.s32.totalorder %s27, 3
      %p66 = por %p64, %p65
      %p67 = scmp.ne.s32.totalorder %s58, %s59
      %p68 = scmp.eq.s32.totalorder %s27, 0
      %p69 = por %p67, %p68
      %p70 = scmp.ne.s32.totalorder %s58, %s59
      %p71 = scmp.eq.s32.totalorder %s28, 3
      %p72 = por %p70, %p71
      %p74 = scmp.ne.s32.totalorder %s59, %s73
      %p75 = scmp.eq.s32.totalorder %s28, 0
      %p76 = por %p74, %p75
      %s78 = sadd.s32 %s77, 1
      %p81 = scmp.eq.s32.totalorder %s22, 3
      %p82 = scmp.ne.s32.totalorder %s77, %s79
      %p83 = scmp.eq.s32.totalorder %s22, 0
      %p84 = por %p82, %p83
      %p85 = scmp.ne.s32.totalorder %s77, %s79
      %p86 = scmp.eq.s32.totalorder %s27, 3
      %p87 = por %p85, %p86
      %p88 = scmp.ne.s32.totalorder %s79, %s80
      %p89 = scmp.eq.s32.totalorder %s27, 0
      %p90 = por %p88, %p89
      %p91 = scmp.ne.s32.totalorder %s79, %s80
      %p92 = scmp.eq.s32.totalorder %s28, 3
      %p93 = por %p91, %p92
      %p95 = scmp.ne.s32.totalorder %s80, %s94
      %p96 = scmp.eq.s32.totalorder %s28, 0
      %p97 = por %p95, %p96
      %s99 = sadd.s32 %s98, 1
      %p102 = scmp.eq.s32.totalorder %s22, 3
      %p103 = scmp.ne.s32.totalorder %s98, %s100
      %p104 = scmp.eq.s32.totalorder %s22, 0
      %p105 = por %p103, %p104
      %p106 = scmp.ne.s32.totalorder %s98, %s100
      %p107 = scmp.eq.s32.totalorder %s27, 3
      %p108 = por %p106, %p107
      %p109 = scmp.ne.s32.totalorder %s100, %s101
      %p110 = scmp.eq.s32.totalorder %s27, 0
      %p111 = por %p109, %p110
      %p112 = scmp.ne.s32.totalorder %s100, %s101
      %p113 = scmp.eq.s32.totalorder %s28, 3
      %p114 = por %p112, %p113
      %p116 = scmp.ne.s32.totalorder %s101, %s115
      %p117 = scmp.eq.s32.totalorder %s28, 0
      %p118 = por %p116, %p117
      %s120 = sadd.s32 %s119, 1
      %p123 = scmp.eq.s32.totalorder %s22, 3
      %p124 = scmp.ne.s32.totalorder %s119, %s121
      %p125 = scmp.eq.s32.totalorder %s22, 0
      %p126 = por %p124, %p125
      %p127 = scmp.ne.s32.totalorder %s119, %s121
      %p128 = scmp.eq.s32.totalorder %s27, 3
      %p129 = por %p127, %p128
      %p130 = scmp.ne.s32.totalorder %s121, %s122
      %p131 = scmp.eq.s32.totalorder %s27, 0
      %p132 = por %p130, %p131
      %p133 = scmp.ne.s32.totalorder %s121, %s122
      %p134 = scmp.eq.s32.totalorder %s28, 3
      %p135 = por %p133, %p134
      %p137 = scmp.ne.s32.totalorder %s122, %s136
      %p138 = scmp.eq.s32.totalorder %s28, 0
      %p139 = por %p137, %p138
      %s141 = sadd.s32 %s140, 1
      %p144 = scmp.eq.s32.totalorder %s22, 3
      %p145 = scmp.ne.s32.totalorder %s140, %s142
      %p146 = scmp.eq.s32.totalorder %s22, 0
      %p147 = por %p145, %p146
      %p148 = scmp.ne.s32.totalorder %s140, %s142
      %p149 = scmp.eq.s32.totalorder %s27, 3
      %p150 = por %p148, %p149
      %p151 = scmp.ne.s32.totalorder %s142, %s143
      %p152 = scmp.eq.s32.totalorder %s27, 0
      %p153 = por %p151, %p152
      %p154 = scmp.ne.s32.totalorder %s142, %s143
      %p155 = scmp.eq.s32.totalorder %s28, 3
      %p156 = por %p154, %p155
      %p158 = scmp.ne.s32.totalorder %s143, %s157
      %p159 = scmp.eq.s32.totalorder %s28, 0
      %p160 = por %p158, %p159
      %s161 = ssub.s32 %s22, %s29
      %p162 = scmp.eq.s32.totalorder %s161, 0
      %s164 = sadd.s32 %s163, 1
      %s165 = scalar_select %p162, %s163, %s164
      %p168 = pneg %p162
      %p169 = scmp.eq.s32.totalorder %s22, 3
      %p170 = por %p168, %p169
      %p171 = scmp.ne.s32.totalorder %s163, %s166
      %p172 = scmp.eq.s32.totalorder %s22, 0
      %p173 = por %p171, %p172
      %p174 = scmp.ne.s32.totalorder %s163, %s166
      %p175 = scmp.eq.s32.totalorder %s27, 3
      %p176 = por %p174, %p175
      %p177 = scmp.ne.s32.totalorder %s166, %s167
      %p178 = scmp.eq.s32.totalorder %s27, 0
      %p179 = por %p177, %p178
      %p180 = scmp.ne.s32.totalorder %s166, %s167
      %p181 = scmp.eq.s32.totalorder %s28, 3
      %p182 = por %p180, %p181
      %p184 = scmp.ne.s32.totalorder %s167, %s183
      %p185 = scmp.eq.s32.totalorder %s28, 0
      %p186 = por %p184, %p185
      %s187 = ssub.s32 %s22, %s29
      %p188 = scmp.eq.s32.totalorder %s187, 0
      %s190 = sadd.s32 %s189, 1
      %s191 = scalar_select %p188, %s189, %s190
      %p194 = pneg %p188
      %p195 = scmp.eq.s32.totalorder %s22, 3
      %p196 = por %p194, %p195
      %p197 = scmp.ne.s32.totalorder %s189, %s192
      %p198 = scmp.eq.s32.totalorder %s22, 0
      %p199 = por %p197, %p198
      %p200 = scmp.ne.s32.totalorder %s189, %s192
      %p201 = scmp.eq.s32.totalorder %s27, 3
      %p202 = por %p200, %p201
      %p203 = scmp.ne.s32.totalorder %s192, %s193
      %p204 = scmp.eq.s32.totalorder %s27, 0
      %p205 = por %p203, %p204
      %p206 = scmp.ne.s32.totalorder %s192, %s193
      %p207 = scmp.eq.s32.totalorder %s28, 3
      %p208 = por %p206, %p207
      %p210 = scmp.ne.s32.totalorder %s193, %s209
      %p211 = scmp.eq.s32.totalorder %s28, 0
      %p212 = por %p210, %p211
      %p213 = scmp.le.s32.totalorder 1, %s22
      %p214 = scmp.lt.s32.totalorder %s22, 5
      %p215 = pnand %p213, %p214
      %p216 = pneg %p215
      // Predicated region
      $region9: #{tpu_custom_call.1} parent=5 // pred_check
        _
      $region10: #{tpu_custom_call.1} parent=5 // pred_check_branch
        %218 = sbr.rel (%p215) target = $region12
      $region11: #{tpu_custom_call.1} parent=5 // pred_region
        %s219 = ssub.s32 %s22, 1
        // Predicated region
        $region13: #{tpu_custom_call.1} parent=11 // pred_check
          %p220 = pneg %p69
        $region14: #{tpu_custom_call.1} parent=11 // pred_check_branch
          %222 = sbr.rel (%p220) target = $region16
        $region15: #{tpu_custom_call.1} parent=11 // pred_region
          _
        $region16: #{tpu_custom_call.1} parent=11 // pred_fallthru
          _
        // Predicated region
        $region17: #{tpu_custom_call.1} parent=11 // pred_check
          %p223 = pneg %p90
        $region18: #{tpu_custom_call.1} parent=11 // pred_check_branch
          %225 = sbr.rel (%p223) target = $region20
        $region19: #{tpu_custom_call.1} parent=11 // pred_region
          _
        $region20: #{tpu_custom_call.1} parent=11 // pred_fallthru
          _
        // Predicated region
        $region21: #{tpu_custom_call.1} parent=11 // pred_check
          %p226 = pneg %p111
        $region22: #{tpu_custom_call.1} parent=11 // pred_check_branch
          %228 = sbr.rel (%p226) target = $region24
        $region23: #{tpu_custom_call.1} parent=11 // pred_region
          _
        $region24: #{tpu_custom_call.1} parent=11 // pred_fallthru
          _
        // Predicated region
        $region25: #{tpu_custom_call.1} parent=11 // pred_check
          %p229 = pneg %p132
        $region26: #{tpu_custom_call.1} parent=11 // pred_check_branch
          %231 = sbr.rel (%p229) target = $region28
        $region27: #{tpu_custom_call.1} parent=11 // pred_region
          _
        $region28: #{tpu_custom_call.1} parent=11 // pred_fallthru
          _
        // Predicated region
        $region29: #{tpu_custom_call.1} parent=11 // pred_check
          %p232 = pneg %p153
        $region30: #{tpu_custom_call.1} parent=11 // pred_check_branch
          %234 = sbr.rel (%p232) target = $region32
        $region31: #{tpu_custom_call.1} parent=11 // pred_region
          _
        $region32: #{tpu_custom_call.1} parent=11 // pred_fallthru
          _
      $region12: #{tpu_custom_call.1} parent=5 // pred_fallthru
        _
      %p235 = scmp.lt.s32.totalorder %s22, 4
      // Predicated region
      $region33: #{tpu_custom_call.1} parent=5 // pred_check
        %p236 = pneg %p235
      $region34: #{tpu_custom_call.1} parent=5 // pred_check_branch
        %238 = sbr.rel (%p236) target = $region36
      $region35: #{tpu_custom_call.1} parent=5 // pred_region
        // Predicated region
        $region37: #{tpu_custom_call.1} parent=35 // pred_check
          %p239 = pneg %p42
        $region38: #{tpu_custom_call.1} parent=35 // pred_check_branch
          %241 = sbr.rel (%p239) target = $region40
        $region39: #{tpu_custom_call.1} parent=35 // pred_region
          %s242 = sand.u32 %s32, 1
          %s243 = scalar_lea.sflag [#allocation3], %s242
          %s244 = sand.u32 %s32, 1
          %s245 = smul.addr %s244, 64
          %s246 = scalar_lea.vmem [#allocation2], %s245
          %s247 = smul.u32 8, %s22
          %249 = vsyncadd %s243, 0
          %s250 = smul.addr %s247, 8
          %s251 = scalar_lea.hbm %s0, %s250
          %s252 = sshll.u32 %s251, 4
          %s253 = int_to_ptr.hbm [resolvable:$true] %s252
          %s254 = sshll.u32 %s246, 4
          %s255 = int_to_ptr.vmem [resolvable:$true] %s254
          %260 = dma.hbm_to_vmem [thread:$0]  %s253, 1024, %s255, %s243, 128, 128, 8
        $region40: #{tpu_custom_call.1} parent=35 // pred_fallthru
          _
        // Predicated region
        $region41: #{tpu_custom_call.1} parent=35 // pred_check
          %p261 = pneg %p173
        $region42: #{tpu_custom_call.1} parent=35 // pred_check_branch
          %263 = sbr.rel (%p261) target = $region44
        $region43: #{tpu_custom_call.1} parent=35 // pred_region
          %s264 = sand.u32 %s163, 1
          %s265 = scalar_lea.sflag [#allocation6], %s264
          %s266 = sand.u32 %s163, 1
          %s267 = smul.addr %s266, 64
          %s268 = scalar_lea.vmem [#allocation5], %s267
          %s269 = smul.u32 8, %s22
          %271 = vsyncadd %s265, 0
          %s272 = smul.addr %s269, 2
          %s273 = smul.addr %s272, 4
          %s274 = scalar_lea.hbm %s6, %s273
          %s275 = sshll.u32 %s274, 4
          %s276 = int_to_ptr.hbm [resolvable:$true] %s275
          %s277 = sshll.u32 %s268, 4
          %s278 = int_to_ptr.vmem [resolvable:$true] %s277
          %283 = dma.hbm_to_vmem [thread:$0]  %s276, 1024, %s278, %s265, 128, 128, 8
        $region44: #{tpu_custom_call.1} parent=35 // pred_fallthru
          _
      $region36: #{tpu_custom_call.1} parent=5 // pred_fallthru
        _
      %p284 = scmp.le.s32.totalorder 1, %s22
      %p285 = scmp.lt.s32.totalorder %s22, 5
      %p286 = pnand %p284, %p285
      %p287 = pneg %p286
      // Predicated region
      $region45: #{tpu_custom_call.1} parent=5 // pred_check
        _
      $region46: #{tpu_custom_call.1} parent=5 // pred_check_branch
        %289 = sbr.rel (%p286) target = $region48
      $region47: #{tpu_custom_call.1} parent=5 // pred_region
        %s290 = ssub.s32 %s22, 1
        %s291 = sand.u32 %s35, 1
        %s292 = scalar_lea.sflag [#allocation3], %s291
        %s293 = sand.u32 %s35, 1
        %s294 = smul.addr %s293, 64
        %s295 = scalar_lea.vmem [#allocation2], %s294
        // Predicated region
        $region49: #{tpu_custom_call.1} parent=47 // pred_check
          %p296 = pneg %p48
        $region50: #{tpu_custom_call.1} parent=47 // pred_check_branch
          %298 = sbr.rel (%p296) target = $region52
        $region51: #{tpu_custom_call.1} parent=47 // pred_region
          %300 = dma.done %s292, 1024
        $region52: #{tpu_custom_call.1} parent=47 // pred_fallthru
          _
        %s301 = sand.u32 %s166, 1
        %s302 = scalar_lea.sflag [#allocation6], %s301
        %s303 = sand.u32 %s166, 1
        %s304 = smul.addr %s303, 64
        %s305 = scalar_lea.vmem [#allocation5], %s304
        // Predicated region
        $region53: #{tpu_custom_call.1} parent=47 // pred_check
          %p306 = pneg %p179
        $region54: #{tpu_custom_call.1} parent=47 // pred_check_branch
          %308 = sbr.rel (%p306) target = $region56
        $region55: #{tpu_custom_call.1} parent=47 // pred_region
          %310 = dma.done %s302, 1024
        $region56: #{tpu_custom_call.1} parent=47 // pred_fallthru
          _
        %s311 = sand.u32 %s35, 1
        %s312 = scalar_lea.sflag [#allocation3], %s311
        %s313 = sand.u32 %s35, 1
        %s314 = smul.addr %s313, 64
        %s315 = scalar_lea.vmem [#allocation2], %s314
        %p316 = pneg %p48
        %p317 = pneg %p45
        %p318 = pneg %p69
        %p319 = pneg %p66
        %p320 = pneg %p90
        %p321 = pneg %p87
        %p322 = pneg %p111
        %p323 = pneg %p108
        %p324 = pneg %p132
        %p325 = pneg %p129
        %p326 = pneg %p153
        %p327 = pneg %p150
        %s328 = sand.u32 %s166, 1
        %s329 = scalar_lea.sflag [#allocation6], %s328
        %s330 = sand.u32 %s166, 1
        %s331 = smul.addr %s330, 64
        %s332 = scalar_lea.vmem [#allocation5], %s331
        %p333 = pneg %p179
        %p334 = pneg %p176
        %p335 = pneg %p205
        %p336 = pneg %p202
        %s337 = sand.u32 %s192, 1
        %s338 = scalar_lea.sflag [#allocation4], %s337
        %s339 = sand.u32 %s192, 1
        %s340 = smul.addr %s339, 64
        %s341 = scalar_lea.vmem [#allocation7], %s340
        %s342 = smul.u32 8, %s27
        %s343 = smul.u32 8, %s27
        %s344 = smul.u32 8, %s27
        %v345 = vld [vmem:[%s295] sm:$0xff]
        %v346 = vld [vmem:[%s295 + $0x8] sm:$0xff]
        %v347 = vld [vmem:[%s295 + $0x10] sm:$0xff]
        %v348 = vld [vmem:[%s295 + $0x18] sm:$0xff]
        %v349 = vld [vmem:[%s295 + $0x20] sm:$0xff]
        %v350 = vld [vmem:[%s295 + $0x28] sm:$0xff]
        %v351 = vld [vmem:[%s295 + $0x30] sm:$0xff]
        %v352 = vld [vmem:[%s295 + $0x38] sm:$0xff]
        %v353 = vld [vmem:[%s1] sm:$0xff]
        %v354 = vld [vmem:[%s1 + $0x8] sm:$0xff]
        %v355 = vld [vmem:[%s1 + $0x10] sm:$0xff]
        %v356 = vld [vmem:[%s1 + $0x18] sm:$0xff]
        %v357 = vld [vmem:[%s1 + $0x20] sm:$0xff]
        %v358 = vld [vmem:[%s1 + $0x28] sm:$0xff]
        %v359 = vld [vmem:[%s1 + $0x30] sm:$0xff]
        %v360 = vld [vmem:[%s1 + $0x38] sm:$0xff]
        %v361 = vld [vmem:[%s1 + $0x40] sm:$0xff]
        %v362 = vld [vmem:[%s1 + $0x48] sm:$0xff]
        %v363 = vld [vmem:[%s1 + $0x50] sm:$0xff]
        %v364 = vld [vmem:[%s1 + $0x58] sm:$0xff]
        %v365 = vld [vmem:[%s1 + $0x60] sm:$0xff]
        %v366 = vld [vmem:[%s1 + $0x68] sm:$0xff]
        %v367 = vld [vmem:[%s1 + $0x70] sm:$0xff]
        %v368 = vld [vmem:[%s1 + $0x78] sm:$0xff]
        %v369 = vand.u32 %v368, 4294901760
        %370 = vmatpush.msra.mxu0 %v369
        %v371 = vand.u32 %v367, 4294901760
        %372 = vmatpush.msra.mxu0 %v371
        %v373 = vand.u32 %v366, 4294901760
        %374 = vmatpush.msra.mxu0 %v373
        %v375 = vand.u32 %v365, 4294901760
        %376 = vmatpush.msra.mxu0 %v375
        %v377 = vand.u32 %v364, 4294901760
        %378 = vmatpush.msra.mxu0 %v377
        %v379 = vand.u32 %v363, 4294901760
        %380 = vmatpush.msra.mxu0 %v379
        %v381 = vand.u32 %v362, 4294901760
        %382 = vmatpush.msra.mxu0 %v381
        %v383 = vand.u32 %v361, 4294901760
        %384 = vmatpush.msra.mxu0 %v383
        %v385 = vand.u32 %v360, 4294901760
        %386 = vmatpush.msra.mxu0 %v385
        %v387 = vand.u32 %v359, 4294901760
        %388 = vmatpush.msra.mxu0 %v387
        %v389 = vand.u32 %v358, 4294901760
        %390 = vmatpush.msra.mxu0 %v389
        %v391 = vand.u32 %v357, 4294901760
        %392 = vmatpush.msra.mxu0 %v391
        %v393 = vand.u32 %v356, 4294901760
        %394 = vmatpush.msra.mxu0 %v393
        %v395 = vand.u32 %v355, 4294901760
        %396 = vmatpush.msra.mxu0 %v395
        %v397 = vand.u32 %v354, 4294901760
        %398 = vmatpush.msra.mxu0 %v397
        %v399 = vand.u32 %v353, 4294901760
        %400 = vmatpush.msra.mxu0 %v399
        %v401 = vand.u32 %v345, 4294901760
        %v402 = vsub.f32 %v345, %v401
        %v403 = vand.u32 %v402, 4294901760
        %v404 = vsub.f32 %v402, %v403
        %v405 = vand.u32 %v404, 4294901760
        %406 = vmatmul.f32.gmra.mxu0 %v405
        %v407 = vpop.f32.mrf.mxu0
        %v408 = vadd.f32 0.0, %v407
        %v409 = vand.u32 %v346, 4294901760
        %v410 = vsub.f32 %v346, %v409
        %v411 = vand.u32 %v410, 4294901760
        %v412 = vsub.f32 %v410, %v411
        %v413 = vand.u32 %v412, 4294901760
        %414 = vmatmul.f32.gmra.mxu0 %v413
        %v415 = vpop.f32.mrf.mxu0
        %v416 = vadd.f32 0.0, %v415
        %v417 = vand.u32 %v347, 4294901760
        %v418 = vsub.f32 %v347, %v417
        %v419 = vand.u32 %v418, 4294901760
        %v420 = vsub.f32 %v418, %v419
        %v421 = vand.u32 %v420, 4294901760
        %422 = vmatmul.f32.gmra.mxu0 %v421
        %v423 = vpop.f32.mrf.mxu0
        %v424 = vadd.f32 0.0, %v423
        %v425 = vand.u32 %v348, 4294901760
        %v426 = vsub.f32 %v348, %v425
        %v427 = vand.u32 %v426, 4294901760
        %v428 = vsub.f32 %v426, %v427
        %v429 = vand.u32 %v428, 4294901760
        %430 = vmatmul.f32.gmra.mxu0 %v429
        %v431 = vpop.f32.mrf.mxu0
        %v432 = vadd.f32 0.0, %v431
        %v433 = vand.u32 %v349, 4294901760
        %v434 = vsub.f32 %v349, %v433
        %v435 = vand.u32 %v434, 4294901760
        %v436 = vsub.f32 %v434, %v435
        %v437 = vand.u32 %v436, 4294901760
        %438 = vmatmul.f32.gmra.mxu0 %v437
        %v439 = vpop.f32.mrf.mxu0
        %v440 = vadd.f32 0.0, %v439
        %v441 = vand.u32 %v350, 4294901760
        %v442 = vsub.f32 %v350, %v441
        %v443 = vand.u32 %v442, 4294901760
        %v444 = vsub.f32 %v442, %v443
        %v445 = vand.u32 %v444, 4294901760
        %446 = vmatmul.f32.gmra.mxu0 %v445
        %v447 = vpop.f32.mrf.mxu0
        %v448 = vadd.f32 0.0, %v447
        %v449 = vand.u32 %v351, 4294901760
        %v450 = vsub.f32 %v351, %v449
        %v451 = vand.u32 %v450, 4294901760
        %v452 = vsub.f32 %v450, %v451
        %v453 = vand.u32 %v452, 4294901760
        %454 = vmatmul.f32.gmra.mxu0 %v453
        %v455 = vpop.f32.mrf.mxu0
        %v456 = vadd.f32 0.0, %v455
        %v457 = vand.u32 %v352, 4294901760
        %v458 = vsub.f32 %v352, %v457
        %v459 = vand.u32 %v458, 4294901760
        %v460 = vsub.f32 %v458, %v459
        %v461 = vand.u32 %v460, 4294901760
        %462 = vmatmul.f32.gmra.mxu0 %v461
        %v463 = vpop.f32.mrf.mxu0
        %v464 = vadd.f32 0.0, %v463
        %465 = vdwg.mxu0
        %v466 = vand.u32 %v368, 4294901760
        %v467 = vsub.f32 %v368, %v466
        %v468 = vand.u32 %v467, 4294901760
        %v469 = vsub.f32 %v467, %v468
        %v470 = vand.u32 %v469, 4294901760
        %471 = vmatpush.msra.mxu0 %v470
        %v472 = vand.u32 %v367, 4294901760
        %v473 = vsub.f32 %v367, %v472
        %v474 = vand.u32 %v473, 4294901760
        %v475 = vsub.f32 %v473, %v474
        %v476 = vand.u32 %v475, 4294901760
        %477 = vmatpush.msra.mxu0 %v476
        %v478 = vand.u32 %v366, 4294901760
        %v479 = vsub.f32 %v366, %v478
        %v480 = vand.u32 %v479, 4294901760
        %v481 = vsub.f32 %v479, %v480
        %v482 = vand.u32 %v481, 4294901760
        %483 = vmatpush.msra.mxu0 %v482
        %v484 = vand.u32 %v365, 4294901760
        %v485 = vsub.f32 %v365, %v484
        %v486 = vand.u32 %v485, 4294901760
        %v487 = vsub.f32 %v485, %v486
        %v488 = vand.u32 %v487, 4294901760
        %489 = vmatpush.msra.mxu0 %v488
        %v490 = vand.u32 %v364, 4294901760
        %v491 = vsub.f32 %v364, %v490
        %v492 = vand.u32 %v491, 4294901760
        %v493 = vsub.f32 %v491, %v492
        %v494 = vand.u32 %v493, 4294901760
        %495 = vmatpush.msra.mxu0 %v494
        %v496 = vand.u32 %v363, 4294901760
        %v497 = vsub.f32 %v363, %v496
        %v498 = vand.u32 %v497, 4294901760
        %v499 = vsub.f32 %v497, %v498
        %v500 = vand.u32 %v499, 4294901760
        %501 = vmatpush.msra.mxu0 %v500
        %v502 = vand.u32 %v362, 4294901760
        %v503 = vsub.f32 %v362, %v502
        %v504 = vand.u32 %v503, 4294901760
        %v505 = vsub.f32 %v503, %v504
        %v506 = vand.u32 %v505, 4294901760
        %507 = vmatpush.msra.mxu0 %v506
        %v508 = vand.u32 %v361, 4294901760
        %v509 = vsub.f32 %v361, %v508
        %v510 = vand.u32 %v509, 4294901760
        %v511 = vsub.f32 %v509, %v510
        %v512 = vand.u32 %v511, 4294901760
        %513 = vmatpush.msra.mxu0 %v512
        %v514 = vand.u32 %v360, 4294901760
        %v515 = vsub.f32 %v360, %v514
        %v516 = vand.u32 %v515, 4294901760
        %v517 = vsub.f32 %v515, %v516
        %v518 = vand.u32 %v517, 4294901760
        %519 = vmatpush.msra.mxu0 %v518
        %v520 = vand.u32 %v359, 4294901760
        %v521 = vsub.f32 %v359, %v520
        %v522 = vand.u32 %v521, 4294901760
        %v523 = vsub.f32 %v521, %v522
        %v524 = vand.u32 %v523, 4294901760
        %525 = vmatpush.msra.mxu0 %v524
        %v526 = vand.u32 %v358, 4294901760
        %v527 = vsub.f32 %v358, %v526
        %v528 = vand.u32 %v527, 4294901760
        %v529 = vsub.f32 %v527, %v528
        %v530 = vand.u32 %v529, 4294901760
        %531 = vmatpush.msra.mxu0 %v530
        %v532 = vand.u32 %v357, 4294901760
        %v533 = vsub.f32 %v357, %v532
        %v534 = vand.u32 %v533, 4294901760
        %v535 = vsub.f32 %v533, %v534
        %v536 = vand.u32 %v535, 4294901760
        %537 = vmatpush.msra.mxu0 %v536
        %v538 = vand.u32 %v356, 4294901760
        %v539 = vsub.f32 %v356, %v538
        %v540 = vand.u32 %v539, 4294901760
        %v541 = vsub.f32 %v539, %v540
        %v542 = vand.u32 %v541, 4294901760
        %543 = vmatpush.msra.mxu0 %v542
        %v544 = vand.u32 %v355, 4294901760
        %v545 = vsub.f32 %v355, %v544
        %v546 = vand.u32 %v545, 4294901760
        %v547 = vsub.f32 %v545, %v546
        %v548 = vand.u32 %v547, 4294901760
        %549 = vmatpush.msra.mxu0 %v548
        %v550 = vand.u32 %v354, 4294901760
        %v551 = vsub.f32 %v354, %v550
        %v552 = vand.u32 %v551, 4294901760
        %v553 = vsub.f32 %v551, %v552
        %v554 = vand.u32 %v553, 4294901760
        %555 = vmatpush.msra.mxu0 %v554
        %v556 = vand.u32 %v353, 4294901760
        %v557 = vsub.f32 %v353, %v556
        %v558 = vand.u32 %v557, 4294901760
        %v559 = vsub.f32 %v557, %v558
        %v560 = vand.u32 %v559, 4294901760
        %561 = vmatpush.msra.mxu0 %v560
        %v562 = vand.u32 %v345, 4294901760
        %563 = vmatmul.f32.gmra.mxu0 %v562
        %v564 = vpop.f32.mrf.mxu0
        %v565 = vadd.f32 %v408, %v564
        %v566 = vand.u32 %v346, 4294901760
        %567 = vmatmul.f32.gmra.mxu0 %v566
        %v568 = vpop.f32.mrf.mxu0
        %v569 = vadd.f32 %v416, %v568
        %v570 = vand.u32 %v347, 4294901760
        %571 = vmatmul.f32.gmra.mxu0 %v570
        %v572 = vpop.f32.mrf.mxu0
        %v573 = vadd.f32 %v424, %v572
        %v574 = vand.u32 %v348, 4294901760
        %575 = vmatmul.f32.gmra.mxu0 %v574
        %v576 = vpop.f32.mrf.mxu0
        %v577 = vadd.f32 %v432, %v576
        %v578 = vand.u32 %v349, 4294901760
        %579 = vmatmul.f32.gmra.mxu0 %v578
        %v580 = vpop.f32.mrf.mxu0
        %v581 = vadd.f32 %v440, %v580
        %v582 = vand.u32 %v350, 4294901760
        %583 = vmatmul.f32.gmra.mxu0 %v582
        %v584 = vpop.f32.mrf.mxu0
        %v585 = vadd.f32 %v448, %v584
        %v586 = vand.u32 %v351, 4294901760
        %587 = vmatmul.f32.gmra.mxu0 %v586
        %v588 = vpop.f32.mrf.mxu0
        %v589 = vadd.f32 %v456, %v588
        %v590 = vand.u32 %v352, 4294901760
        %591 = vmatmul.f32.gmra.mxu0 %v590
        %v592 = vpop.f32.mrf.mxu0
        %v593 = vadd.f32 %v464, %v592
        %594 = vdwg.mxu0
        %v595 = vand.u32 %v368, 4294901760
        %v596 = vsub.f32 %v368, %v595
        %597 = vmatpush.msra.mxu0 %v596
        %v598 = vand.u32 %v367, 4294901760
        %v599 = vsub.f32 %v367, %v598
        %600 = vmatpush.msra.mxu0 %v599
        %v601 = vand.u32 %v366, 4294901760
        %v602 = vsub.f32 %v366, %v601
        %603 = vmatpush.msra.mxu0 %v602
        %v604 = vand.u32 %v365, 4294901760
        %v605 = vsub.f32 %v365, %v604
        %606 = vmatpush.msra.mxu0 %v605
        %v607 = vand.u32 %v364, 4294901760
        %v608 = vsub.f32 %v364, %v607
        %609 = vmatpush.msra.mxu0 %v608
        %v610 = vand.u32 %v363, 4294901760
        %v611 = vsub.f32 %v363, %v610
        %612 = vmatpush.msra.mxu0 %v611
        %v613 = vand.u32 %v362, 4294901760
        %v614 = vsub.f32 %v362, %v613
        %615 = vmatpush.msra.mxu0 %v614
        %v616 = vand.u32 %v361, 4294901760
        %v617 = vsub.f32 %v361, %v616
        %618 = vmatpush.msra.mxu0 %v617
        %v619 = vand.u32 %v360, 4294901760
        %v620 = vsub.f32 %v360, %v619
        %621 = vmatpush.msra.mxu0 %v620
        %v622 = vand.u32 %v359, 4294901760
        %v623 = vsub.f32 %v359, %v622
        %624 = vmatpush.msra.mxu0 %v623
        %v625 = vand.u32 %v358, 4294901760
        %v626 = vsub.f32 %v358, %v625
        %627 = vmatpush.msra.mxu0 %v626
        %v628 = vand.u32 %v357, 4294901760
        %v629 = vsub.f32 %v357, %v628
        %630 = vmatpush.msra.mxu0 %v629
        %v631 = vand.u32 %v356, 4294901760
        %v632 = vsub.f32 %v356, %v631
        %633 = vmatpush.msra.mxu0 %v632
        %v634 = vand.u32 %v355, 4294901760
        %v635 = vsub.f32 %v355, %v634
        %636 = vmatpush.msra.mxu0 %v635
        %v637 = vand.u32 %v354, 4294901760
        %v638 = vsub.f32 %v354, %v637
        %639 = vmatpush.msra.mxu0 %v638
        %v640 = vand.u32 %v353, 4294901760
        %v641 = vsub.f32 %v353, %v640
        %642 = vmatpush.msra.mxu0 %v641
        %v643 = vand.u32 %v345, 4294901760
        %v644 = vsub.f32 %v345, %v643
        %645 = vmatmul.f32.gmra.mxu0 %v644
        %v646 = vpop.f32.mrf.mxu0
        %v647 = vadd.f32 %v565, %v646
        %v648 = vand.u32 %v346, 4294901760
        %v649 = vsub.f32 %v346, %v648
        %650 = vmatmul.f32.gmra.mxu0 %v649
        %v651 = vpop.f32.mrf.mxu0
        %v652 = vadd.f32 %v569, %v651
        %v653 = vand.u32 %v347, 4294901760
        %v654 = vsub.f32 %v347, %v653
        %655 = vmatmul.f32.gmra.mxu0 %v654
        %v656 = vpop.f32.mrf.mxu0
        %v657 = vadd.f32 %v573, %v656
        %v658 = vand.u32 %v348, 4294901760
        %v659 = vsub.f32 %v348, %v658
        %660 = vmatmul.f32.gmra.mxu0 %v659
        %v661 = vpop.f32.mrf.mxu0
        %v662 = vadd.f32 %v577, %v661
        %v663 = vand.u32 %v349, 4294901760
        %v664 = vsub.f32 %v349, %v663
        %665 = vmatmul.f32.gmra.mxu0 %v664
        %v666 = vpop.f32.mrf.mxu0
        %v667 = vadd.f32 %v581, %v666
        %v668 = vand.u32 %v350, 4294901760
        %v669 = vsub.f32 %v350, %v668
        %670 = vmatmul.f32.gmra.mxu0 %v669
        %v671 = vpop.f32.mrf.mxu0
        %v672 = vadd.f32 %v585, %v671
        %v673 = vand.u32 %v351, 4294901760
        %v674 = vsub.f32 %v351, %v673
        %675 = vmatmul.f32.gmra.mxu0 %v674
        %v676 = vpop.f32.mrf.mxu0
        %v677 = vadd.f32 %v589, %v676
        %v678 = vand.u32 %v352, 4294901760
        %v679 = vsub.f32 %v352, %v678
        %680 = vmatmul.f32.gmra.mxu0 %v679
        %v681 = vpop.f32.mrf.mxu0
        %v682 = vadd.f32 %v593, %v681
        %683 = vdwg.mxu0
        %v684 = vand.u32 %v368, 4294901760
        %685 = vmatpush.msra.mxu0 %v684
        %v686 = vand.u32 %v367, 4294901760
        %687 = vmatpush.msra.mxu0 %v686
        %v688 = vand.u32 %v366, 4294901760
        %689 = vmatpush.msra.mxu0 %v688
        %v690 = vand.u32 %v365, 4294901760
        %691 = vmatpush.msra.mxu0 %v690
        %v692 = vand.u32 %v364, 4294901760
        %693 = vmatpush.msra.mxu0 %v692
        %v694 = vand.u32 %v363, 4294901760
        %695 = vmatpush.msra.mxu0 %v694
        %v696 = vand.u32 %v362, 4294901760
        %697 = vmatpush.msra.mxu0 %v696
        %v698 = vand.u32 %v361, 4294901760
        %699 = vmatpush.msra.mxu0 %v698
        %v700 = vand.u32 %v360, 4294901760
        %701 = vmatpush.msra.mxu0 %v700
        %v702 = vand.u32 %v359, 4294901760
        %703 = vmatpush.msra.mxu0 %v702
        %v704 = vand.u32 %v358, 4294901760
        %705 = vmatpush.msra.mxu0 %v704
        %v706 = vand.u32 %v357, 4294901760
        %707 = vmatpush.msra.mxu0 %v706
        %v708 = vand.u32 %v356, 4294901760
        %709 = vmatpush.msra.mxu0 %v708
        %v710 = vand.u32 %v355, 4294901760
        %711 = vmatpush.msra.mxu0 %v710
        %v712 = vand.u32 %v354, 4294901760
        %713 = vmatpush.msra.mxu0 %v712
        %v714 = vand.u32 %v353, 4294901760
        %715 = vmatpush.msra.mxu0 %v714
        %v716 = vand.u32 %v345, 4294901760
        %v717 = vsub.f32 %v345, %v716
        %v718 = vand.u32 %v717, 4294901760
        %719 = vmatmul.f32.gmra.mxu0 %v718
        %v720 = vpop.f32.mrf.mxu0
        %v721 = vadd.f32 %v647, %v720
        %v722 = vand.u32 %v346, 4294901760
        %v723 = vsub.f32 %v346, %v722
        %v724 = vand.u32 %v723, 4294901760
        %725 = vmatmul.f32.gmra.mxu0 %v724
        %v726 = vpop.f32.mrf.mxu0
        %v727 = vadd.f32 %v652, %v726
        %v728 = vand.u32 %v347, 4294901760
        %v729 = vsub.f32 %v347, %v728
        %v730 = vand.u32 %v729, 4294901760
        %731 = vmatmul.f32.gmra.mxu0 %v730
        %v732 = vpop.f32.mrf.mxu0
        %v733 = vadd.f32 %v657, %v732
        %v734 = vand.u32 %v348, 4294901760
        %v735 = vsub.f32 %v348, %v734
        %v736 = vand.u32 %v735, 4294901760
        %737 = vmatmul.f32.gmra.mxu0 %v736
        %v738 = vpop.f32.mrf.mxu0
        %v739 = vadd.f32 %v662, %v738
        %v740 = vand.u32 %v349, 4294901760
        %v741 = vsub.f32 %v349, %v740
        %v742 = vand.u32 %v741, 4294901760
        %743 = vmatmul.f32.gmra.mxu0 %v742
        %v744 = vpop.f32.mrf.mxu0
        %v745 = vadd.f32 %v667, %v744
        %v746 = vand.u32 %v350, 4294901760
        %v747 = vsub.f32 %v350, %v746
        %v748 = vand.u32 %v747, 4294901760
        %749 = vmatmul.f32.gmra.mxu0 %v748
        %v750 = vpop.f32.mrf.mxu0
        %v751 = vadd.f32 %v672, %v750
        %v752 = vand.u32 %v351, 4294901760
        %v753 = vsub.f32 %v351, %v752
        %v754 = vand.u32 %v753, 4294901760
        %755 = vmatmul.f32.gmra.mxu0 %v754
        %v756 = vpop.f32.mrf.mxu0
        %v757 = vadd.f32 %v677, %v756
        %v758 = vand.u32 %v352, 4294901760
        %v759 = vsub.f32 %v352, %v758
        %v760 = vand.u32 %v759, 4294901760
        %761 = vmatmul.f32.gmra.mxu0 %v760
        %v762 = vpop.f32.mrf.mxu0
        %v763 = vadd.f32 %v682, %v762
        %764 = vdwg.mxu0
        %v765 = vand.u32 %v368, 4294901760
        %v766 = vsub.f32 %v368, %v765
        %v767 = vand.u32 %v766, 4294901760
        %768 = vmatpush.msra.mxu0 %v767
        %v769 = vand.u32 %v367, 4294901760
        %v770 = vsub.f32 %v367, %v769
        %v771 = vand.u32 %v770, 4294901760
        %772 = vmatpush.msra.mxu0 %v771
        %v773 = vand.u32 %v366, 4294901760
        %v774 = vsub.f32 %v366, %v773
        %v775 = vand.u32 %v774, 4294901760
        %776 = vmatpush.msra.mxu0 %v775
        %v777 = vand.u32 %v365, 4294901760
        %v778 = vsub.f32 %v365, %v777
        %v779 = vand.u32 %v778, 4294901760
        %780 = vmatpush.msra.mxu0 %v779
        %v781 = vand.u32 %v364, 4294901760
        %v782 = vsub.f32 %v364, %v781
        %v783 = vand.u32 %v782, 4294901760
        %784 = vmatpush.msra.mxu0 %v783
        %v785 = vand.u32 %v363, 4294901760
        %v786 = vsub.f32 %v363, %v785
        %v787 = vand.u32 %v786, 4294901760
        %788 = vmatpush.msra.mxu0 %v787
        %v789 = vand.u32 %v362, 4294901760
        %v790 = vsub.f32 %v362, %v789
        %v791 = vand.u32 %v790, 4294901760
        %792 = vmatpush.msra.mxu0 %v791
        %v793 = vand.u32 %v361, 4294901760
        %v794 = vsub.f32 %v361, %v793
        %v795 = vand.u32 %v794, 4294901760
        %796 = vmatpush.msra.mxu0 %v795
        %v797 = vand.u32 %v360, 4294901760
        %v798 = vsub.f32 %v360, %v797
        %v799 = vand.u32 %v798, 4294901760
        %800 = vmatpush.msra.mxu0 %v799
        %v801 = vand.u32 %v359, 4294901760
        %v802 = vsub.f32 %v359, %v801
        %v803 = vand.u32 %v802, 4294901760
        %804 = vmatpush.msra.mxu0 %v803
        %v805 = vand.u32 %v358, 4294901760
        %v806 = vsub.f32 %v358, %v805
        %v807 = vand.u32 %v806, 4294901760
        %808 = vmatpush.msra.mxu0 %v807
        %v809 = vand.u32 %v357, 4294901760
        %v810 = vsub.f32 %v357, %v809
        %v811 = vand.u32 %v810, 4294901760
        %812 = vmatpush.msra.mxu0 %v811
        %v813 = vand.u32 %v356, 4294901760
        %v814 = vsub.f32 %v356, %v813
        %v815 = vand.u32 %v814, 4294901760
        %816 = vmatpush.msra.mxu0 %v815
        %v817 = vand.u32 %v355, 4294901760
        %v818 = vsub.f32 %v355, %v817
        %v819 = vand.u32 %v818, 4294901760
        %820 = vmatpush.msra.mxu0 %v819
        %v821 = vand.u32 %v354, 4294901760
        %v822 = vsub.f32 %v354, %v821
        %v823 = vand.u32 %v822, 4294901760
        %824 = vmatpush.msra.mxu0 %v823
        %v825 = vand.u32 %v353, 4294901760
        %v826 = vsub.f32 %v353, %v825
        %v827 = vand.u32 %v826, 4294901760
        %828 = vmatpush.msra.mxu0 %v827
        %v829 = vand.u32 %v345, 4294901760
        %830 = vmatmul.f32.gmra.mxu0 %v829
        %v831 = vpop.f32.mrf.mxu0
        %v832 = vadd.f32 %v721, %v831
        %v833 = vand.u32 %v346, 4294901760
        %834 = vmatmul.f32.gmra.mxu0 %v833
        %v835 = vpop.f32.mrf.mxu0
        %v836 = vadd.f32 %v727, %v835
        %v837 = vand.u32 %v347, 4294901760
        %838 = vmatmul.f32.gmra.mxu0 %v837
        %v839 = vpop.f32.mrf.mxu0
        %v840 = vadd.f32 %v733, %v839
        %v841 = vand.u32 %v348, 4294901760
        %842 = vmatmul.f32.gmra.mxu0 %v841
        %v843 = vpop.f32.mrf.mxu0
        %v844 = vadd.f32 %v739, %v843
        %v845 = vand.u32 %v349, 4294901760
        %846 = vmatmul.f32.gmra.mxu0 %v845
        %v847 = vpop.f32.mrf.mxu0
        %v848 = vadd.f32 %v745, %v847
        %v849 = vand.u32 %v350, 4294901760
        %850 = vmatmul.f32.gmra.mxu0 %v849
        %v851 = vpop.f32.mrf.mxu0
        %v852 = vadd.f32 %v751, %v851
        %v853 = vand.u32 %v351, 4294901760
        %854 = vmatmul.f32.gmra.mxu0 %v853
        %v855 = vpop.f32.mrf.mxu0
        %v856 = vadd.f32 %v757, %v855
        %v857 = vand.u32 %v352, 4294901760
        %858 = vmatmul.f32.gmra.mxu0 %v857
        %v859 = vpop.f32.mrf.mxu0
        %v860 = vadd.f32 %v763, %v859
        %861 = vdwg.mxu0
        %v862 = vand.u32 %v368, 4294901760
        %863 = vmatpush.msra.mxu0 %v862
        %v864 = vand.u32 %v367, 4294901760
        %865 = vmatpush.msra.mxu0 %v864
        %v866 = vand.u32 %v366, 4294901760
        %867 = vmatpush.msra.mxu0 %v866
        %v868 = vand.u32 %v365, 4294901760
        %869 = vmatpush.msra.mxu0 %v868
        %v870 = vand.u32 %v364, 4294901760
        %871 = vmatpush.msra.mxu0 %v870
        %v872 = vand.u32 %v363, 4294901760
        %873 = vmatpush.msra.mxu0 %v872
        %v874 = vand.u32 %v362, 4294901760
        %875 = vmatpush.msra.mxu0 %v874
        %v876 = vand.u32 %v361, 4294901760
        %877 = vmatpush.msra.mxu0 %v876
        %v878 = vand.u32 %v360, 4294901760
        %879 = vmatpush.msra.mxu0 %v878
        %v880 = vand.u32 %v359, 4294901760
        %881 = vmatpush.msra.mxu0 %v880
        %v882 = vand.u32 %v358, 4294901760
        %883 = vmatpush.msra.mxu0 %v882
        %v884 = vand.u32 %v357, 4294901760
        %885 = vmatpush.msra.mxu0 %v884
        %v886 = vand.u32 %v356, 4294901760
        %887 = vmatpush.msra.mxu0 %v886
        %v888 = vand.u32 %v355, 4294901760
        %889 = vmatpush.msra.mxu0 %v888
        %v890 = vand.u32 %v354, 4294901760
        %891 = vmatpush.msra.mxu0 %v890
        %v892 = vand.u32 %v353, 4294901760
        %893 = vmatpush.msra.mxu0 %v892
        %v894 = vand.u32 %v345, 4294901760
        %895 = vmatmul.f32.gmra.mxu0 %v894
        %v896 = vpop.f32.mrf.mxu0
        %v897 = vadd.f32 %v832, %v896
        %v898 = vand.u32 %v346, 4294901760
        %899 = vmatmul.f32.gmra.mxu0 %v898
        %v900 = vpop.f32.mrf.mxu0
        %v901 = vadd.f32 %v836, %v900
        %v902 = vand.u32 %v347, 4294901760
        %903 = vmatmul.f32.gmra.mxu0 %v902
        %v904 = vpop.f32.mrf.mxu0
        %v905 = vadd.f32 %v840, %v904
        %v906 = vand.u32 %v348, 4294901760
        %907 = vmatmul.f32.gmra.mxu0 %v906
        %v908 = vpop.f32.mrf.mxu0
        %v909 = vadd.f32 %v844, %v908
        %v910 = vand.u32 %v349, 4294901760
        %911 = vmatmul.f32.gmra.mxu0 %v910
        %v912 = vpop.f32.mrf.mxu0
        %v913 = vadd.f32 %v848, %v912
        %v914 = vand.u32 %v350, 4294901760
        %915 = vmatmul.f32.gmra.mxu0 %v914
        %v916 = vpop.f32.mrf.mxu0
        %v917 = vadd.f32 %v852, %v916
        %v918 = vand.u32 %v351, 4294901760
        %919 = vmatmul.f32.gmra.mxu0 %v918
        %v920 = vpop.f32.mrf.mxu0
        %v921 = vadd.f32 %v856, %v920
        %v922 = vand.u32 %v352, 4294901760
        %923 = vmatmul.f32.gmra.mxu0 %v922
        %v924 = vpop.f32.mrf.mxu0
        %v925 = vadd.f32 %v860, %v924
        %926 = vdwg.mxu0
        %v927 = vmul.f32 %v345, %v345
        %v928 = vmul.f32 %v346, %v346
        %v929 = vmul.f32 %v347, %v347
        %v930 = vmul.f32 %v348, %v348
        %v931 = vmul.f32 %v349, %v349
        %v932 = vmul.f32 %v350, %v350
        %v933 = vmul.f32 %v351, %v351
        %v934 = vmul.f32 %v352, %v352
        %v935 = vand.u32 %v368, 4294901760
        %936 = vmatpush.msra.mxu0 %v935
        %v937 = vand.u32 %v367, 4294901760
        %938 = vmatpush.msra.mxu0 %v937
        %v939 = vand.u32 %v366, 4294901760
        %940 = vmatpush.msra.mxu0 %v939
        %v941 = vand.u32 %v365, 4294901760
        %942 = vmatpush.msra.mxu0 %v941
        %v943 = vand.u32 %v364, 4294901760
        %944 = vmatpush.msra.mxu0 %v943
        %v945 = vand.u32 %v363, 4294901760
        %946 = vmatpush.msra.mxu0 %v945
        %v947 = vand.u32 %v362, 4294901760
        %948 = vmatpush.msra.mxu0 %v947
        %v949 = vand.u32 %v361, 4294901760
        %950 = vmatpush.msra.mxu0 %v949
        %v951 = vand.u32 %v360, 4294901760
        %952 = vmatpush.msra.mxu0 %v951
        %v953 = vand.u32 %v359, 4294901760
        %954 = vmatpush.msra.mxu0 %v953
        %v955 = vand.u32 %v358, 4294901760
        %956 = vmatpush.msra.mxu0 %v955
        %v957 = vand.u32 %v357, 4294901760
        %958 = vmatpush.msra.mxu0 %v957
        %v959 = vand.u32 %v356, 4294901760
        %960 = vmatpush.msra.mxu0 %v959
        %v961 = vand.u32 %v355, 4294901760
        %962 = vmatpush.msra.mxu0 %v961
        %v963 = vand.u32 %v354, 4294901760
        %964 = vmatpush.msra.mxu0 %v963
        %v965 = vand.u32 %v353, 4294901760
        %966 = vmatpush.msra.mxu0 %v965
        %v967 = vand.u32 %v927, 4294901760
        %v968 = vsub.f32 %v927, %v967
        %v969 = vand.u32 %v968, 4294901760
        %v970 = vsub.f32 %v968, %v969
        %v971 = vand.u32 %v970, 4294901760
        %972 = vmatmul.f32.gmra.mxu0 %v971
        %v973 = vpop.f32.mrf.mxu0
        %v974 = vadd.f32 0.0, %v973
        %v975 = vand.u32 %v928, 4294901760
        %v976 = vsub.f32 %v928, %v975
        %v977 = vand.u32 %v976, 4294901760
        %v978 = vsub.f32 %v976, %v977
        %v979 = vand.u32 %v978, 4294901760
        %980 = vmatmul.f32.gmra.mxu0 %v979
        %v981 = vpop.f32.mrf.mxu0
        %v982 = vadd.f32 0.0, %v981
        %v983 = vand.u32 %v929, 4294901760
        %v984 = vsub.f32 %v929, %v983
        %v985 = vand.u32 %v984, 4294901760
        %v986 = vsub.f32 %v984, %v985
        %v987 = vand.u32 %v986, 4294901760
        %988 = vmatmul.f32.gmra.mxu0 %v987
        %v989 = vpop.f32.mrf.mxu0
        %v990 = vadd.f32 0.0, %v989
        %v991 = vand.u32 %v930, 4294901760
        %v992 = vsub.f32 %v930, %v991
        %v993 = vand.u32 %v992, 4294901760
        %v994 = vsub.f32 %v992, %v993
        %v995 = vand.u32 %v994, 4294901760
        %996 = vmatmul.f32.gmra.mxu0 %v995
        %v997 = vpop.f32.mrf.mxu0
        %v998 = vadd.f32 0.0, %v997
        %v999 = vand.u32 %v931, 4294901760
        %v1000 = vsub.f32 %v931, %v999
        %v1001 = vand.u32 %v1000, 4294901760
        %v1002 = vsub.f32 %v1000, %v1001
        %v1003 = vand.u32 %v1002, 4294901760
        %1004 = vmatmul.f32.gmra.mxu0 %v1003
        %v1005 = vpop.f32.mrf.mxu0
        %v1006 = vadd.f32 0.0, %v1005
        %v1007 = vand.u32 %v932, 4294901760
        %v1008 = vsub.f32 %v932, %v1007
        %v1009 = vand.u32 %v1008, 4294901760
        %v1010 = vsub.f32 %v1008, %v1009
        %v1011 = vand.u32 %v1010, 4294901760
        %1012 = vmatmul.f32.gmra.mxu0 %v1011
        %v1013 = vpop.f32.mrf.mxu0
        %v1014 = vadd.f32 0.0, %v1013
        %v1015 = vand.u32 %v933, 4294901760
        %v1016 = vsub.f32 %v933, %v1015
        %v1017 = vand.u32 %v1016, 4294901760
        %v1018 = vsub.f32 %v1016, %v1017
        %v1019 = vand.u32 %v1018, 4294901760
        %1020 = vmatmul.f32.gmra.mxu0 %v1019
        %v1021 = vpop.f32.mrf.mxu0
        %v1022 = vadd.f32 0.0, %v1021
        %v1023 = vand.u32 %v934, 4294901760
        %v1024 = vsub.f32 %v934, %v1023
        %v1025 = vand.u32 %v1024, 4294901760
        %v1026 = vsub.f32 %v1024, %v1025
        %v1027 = vand.u32 %v1026, 4294901760
        %1028 = vmatmul.f32.gmra.mxu0 %v1027
        %v1029 = vpop.f32.mrf.mxu0
        %v1030 = vadd.f32 0.0, %v1029
        %1031 = vdwg.mxu0
        %v1032 = vand.u32 %v368, 4294901760
        %v1033 = vsub.f32 %v368, %v1032
        %v1034 = vand.u32 %v1033, 4294901760
        %v1035 = vsub.f32 %v1033, %v1034
        %v1036 = vand.u32 %v1035, 4294901760
        %1037 = vmatpush.msra.mxu0 %v1036
        %v1038 = vand.u32 %v367, 4294901760
        %v1039 = vsub.f32 %v367, %v1038
        %v1040 = vand.u32 %v1039, 4294901760
        %v1041 = vsub.f32 %v1039, %v1040
        %v1042 = vand.u32 %v1041, 4294901760
        %1043 = vmatpush.msra.mxu0 %v1042
        %v1044 = vand.u32 %v366, 4294901760
        %v1045 = vsub.f32 %v366, %v1044
        %v1046 = vand.u32 %v1045, 4294901760
        %v1047 = vsub.f32 %v1045, %v1046
        %v1048 = vand.u32 %v1047, 4294901760
        %1049 = vmatpush.msra.mxu0 %v1048
        %v1050 = vand.u32 %v365, 4294901760
        %v1051 = vsub.f32 %v365, %v1050
        %v1052 = vand.u32 %v1051, 4294901760
        %v1053 = vsub.f32 %v1051, %v1052
        %v1054 = vand.u32 %v1053, 4294901760
        %1055 = vmatpush.msra.mxu0 %v1054
        %v1056 = vand.u32 %v364, 4294901760
        %v1057 = vsub.f32 %v364, %v1056
        %v1058 = vand.u32 %v1057, 4294901760
        %v1059 = vsub.f32 %v1057, %v1058
        %v1060 = vand.u32 %v1059, 4294901760
        %1061 = vmatpush.msra.mxu0 %v1060
        %v1062 = vand.u32 %v363, 4294901760
        %v1063 = vsub.f32 %v363, %v1062
        %v1064 = vand.u32 %v1063, 4294901760
        %v1065 = vsub.f32 %v1063, %v1064
        %v1066 = vand.u32 %v1065, 4294901760
        %1067 = vmatpush.msra.mxu0 %v1066
        %v1068 = vand.u32 %v362, 4294901760
        %v1069 = vsub.f32 %v362, %v1068
        %v1070 = vand.u32 %v1069, 4294901760
        %v1071 = vsub.f32 %v1069, %v1070
        %v1072 = vand.u32 %v1071, 4294901760
        %1073 = vmatpush.msra.mxu0 %v1072
        %v1074 = vand.u32 %v361, 4294901760
        %v1075 = vsub.f32 %v361, %v1074
        %v1076 = vand.u32 %v1075, 4294901760
        %v1077 = vsub.f32 %v1075, %v1076
        %v1078 = vand.u32 %v1077, 4294901760
        %1079 = vmatpush.msra.mxu0 %v1078
        %v1080 = vand.u32 %v360, 4294901760
        %v1081 = vsub.f32 %v360, %v1080
        %v1082 = vand.u32 %v1081, 4294901760
        %v1083 = vsub.f32 %v1081, %v1082
        %v1084 = vand.u32 %v1083, 4294901760
        %1085 = vmatpush.msra.mxu0 %v1084
        %v1086 = vand.u32 %v359, 4294901760
        %v1087 = vsub.f32 %v359, %v1086
        %v1088 = vand.u32 %v1087, 4294901760
        %v1089 = vsub.f32 %v1087, %v1088
        %v1090 = vand.u32 %v1089, 4294901760
        %1091 = vmatpush.msra.mxu0 %v1090
        %v1092 = vand.u32 %v358, 4294901760
        %v1093 = vsub.f32 %v358, %v1092
        %v1094 = vand.u32 %v1093, 4294901760
        %v1095 = vsub.f32 %v1093, %v1094
        %v1096 = vand.u32 %v1095, 4294901760
        %1097 = vmatpush.msra.mxu0 %v1096
        %v1098 = vand.u32 %v357, 4294901760
        %v1099 = vsub.f32 %v357, %v1098
        %v1100 = vand.u32 %v1099, 4294901760
        %v1101 = vsub.f32 %v1099, %v1100
        %v1102 = vand.u32 %v1101, 4294901760
        %1103 = vmatpush.msra.mxu0 %v1102
        %v1104 = vand.u32 %v356, 4294901760
        %v1105 = vsub.f32 %v356, %v1104
        %v1106 = vand.u32 %v1105, 4294901760
        %v1107 = vsub.f32 %v1105, %v1106
        %v1108 = vand.u32 %v1107, 4294901760
        %1109 = vmatpush.msra.mxu0 %v1108
        %v1110 = vand.u32 %v355, 4294901760
        %v1111 = vsub.f32 %v355, %v1110
        %v1112 = vand.u32 %v1111, 4294901760
        %v1113 = vsub.f32 %v1111, %v1112
        %v1114 = vand.u32 %v1113, 4294901760
        %1115 = vmatpush.msra.mxu0 %v1114
        %v1116 = vand.u32 %v354, 4294901760
        %v1117 = vsub.f32 %v354, %v1116
        %v1118 = vand.u32 %v1117, 4294901760
        %v1119 = vsub.f32 %v1117, %v1118
        %v1120 = vand.u32 %v1119, 4294901760
        %1121 = vmatpush.msra.mxu0 %v1120
        %v1122 = vand.u32 %v353, 4294901760
        %v1123 = vsub.f32 %v353, %v1122
        %v1124 = vand.u32 %v1123, 4294901760
        %v1125 = vsub.f32 %v1123, %v1124
        %v1126 = vand.u32 %v1125, 4294901760
        %1127 = vmatpush.msra.mxu0 %v1126
        %v1128 = vand.u32 %v927, 4294901760
        %1129 = vmatmul.f32.gmra.mxu0 %v1128
        %v1130 = vpop.f32.mrf.mxu0
        %v1131 = vadd.f32 %v974, %v1130
        %v1132 = vand.u32 %v928, 4294901760
        %1133 = vmatmul.f32.gmra.mxu0 %v1132
        %v1134 = vpop.f32.mrf.mxu0
        %v1135 = vadd.f32 %v982, %v1134
        %v1136 = vand.u32 %v929, 4294901760
        %1137 = vmatmul.f32.gmra.mxu0 %v1136
        %v1138 = vpop.f32.mrf.mxu0
        %v1139 = vadd.f32 %v990, %v1138
        %v1140 = vand.u32 %v930, 4294901760
        %1141 = vmatmul.f32.gmra.mxu0 %v1140
        %v1142 = vpop.f32.mrf.mxu0
        %v1143 = vadd.f32 %v998, %v1142
        %v1144 = vand.u32 %v931, 4294901760
        %1145 = vmatmul.f32.gmra.mxu0 %v1144
        %v1146 = vpop.f32.mrf.mxu0
        %v1147 = vadd.f32 %v1006, %v1146
        %v1148 = vand.u32 %v932, 4294901760
        %1149 = vmatmul.f32.gmra.mxu0 %v1148
        %v1150 = vpop.f32.mrf.mxu0
        %v1151 = vadd.f32 %v1014, %v1150
        %v1152 = vand.u32 %v933, 4294901760
        %1153 = vmatmul.f32.gmra.mxu0 %v1152
        %v1154 = vpop.f32.mrf.mxu0
        %v1155 = vadd.f32 %v1022, %v1154
        %v1156 = vand.u32 %v934, 4294901760
        %1157 = vmatmul.f32.gmra.mxu0 %v1156
        %v1158 = vpop.f32.mrf.mxu0
        %v1159 = vadd.f32 %v1030, %v1158
        %1160 = vdwg.mxu0
        %v1161 = vand.u32 %v368, 4294901760
        %v1162 = vsub.f32 %v368, %v1161
        %1163 = vmatpush.msra.mxu0 %v1162
        %v1164 = vand.u32 %v367, 4294901760
        %v1165 = vsub.f32 %v367, %v1164
        %1166 = vmatpush.msra.mxu0 %v1165
        %v1167 = vand.u32 %v366, 4294901760
        %v1168 = vsub.f32 %v366, %v1167
        %1169 = vmatpush.msra.mxu0 %v1168
        %v1170 = vand.u32 %v365, 4294901760
        %v1171 = vsub.f32 %v365, %v1170
        %1172 = vmatpush.msra.mxu0 %v1171
        %v1173 = vand.u32 %v364, 4294901760
        %v1174 = vsub.f32 %v364, %v1173
        %1175 = vmatpush.msra.mxu0 %v1174
        %v1176 = vand.u32 %v363, 4294901760
        %v1177 = vsub.f32 %v363, %v1176
        %1178 = vmatpush.msra.mxu0 %v1177
        %v1179 = vand.u32 %v362, 4294901760
        %v1180 = vsub.f32 %v362, %v1179
        %1181 = vmatpush.msra.mxu0 %v1180
        %v1182 = vand.u32 %v361, 4294901760
        %v1183 = vsub.f32 %v361, %v1182
        %1184 = vmatpush.msra.mxu0 %v1183
        %v1185 = vand.u32 %v360, 4294901760
        %v1186 = vsub.f32 %v360, %v1185
        %1187 = vmatpush.msra.mxu0 %v1186
        %v1188 = vand.u32 %v359, 4294901760
        %v1189 = vsub.f32 %v359, %v1188
        %1190 = vmatpush.msra.mxu0 %v1189
        %v1191 = vand.u32 %v358, 4294901760
        %v1192 = vsub.f32 %v358, %v1191
        %1193 = vmatpush.msra.mxu0 %v1192
        %v1194 = vand.u32 %v357, 4294901760
        %v1195 = vsub.f32 %v357, %v1194
        %1196 = vmatpush.msra.mxu0 %v1195
        %v1197 = vand.u32 %v356, 4294901760
        %v1198 = vsub.f32 %v356, %v1197
        %1199 = vmatpush.msra.mxu0 %v1198
        %v1200 = vand.u32 %v355, 4294901760
        %v1201 = vsub.f32 %v355, %v1200
        %1202 = vmatpush.msra.mxu0 %v1201
        %v1203 = vand.u32 %v354, 4294901760
        %v1204 = vsub.f32 %v354, %v1203
        %1205 = vmatpush.msra.mxu0 %v1204
        %v1206 = vand.u32 %v353, 4294901760
        %v1207 = vsub.f32 %v353, %v1206
        %1208 = vmatpush.msra.mxu0 %v1207
        %v1209 = vand.u32 %v927, 4294901760
        %v1210 = vsub.f32 %v927, %v1209
        %1211 = vmatmul.f32.gmra.mxu0 %v1210
        %v1212 = vpop.f32.mrf.mxu0
        %v1213 = vadd.f32 %v1131, %v1212
        %v1214 = vand.u32 %v928, 4294901760
        %v1215 = vsub.f32 %v928, %v1214
        %1216 = vmatmul.f32.gmra.mxu0 %v1215
        %v1217 = vpop.f32.mrf.mxu0
        %v1218 = vadd.f32 %v1135, %v1217
        %v1219 = vand.u32 %v929, 4294901760
        %v1220 = vsub.f32 %v929, %v1219
        %1221 = vmatmul.f32.gmra.mxu0 %v1220
        %v1222 = vpop.f32.mrf.mxu0
        %v1223 = vadd.f32 %v1139, %v1222
        %v1224 = vand.u32 %v930, 4294901760
        %v1225 = vsub.f32 %v930, %v1224
        %1226 = vmatmul.f32.gmra.mxu0 %v1225
        %v1227 = vpop.f32.mrf.mxu0
        %v1228 = vadd.f32 %v1143, %v1227
        %v1229 = vand.u32 %v931, 4294901760
        %v1230 = vsub.f32 %v931, %v1229
        %1231 = vmatmul.f32.gmra.mxu0 %v1230
        %v1232 = vpop.f32.mrf.mxu0
        %v1233 = vadd.f32 %v1147, %v1232
        %v1234 = vand.u32 %v932, 4294901760
        %v1235 = vsub.f32 %v932, %v1234
        %1236 = vmatmul.f32.gmra.mxu0 %v1235
        %v1237 = vpop.f32.mrf.mxu0
        %v1238 = vadd.f32 %v1151, %v1237
        %v1239 = vand.u32 %v933, 4294901760
        %v1240 = vsub.f32 %v933, %v1239
        %1241 = vmatmul.f32.gmra.mxu0 %v1240
        %v1242 = vpop.f32.mrf.mxu0
        %v1243 = vadd.f32 %v1155, %v1242
        %v1244 = vand.u32 %v934, 4294901760
        %v1245 = vsub.f32 %v934, %v1244
        %1246 = vmatmul.f32.gmra.mxu0 %v1245
        %v1247 = vpop.f32.mrf.mxu0
        %v1248 = vadd.f32 %v1159, %v1247
        %1249 = vdwg.mxu0
        %v1250 = vand.u32 %v368, 4294901760
        %1251 = vmatpush.msra.mxu0 %v1250
        %v1252 = vand.u32 %v367, 4294901760
        %1253 = vmatpush.msra.mxu0 %v1252
        %v1254 = vand.u32 %v366, 4294901760
        %1255 = vmatpush.msra.mxu0 %v1254
        %v1256 = vand.u32 %v365, 4294901760
        %1257 = vmatpush.msra.mxu0 %v1256
        %v1258 = vand.u32 %v364, 4294901760
        %1259 = vmatpush.msra.mxu0 %v1258
        %v1260 = vand.u32 %v363, 4294901760
        %1261 = vmatpush.msra.mxu0 %v1260
        %v1262 = vand.u32 %v362, 4294901760
        %1263 = vmatpush.msra.mxu0 %v1262
        %v1264 = vand.u32 %v361, 4294901760
        %1265 = vmatpush.msra.mxu0 %v1264
        %v1266 = vand.u32 %v360, 4294901760
        %1267 = vmatpush.msra.mxu0 %v1266
        %v1268 = vand.u32 %v359, 4294901760
        %1269 = vmatpush.msra.mxu0 %v1268
        %v1270 = vand.u32 %v358, 4294901760
        %1271 = vmatpush.msra.mxu0 %v1270
        %v1272 = vand.u32 %v357, 4294901760
        %1273 = vmatpush.msra.mxu0 %v1272
        %v1274 = vand.u32 %v356, 4294901760
        %1275 = vmatpush.msra.mxu0 %v1274
        %v1276 = vand.u32 %v355, 4294901760
        %1277 = vmatpush.msra.mxu0 %v1276
        %v1278 = vand.u32 %v354, 4294901760
        %1279 = vmatpush.msra.mxu0 %v1278
        %v1280 = vand.u32 %v353, 4294901760
        %1281 = vmatpush.msra.mxu0 %v1280
        %v1282 = vand.u32 %v927, 4294901760
        %v1283 = vsub.f32 %v927, %v1282
        %v1284 = vand.u32 %v1283, 4294901760
        %1285 = vmatmul.f32.gmra.mxu0 %v1284
        %v1286 = vpop.f32.mrf.mxu0
        %v1287 = vadd.f32 %v1213, %v1286
        %v1288 = vand.u32 %v928, 4294901760
        %v1289 = vsub.f32 %v928, %v1288
        %v1290 = vand.u32 %v1289, 4294901760
        %1291 = vmatmul.f32.gmra.mxu0 %v1290
        %v1292 = vpop.f32.mrf.mxu0
        %v1293 = vadd.f32 %v1218, %v1292
        %v1294 = vand.u32 %v929, 4294901760
        %v1295 = vsub.f32 %v929, %v1294
        %v1296 = vand.u32 %v1295, 4294901760
        %1297 = vmatmul.f32.gmra.mxu0 %v1296
        %v1298 = vpop.f32.mrf.mxu0
        %v1299 = vadd.f32 %v1223, %v1298
        %v1300 = vand.u32 %v930, 4294901760
        %v1301 = vsub.f32 %v930, %v1300
        %v1302 = vand.u32 %v1301, 4294901760
        %1303 = vmatmul.f32.gmra.mxu0 %v1302
        %v1304 = vpop.f32.mrf.mxu0
        %v1305 = vadd.f32 %v1228, %v1304
        %v1306 = vand.u32 %v931, 4294901760
        %v1307 = vsub.f32 %v931, %v1306
        %v1308 = vand.u32 %v1307, 4294901760
        %1309 = vmatmul.f32.gmra.mxu0 %v1308
        %v1310 = vpop.f32.mrf.mxu0
        %v1311 = vadd.f32 %v1233, %v1310
        %v1312 = vand.u32 %v932, 4294901760
        %v1313 = vsub.f32 %v932, %v1312
        %v1314 = vand.u32 %v1313, 4294901760
        %1315 = vmatmul.f32.gmra.mxu0 %v1314
        %v1316 = vpop.f32.mrf.mxu0
        %v1317 = vadd.f32 %v1238, %v1316
        %v1318 = vand.u32 %v933, 4294901760
        %v1319 = vsub.f32 %v933, %v1318
        %v1320 = vand.u32 %v1319, 4294901760
        %1321 = vmatmul.f32.gmra.mxu0 %v1320
        %v1322 = vpop.f32.mrf.mxu0
        %v1323 = vadd.f32 %v1243, %v1322
        %v1324 = vand.u32 %v934, 4294901760
        %v1325 = vsub.f32 %v934, %v1324
        %v1326 = vand.u32 %v1325, 4294901760
        %1327 = vmatmul.f32.gmra.mxu0 %v1326
        %v1328 = vpop.f32.mrf.mxu0
        %v1329 = vadd.f32 %v1248, %v1328
        %1330 = vdwg.mxu0
        %v1331 = vand.u32 %v368, 4294901760
        %v1332 = vsub.f32 %v368, %v1331
        %v1333 = vand.u32 %v1332, 4294901760
        %1334 = vmatpush.msra.mxu0 %v1333
        %v1335 = vand.u32 %v367, 4294901760
        %v1336 = vsub.f32 %v367, %v1335
        %v1337 = vand.u32 %v1336, 4294901760
        %1338 = vmatpush.msra.mxu0 %v1337
        %v1339 = vand.u32 %v366, 4294901760
        %v1340 = vsub.f32 %v366, %v1339
        %v1341 = vand.u32 %v1340, 4294901760
        %1342 = vmatpush.msra.mxu0 %v1341
        %v1343 = vand.u32 %v365, 4294901760
        %v1344 = vsub.f32 %v365, %v1343
        %v1345 = vand.u32 %v1344, 4294901760
        %1346 = vmatpush.msra.mxu0 %v1345
        %v1347 = vand.u32 %v364, 4294901760
        %v1348 = vsub.f32 %v364, %v1347
        %v1349 = vand.u32 %v1348, 4294901760
        %1350 = vmatpush.msra.mxu0 %v1349
        %v1351 = vand.u32 %v363, 4294901760
        %v1352 = vsub.f32 %v363, %v1351
        %v1353 = vand.u32 %v1352, 4294901760
        %1354 = vmatpush.msra.mxu0 %v1353
        %v1355 = vand.u32 %v362, 4294901760
        %v1356 = vsub.f32 %v362, %v1355
        %v1357 = vand.u32 %v1356, 4294901760
        %1358 = vmatpush.msra.mxu0 %v1357
        %v1359 = vand.u32 %v361, 4294901760
        %v1360 = vsub.f32 %v361, %v1359
        %v1361 = vand.u32 %v1360, 4294901760
        %1362 = vmatpush.msra.mxu0 %v1361
        %v1363 = vand.u32 %v360, 4294901760
        %v1364 = vsub.f32 %v360, %v1363
        %v1365 = vand.u32 %v1364, 4294901760
        %1366 = vmatpush.msra.mxu0 %v1365
        %v1367 = vand.u32 %v359, 4294901760
        %v1368 = vsub.f32 %v359, %v1367
        %v1369 = vand.u32 %v1368, 4294901760
        %1370 = vmatpush.msra.mxu0 %v1369
        %v1371 = vand.u32 %v358, 4294901760
        %v1372 = vsub.f32 %v358, %v1371
        %v1373 = vand.u32 %v1372, 4294901760
        %1374 = vmatpush.msra.mxu0 %v1373
        %v1375 = vand.u32 %v357, 4294901760
        %v1376 = vsub.f32 %v357, %v1375
        %v1377 = vand.u32 %v1376, 4294901760
        %1378 = vmatpush.msra.mxu0 %v1377
        %v1379 = vand.u32 %v356, 4294901760
        %v1380 = vsub.f32 %v356, %v1379
        %v1381 = vand.u32 %v1380, 4294901760
        %1382 = vmatpush.msra.mxu0 %v1381
        %v1383 = vand.u32 %v355, 4294901760
        %v1384 = vsub.f32 %v355, %v1383
        %v1385 = vand.u32 %v1384, 4294901760
        %1386 = vmatpush.msra.mxu0 %v1385
        %v1387 = vand.u32 %v354, 4294901760
        %v1388 = vsub.f32 %v354, %v1387
        %v1389 = vand.u32 %v1388, 4294901760
        %1390 = vmatpush.msra.mxu0 %v1389
        %v1391 = vand.u32 %v353, 4294901760
        %v1392 = vsub.f32 %v353, %v1391
        %v1393 = vand.u32 %v1392, 4294901760
        %1394 = vmatpush.msra.mxu0 %v1393
        %v1395 = vand.u32 %v927, 4294901760
        %1396 = vmatmul.f32.gmra.mxu0 %v1395
        %v1397 = vpop.f32.mrf.mxu0
        %v1398 = vadd.f32 %v1287, %v1397
        %v1399 = vand.u32 %v928, 4294901760
        %1400 = vmatmul.f32.gmra.mxu0 %v1399
        %v1401 = vpop.f32.mrf.mxu0
        %v1402 = vadd.f32 %v1293, %v1401
        %v1403 = vand.u32 %v929, 4294901760
        %1404 = vmatmul.f32.gmra.mxu0 %v1403
        %v1405 = vpop.f32.mrf.mxu0
        %v1406 = vadd.f32 %v1299, %v1405
        %v1407 = vand.u32 %v930, 4294901760
        %1408 = vmatmul.f32.gmra.mxu0 %v1407
        %v1409 = vpop.f32.mrf.mxu0
        %v1410 = vadd.f32 %v1305, %v1409
        %v1411 = vand.u32 %v931, 4294901760
        %1412 = vmatmul.f32.gmra.mxu0 %v1411
        %v1413 = vpop.f32.mrf.mxu0
        %v1414 = vadd.f32 %v1311, %v1413
        %v1415 = vand.u32 %v932, 4294901760
        %1416 = vmatmul.f32.gmra.mxu0 %v1415
        %v1417 = vpop.f32.mrf.mxu0
        %v1418 = vadd.f32 %v1317, %v1417
        %v1419 = vand.u32 %v933, 4294901760
        %1420 = vmatmul.f32.gmra.mxu0 %v1419
        %v1421 = vpop.f32.mrf.mxu0
        %v1422 = vadd.f32 %v1323, %v1421
        %v1423 = vand.u32 %v934, 4294901760
        %1424 = vmatmul.f32.gmra.mxu0 %v1423
        %v1425 = vpop.f32.mrf.mxu0
        %v1426 = vadd.f32 %v1329, %v1425
        %1427 = vdwg.mxu0
        %v1428 = vand.u32 %v368, 4294901760
        %1429 = vmatpush.msra.mxu0 %v1428
        %v1430 = vand.u32 %v367, 4294901760
        %1431 = vmatpush.msra.mxu0 %v1430
        %v1432 = vand.u32 %v366, 4294901760
        %1433 = vmatpush.msra.mxu0 %v1432
        %v1434 = vand.u32 %v365, 4294901760
        %1435 = vmatpush.msra.mxu0 %v1434
        %v1436 = vand.u32 %v364, 4294901760
        %1437 = vmatpush.msra.mxu0 %v1436
        %v1438 = vand.u32 %v363, 4294901760
        %1439 = vmatpush.msra.mxu0 %v1438
        %v1440 = vand.u32 %v362, 4294901760
        %1441 = vmatpush.msra.mxu0 %v1440
        %v1442 = vand.u32 %v361, 4294901760
        %1443 = vmatpush.msra.mxu0 %v1442
        %v1444 = vand.u32 %v360, 4294901760
        %1445 = vmatpush.msra.mxu0 %v1444
        %v1446 = vand.u32 %v359, 4294901760
        %1447 = vmatpush.msra.mxu0 %v1446
        %v1448 = vand.u32 %v358, 4294901760
        %1449 = vmatpush.msra.mxu0 %v1448
        %v1450 = vand.u32 %v357, 4294901760
        %1451 = vmatpush.msra.mxu0 %v1450
        %v1452 = vand.u32 %v356, 4294901760
        %1453 = vmatpush.msra.mxu0 %v1452
        %v1454 = vand.u32 %v355, 4294901760
        %1455 = vmatpush.msra.mxu0 %v1454
        %v1456 = vand.u32 %v354, 4294901760
        %1457 = vmatpush.msra.mxu0 %v1456
        %v1458 = vand.u32 %v353, 4294901760
        %1459 = vmatpush.msra.mxu0 %v1458
        %v1460 = vand.u32 %v927, 4294901760
        %1461 = vmatmul.f32.gmra.mxu0 %v1460
        %v1462 = vpop.f32.mrf.mxu0
        %v1463 = vadd.f32 %v1398, %v1462
        %v1464 = vand.u32 %v928, 4294901760
        %1465 = vmatmul.f32.gmra.mxu0 %v1464
        %v1466 = vpop.f32.mrf.mxu0
        %v1467 = vadd.f32 %v1402, %v1466
        %v1468 = vand.u32 %v929, 4294901760
        %1469 = vmatmul.f32.gmra.mxu0 %v1468
        %v1470 = vpop.f32.mrf.mxu0
        %v1471 = vadd.f32 %v1406, %v1470
        %v1472 = vand.u32 %v930, 4294901760
        %1473 = vmatmul.f32.gmra.mxu0 %v1472
        %v1474 = vpop.f32.mrf.mxu0
        %v1475 = vadd.f32 %v1410, %v1474
        %v1476 = vand.u32 %v931, 4294901760
        %1477 = vmatmul.f32.gmra.mxu0 %v1476
        %v1478 = vpop.f32.mrf.mxu0
        %v1479 = vadd.f32 %v1414, %v1478
        %v1480 = vand.u32 %v932, 4294901760
        %1481 = vmatmul.f32.gmra.mxu0 %v1480
        %v1482 = vpop.f32.mrf.mxu0
        %v1483 = vadd.f32 %v1418, %v1482
        %v1484 = vand.u32 %v933, 4294901760
        %1485 = vmatmul.f32.gmra.mxu0 %v1484
        %v1486 = vpop.f32.mrf.mxu0
        %v1487 = vadd.f32 %v1422, %v1486
        %v1488 = vand.u32 %v934, 4294901760
        %1489 = vmatmul.f32.gmra.mxu0 %v1488
        %v1490 = vpop.f32.mrf.mxu0
        %v1491 = vadd.f32 %v1426, %v1490
        %1492 = vdwg.mxu0
        %v1493 = vmul.f32 %v897, 0.0625
        %v1494 = vmul.f32 %v901, 0.0625
        %v1495 = vmul.f32 %v905, 0.0625
        %v1496 = vmul.f32 %v909, 0.0625
        %v1497 = vmul.f32 %v913, 0.0625
        %v1498 = vmul.f32 %v917, 0.0625
        %v1499 = vmul.f32 %v921, 0.0625
        %v1500 = vmul.f32 %v925, 0.0625
        %v1501 = vmul.f32 %v1463, 0.0625
        %v1502 = vmul.f32 %v1467, 0.0625
        %v1503 = vmul.f32 %v1471, 0.0625
        %v1504 = vmul.f32 %v1475, 0.0625
        %v1505 = vmul.f32 %v1479, 0.0625
        %v1506 = vmul.f32 %v1483, 0.0625
        %v1507 = vmul.f32 %v1487, 0.0625
        %v1508 = vmul.f32 %v1491, 0.0625
        %v1509 = vmul.f32 %v1493, %v1493
        %v1510 = vmul.f32 %v1494, %v1494
        %v1511 = vmul.f32 %v1495, %v1495
        %v1512 = vmul.f32 %v1496, %v1496
        %v1513 = vmul.f32 %v1497, %v1497
        %v1514 = vmul.f32 %v1498, %v1498
        %v1515 = vmul.f32 %v1499, %v1499
        %v1516 = vmul.f32 %v1500, %v1500
        %v1517 = vsub.f32 %v1501, %v1509
        %v1518 = vsub.f32 %v1502, %v1510
        %v1519 = vsub.f32 %v1503, %v1511
        %v1520 = vsub.f32 %v1504, %v1512
        %v1521 = vsub.f32 %v1505, %v1513
        %v1522 = vsub.f32 %v1506, %v1514
        %v1523 = vsub.f32 %v1507, %v1515
        %v1524 = vsub.f32 %v1508, %v1516
        %v1525 = vmax.f32 %v1517, 0.0
        %v1526 = vmax.f32 %v1518, 0.0
        %v1527 = vmax.f32 %v1519, 0.0
        %v1528 = vmax.f32 %v1520, 0.0
        %v1529 = vmax.f32 %v1521, 0.0
        %v1530 = vmax.f32 %v1522, 0.0
        %v1531 = vmax.f32 %v1523, 0.0
        %v1532 = vmax.f32 %v1524, 0.0
        %v1533 = vadd.f32 %v1525, 1e-05
        %v1534 = vadd.f32 %v1526, 1e-05
        %v1535 = vadd.f32 %v1527, 1e-05
        %v1536 = vadd.f32 %v1528, 1e-05
        %v1537 = vadd.f32 %v1529, 1e-05
        %v1538 = vadd.f32 %v1530, 1e-05
        %v1539 = vadd.f32 %v1531, 1e-05
        %v1540 = vadd.f32 %v1532, 1e-05
        %v1541 = vrsqrt.pop %v1533
        %v1542 = vmul.f32 %v1541, %v1533
        %v1543 = vmul.f32 %v1542, %v1541
        %v1544 = vmul.f32 0.5, %v1543
        %v1545 = vsub.f32 1.5, %v1544
        %v1546 = vmul.f32 %v1541, %v1545
        %vm1547 = vweird.f32 %v1533
        %vm1548 = vweird.f32 %v1541
        %vm1549 = vmor %vm1547, %vm1548
        %v1550 = vsel %vm1549, %v1541, %v1546
        %v1551 = vrsqrt.pop %v1534
        %v1552 = vmul.f32 %v1551, %v1534
        %v1553 = vmul.f32 %v1552, %v1551
        %v1554 = vmul.f32 0.5, %v1553
        %v1555 = vsub.f32 1.5, %v1554
        %v1556 = vmul.f32 %v1551, %v1555
        %vm1557 = vweird.f32 %v1534
        %vm1558 = vweird.f32 %v1551
        %vm1559 = vmor %vm1557, %vm1558
        %v1560 = vsel %vm1559, %v1551, %v1556
        %v1561 = vrsqrt.pop %v1535
        %v1562 = vmul.f32 %v1561, %v1535
        %v1563 = vmul.f32 %v1562, %v1561
        %v1564 = vmul.f32 0.5, %v1563
        %v1565 = vsub.f32 1.5, %v1564
        %v1566 = vmul.f32 %v1561, %v1565
        %vm1567 = vweird.f32 %v1535
        %vm1568 = vweird.f32 %v1561
        %vm1569 = vmor %vm1567, %vm1568
        %v1570 = vsel %vm1569, %v1561, %v1566
        %v1571 = vrsqrt.pop %v1536
        %v1572 = vmul.f32 %v1571, %v1536
        %v1573 = vmul.f32 %v1572, %v1571
        %v1574 = vmul.f32 0.5, %v1573
        %v1575 = vsub.f32 1.5, %v1574
        %v1576 = vmul.f32 %v1571, %v1575
        %vm1577 = vweird.f32 %v1536
        %vm1578 = vweird.f32 %v1571
        %vm1579 = vmor %vm1577, %vm1578
        %v1580 = vsel %vm1579, %v1571, %v1576
        %v1581 = vrsqrt.pop %v1537
        %v1582 = vmul.f32 %v1581, %v1537
        %v1583 = vmul.f32 %v1582, %v1581
        %v1584 = vmul.f32 0.5, %v1583
        %v1585 = vsub.f32 1.5, %v1584
        %v1586 = vmul.f32 %v1581, %v1585
        %vm1587 = vweird.f32 %v1537
        %vm1588 = vweird.f32 %v1581
        %vm1589 = vmor %vm1587, %vm1588
        %v1590 = vsel %vm1589, %v1581, %v1586
        %v1591 = vrsqrt.pop %v1538
        %v1592 = vmul.f32 %v1591, %v1538
        %v1593 = vmul.f32 %v1592, %v1591
        %v1594 = vmul.f32 0.5, %v1593
        %v1595 = vsub.f32 1.5, %v1594
        %v1596 = vmul.f32 %v1591, %v1595
        %vm1597 = vweird.f32 %v1538
        %vm1598 = vweird.f32 %v1591
        %vm1599 = vmor %vm1597, %vm1598
        %v1600 = vsel %vm1599, %v1591, %v1596
        %v1601 = vrsqrt.pop %v1539
        %v1602 = vmul.f32 %v1601, %v1539
        %v1603 = vmul.f32 %v1602, %v1601
        %v1604 = vmul.f32 0.5, %v1603
        %v1605 = vsub.f32 1.5, %v1604
        %v1606 = vmul.f32 %v1601, %v1605
        %vm1607 = vweird.f32 %v1539
        %vm1608 = vweird.f32 %v1601
        %vm1609 = vmor %vm1607, %vm1608
        %v1610 = vsel %vm1609, %v1601, %v1606
        %v1611 = vrsqrt.pop %v1540
        %v1612 = vmul.f32 %v1611, %v1540
        %v1613 = vmul.f32 %v1612, %v1611
        %v1614 = vmul.f32 0.5, %v1613
        %v1615 = vsub.f32 1.5, %v1614
        %v1616 = vmul.f32 %v1611, %v1615
        %vm1617 = vweird.f32 %v1540
        %vm1618 = vweird.f32 %v1611
        %vm1619 = vmor %vm1617, %vm1618
        %v1620 = vsel %vm1619, %v1611, %v1616
        %v1621 = vld [vmem:[%s2] sm:$0xff]
        %vm1622 = vcmask 64512
        %v1624 = vsel %vm1622, %v1550, 0
        %v1627 = vsel %vm1622, %v1560, 0
        %v1630 = vsel %vm1622, %v1570, 0
        %v1633 = vsel %vm1622, %v1580, 0
        %v1636 = vsel %vm1622, %v1590, 0
        %v1639 = vsel %vm1622, %v1600, 0
        %v1642 = vsel %vm1622, %v1610, 0
        %v1645 = vsel %vm1622, %v1620, 0
        %1647 = vmatpush.msra.mxu0 0.0
        %1648 = vmatpush.msra.mxu0 0.0
        %1649 = vmatpush.msra.mxu0 0.0
        %1650 = vmatpush.msra.mxu0 0.0
        %1651 = vmatpush.msra.mxu0 0.0
        %1652 = vmatpush.msra.mxu0 0.0
        %1653 = vmatpush.msra.mxu0 0.0
        %1654 = vmatpush.msra.mxu0 0.0
        %1655 = vmatpush.msra.mxu0 0.0
        %1656 = vmatpush.msra.mxu0 0.0
        %1657 = vmatpush.msra.mxu0 0.0
        %1658 = vmatpush.msra.mxu0 0.0
        %1659 = vmatpush.msra.mxu0 0.0
        %1660 = vmatpush.msra.mxu0 0.0
        %1661 = vmatpush.msra.mxu0 0.0
        %v1662 = vand.u32 %v1621, 4294901760
        %1663 = vmatpush.msra.mxu0 %v1662
        %v1664 = vand.u32 %v1624, 4294901760
        %v1665 = vsub.f32 %v1624, %v1664
        %v1666 = vand.u32 %v1665, 4294901760
        %v1667 = vsub.f32 %v1665, %v1666
        %v1668 = vand.u32 %v1667, 4294901760
        %1669 = vmatmul.f32.gmra.mxu0 %v1668
        %v1670 = vpop.f32.mrf.mxu0
        %v1671 = vadd.f32 0.0, %v1670
        %v1672 = vand.u32 %v1627, 4294901760
        %v1673 = vsub.f32 %v1627, %v1672
        %v1674 = vand.u32 %v1673, 4294901760
        %v1675 = vsub.f32 %v1673, %v1674
        %v1676 = vand.u32 %v1675, 4294901760
        %1677 = vmatmul.f32.gmra.mxu0 %v1676
        %v1678 = vpop.f32.mrf.mxu0
        %v1679 = vadd.f32 0.0, %v1678
        %v1680 = vand.u32 %v1630, 4294901760
        %v1681 = vsub.f32 %v1630, %v1680
        %v1682 = vand.u32 %v1681, 4294901760
        %v1683 = vsub.f32 %v1681, %v1682
        %v1684 = vand.u32 %v1683, 4294901760
        %1685 = vmatmul.f32.gmra.mxu0 %v1684
        %v1686 = vpop.f32.mrf.mxu0
        %v1687 = vadd.f32 0.0, %v1686
        %v1688 = vand.u32 %v1633, 4294901760
        %v1689 = vsub.f32 %v1633, %v1688
        %v1690 = vand.u32 %v1689, 4294901760
        %v1691 = vsub.f32 %v1689, %v1690
        %v1692 = vand.u32 %v1691, 4294901760
        %1693 = vmatmul.f32.gmra.mxu0 %v1692
        %v1694 = vpop.f32.mrf.mxu0
        %v1695 = vadd.f32 0.0, %v1694
        %v1696 = vand.u32 %v1636, 4294901760
        %v1697 = vsub.f32 %v1636, %v1696
        %v1698 = vand.u32 %v1697, 4294901760
        %v1699 = vsub.f32 %v1697, %v1698
        %v1700 = vand.u32 %v1699, 4294901760
        %1701 = vmatmul.f32.gmra.mxu0 %v1700
        %v1702 = vpop.f32.mrf.mxu0
        %v1703 = vadd.f32 0.0, %v1702
        %v1704 = vand.u32 %v1639, 4294901760
        %v1705 = vsub.f32 %v1639, %v1704
        %v1706 = vand.u32 %v1705, 4294901760
        %v1707 = vsub.f32 %v1705, %v1706
        %v1708 = vand.u32 %v1707, 4294901760
        %1709 = vmatmul.f32.gmra.mxu0 %v1708
        %v1710 = vpop.f32.mrf.mxu0
        %v1711 = vadd.f32 0.0, %v1710
        %v1712 = vand.u32 %v1642, 4294901760
        %v1713 = vsub.f32 %v1642, %v1712
        %v1714 = vand.u32 %v1713, 4294901760
        %v1715 = vsub.f32 %v1713, %v1714
        %v1716 = vand.u32 %v1715, 4294901760
        %1717 = vmatmul.f32.gmra.mxu0 %v1716
        %v1718 = vpop.f32.mrf.mxu0
        %v1719 = vadd.f32 0.0, %v1718
        %v1720 = vand.u32 %v1645, 4294901760
        %v1721 = vsub.f32 %v1645, %v1720
        %v1722 = vand.u32 %v1721, 4294901760
        %v1723 = vsub.f32 %v1721, %v1722
        %v1724 = vand.u32 %v1723, 4294901760
        %1725 = vmatmul.f32.gmra.mxu0 %v1724
        %v1726 = vpop.f32.mrf.mxu0
        %v1727 = vadd.f32 0.0, %v1726
        %1728 = vdwg.mxu0
        %1729 = vmatpush.msra.mxu0 0.0
        %1730 = vmatpush.msra.mxu0 0.0
        %1731 = vmatpush.msra.mxu0 0.0
        %1732 = vmatpush.msra.mxu0 0.0
        %1733 = vmatpush.msra.mxu0 0.0
        %1734 = vmatpush.msra.mxu0 0.0
        %1735 = vmatpush.msra.mxu0 0.0
        %1736 = vmatpush.msra.mxu0 0.0
        %1737 = vmatpush.msra.mxu0 0.0
        %1738 = vmatpush.msra.mxu0 0.0
        %1739 = vmatpush.msra.mxu0 0.0
        %1740 = vmatpush.msra.mxu0 0.0
        %1741 = vmatpush.msra.mxu0 0.0
        %1742 = vmatpush.msra.mxu0 0.0
        %1743 = vmatpush.msra.mxu0 0.0
        %v1744 = vand.u32 %v1621, 4294901760
        %v1745 = vsub.f32 %v1621, %v1744
        %v1746 = vand.u32 %v1745, 4294901760
        %v1747 = vsub.f32 %v1745, %v1746
        %v1748 = vand.u32 %v1747, 4294901760
        %1749 = vmatpush.msra.mxu0 %v1748
        %v1750 = vand.u32 %v1624, 4294901760
        %1751 = vmatmul.f32.gmra.mxu0 %v1750
        %v1752 = vpop.f32.mrf.mxu0
        %v1753 = vadd.f32 %v1671, %v1752
        %v1754 = vand.u32 %v1627, 4294901760
        %1755 = vmatmul.f32.gmra.mxu0 %v1754
        %v1756 = vpop.f32.mrf.mxu0
        %v1757 = vadd.f32 %v1679, %v1756
        %v1758 = vand.u32 %v1630, 4294901760
        %1759 = vmatmul.f32.gmra.mxu0 %v1758
        %v1760 = vpop.f32.mrf.mxu0
        %v1761 = vadd.f32 %v1687, %v1760
        %v1762 = vand.u32 %v1633, 4294901760
        %1763 = vmatmul.f32.gmra.mxu0 %v1762
        %v1764 = vpop.f32.mrf.mxu0
        %v1765 = vadd.f32 %v1695, %v1764
        %v1766 = vand.u32 %v1636, 4294901760
        %1767 = vmatmul.f32.gmra.mxu0 %v1766
        %v1768 = vpop.f32.mrf.mxu0
        %v1769 = vadd.f32 %v1703, %v1768
        %v1770 = vand.u32 %v1639, 4294901760
        %1771 = vmatmul.f32.gmra.mxu0 %v1770
        %v1772 = vpop.f32.mrf.mxu0
        %v1773 = vadd.f32 %v1711, %v1772
        %v1774 = vand.u32 %v1642, 4294901760
        %1775 = vmatmul.f32.gmra.mxu0 %v1774
        %v1776 = vpop.f32.mrf.mxu0
        %v1777 = vadd.f32 %v1719, %v1776
        %v1778 = vand.u32 %v1645, 4294901760
        %1779 = vmatmul.f32.gmra.mxu0 %v1778
        %v1780 = vpop.f32.mrf.mxu0
        %v1781 = vadd.f32 %v1727, %v1780
        %1782 = vdwg.mxu0
        %1783 = vmatpush.msra.mxu0 0.0
        %1784 = vmatpush.msra.mxu0 0.0
        %1785 = vmatpush.msra.mxu0 0.0
        %1786 = vmatpush.msra.mxu0 0.0
        %1787 = vmatpush.msra.mxu0 0.0
        %1788 = vmatpush.msra.mxu0 0.0
        %1789 = vmatpush.msra.mxu0 0.0
        %1790 = vmatpush.msra.mxu0 0.0
        %1791 = vmatpush.msra.mxu0 0.0
        %1792 = vmatpush.msra.mxu0 0.0
        %1793 = vmatpush.msra.mxu0 0.0
        %1794 = vmatpush.msra.mxu0 0.0
        %1795 = vmatpush.msra.mxu0 0.0
        %1796 = vmatpush.msra.mxu0 0.0
        %1797 = vmatpush.msra.mxu0 0.0
        %v1798 = vand.u32 %v1621, 4294901760
        %v1799 = vsub.f32 %v1621, %v1798
        %1800 = vmatpush.msra.mxu0 %v1799
        %v1801 = vand.u32 %v1624, 4294901760
        %v1802 = vsub.f32 %v1624, %v1801
        %1803 = vmatmul.f32.gmra.mxu0 %v1802
        %v1804 = vpop.f32.mrf.mxu0
        %v1805 = vadd.f32 %v1753, %v1804
        %v1806 = vand.u32 %v1627, 4294901760
        %v1807 = vsub.f32 %v1627, %v1806
        %1808 = vmatmul.f32.gmra.mxu0 %v1807
        %v1809 = vpop.f32.mrf.mxu0
        %v1810 = vadd.f32 %v1757, %v1809
        %v1811 = vand.u32 %v1630, 4294901760
        %v1812 = vsub.f32 %v1630, %v1811
        %1813 = vmatmul.f32.gmra.mxu0 %v1812
        %v1814 = vpop.f32.mrf.mxu0
        %v1815 = vadd.f32 %v1761, %v1814
        %v1816 = vand.u32 %v1633, 4294901760
        %v1817 = vsub.f32 %v1633, %v1816
        %1818 = vmatmul.f32.gmra.mxu0 %v1817
        %v1819 = vpop.f32.mrf.mxu0
        %v1820 = vadd.f32 %v1765, %v1819
        %v1821 = vand.u32 %v1636, 4294901760
        %v1822 = vsub.f32 %v1636, %v1821
        %1823 = vmatmul.f32.gmra.mxu0 %v1822
        %v1824 = vpop.f32.mrf.mxu0
        %v1825 = vadd.f32 %v1769, %v1824
        %v1826 = vand.u32 %v1639, 4294901760
        %v1827 = vsub.f32 %v1639, %v1826
        %1828 = vmatmul.f32.gmra.mxu0 %v1827
        %v1829 = vpop.f32.mrf.mxu0
        %v1830 = vadd.f32 %v1773, %v1829
        %v1831 = vand.u32 %v1642, 4294901760
        %v1832 = vsub.f32 %v1642, %v1831
        %1833 = vmatmul.f32.gmra.mxu0 %v1832
        %v1834 = vpop.f32.mrf.mxu0
        %v1835 = vadd.f32 %v1777, %v1834
        %v1836 = vand.u32 %v1645, 4294901760
        %v1837 = vsub.f32 %v1645, %v1836
        %1838 = vmatmul.f32.gmra.mxu0 %v1837
        %v1839 = vpop.f32.mrf.mxu0
        %v1840 = vadd.f32 %v1781, %v1839
        %1841 = vdwg.mxu0
        %1842 = vmatpush.msra.mxu0 0.0
        %1843 = vmatpush.msra.mxu0 0.0
        %1844 = vmatpush.msra.mxu0 0.0
        %1845 = vmatpush.msra.mxu0 0.0
        %1846 = vmatpush.msra.mxu0 0.0
        %1847 = vmatpush.msra.mxu0 0.0
        %1848 = vmatpush.msra.mxu0 0.0
        %1849 = vmatpush.msra.mxu0 0.0
        %1850 = vmatpush.msra.mxu0 0.0
        %1851 = vmatpush.msra.mxu0 0.0
        %1852 = vmatpush.msra.mxu0 0.0
        %1853 = vmatpush.msra.mxu0 0.0
        %1854 = vmatpush.msra.mxu0 0.0
        %1855 = vmatpush.msra.mxu0 0.0
        %1856 = vmatpush.msra.mxu0 0.0
        %v1857 = vand.u32 %v1621, 4294901760
        %1858 = vmatpush.msra.mxu0 %v1857
        %v1859 = vand.u32 %v1624, 4294901760
        %v1860 = vsub.f32 %v1624, %v1859
        %v1861 = vand.u32 %v1860, 4294901760
        %1862 = vmatmul.f32.gmra.mxu0 %v1861
        %v1863 = vpop.f32.mrf.mxu0
        %v1864 = vadd.f32 %v1805, %v1863
        %v1865 = vand.u32 %v1627, 4294901760
        %v1866 = vsub.f32 %v1627, %v1865
        %v1867 = vand.u32 %v1866, 4294901760
        %1868 = vmatmul.f32.gmra.mxu0 %v1867
        %v1869 = vpop.f32.mrf.mxu0
        %v1870 = vadd.f32 %v1810, %v1869
        %v1871 = vand.u32 %v1630, 4294901760
        %v1872 = vsub.f32 %v1630, %v1871
        %v1873 = vand.u32 %v1872, 4294901760
        %1874 = vmatmul.f32.gmra.mxu0 %v1873
        %v1875 = vpop.f32.mrf.mxu0
        %v1876 = vadd.f32 %v1815, %v1875
        %v1877 = vand.u32 %v1633, 4294901760
        %v1878 = vsub.f32 %v1633, %v1877
        %v1879 = vand.u32 %v1878, 4294901760
        %1880 = vmatmul.f32.gmra.mxu0 %v1879
        %v1881 = vpop.f32.mrf.mxu0
        %v1882 = vadd.f32 %v1820, %v1881
        %v1883 = vand.u32 %v1636, 4294901760
        %v1884 = vsub.f32 %v1636, %v1883
        %v1885 = vand.u32 %v1884, 4294901760
        %1886 = vmatmul.f32.gmra.mxu0 %v1885
        %v1887 = vpop.f32.mrf.mxu0
        %v1888 = vadd.f32 %v1825, %v1887
        %v1889 = vand.u32 %v1639, 4294901760
        %v1890 = vsub.f32 %v1639, %v1889
        %v1891 = vand.u32 %v1890, 4294901760
        %1892 = vmatmul.f32.gmra.mxu0 %v1891
        %v1893 = vpop.f32.mrf.mxu0
        %v1894 = vadd.f32 %v1830, %v1893
        %v1895 = vand.u32 %v1642, 4294901760
        %v1896 = vsub.f32 %v1642, %v1895
        %v1897 = vand.u32 %v1896, 4294901760
        %1898 = vmatmul.f32.gmra.mxu0 %v1897
        %v1899 = vpop.f32.mrf.mxu0
        %v1900 = vadd.f32 %v1835, %v1899
        %v1901 = vand.u32 %v1645, 4294901760
        %v1902 = vsub.f32 %v1645, %v1901
        %v1903 = vand.u32 %v1902, 4294901760
        %1904 = vmatmul.f32.gmra.mxu0 %v1903
        %v1905 = vpop.f32.mrf.mxu0
        %v1906 = vadd.f32 %v1840, %v1905
        %1907 = vdwg.mxu0
        %1908 = vmatpush.msra.mxu0 0.0
        %1909 = vmatpush.msra.mxu0 0.0
        %1910 = vmatpush.msra.mxu0 0.0
        %1911 = vmatpush.msra.mxu0 0.0
        %1912 = vmatpush.msra.mxu0 0.0
        %1913 = vmatpush.msra.mxu0 0.0
        %1914 = vmatpush.msra.mxu0 0.0
        %1915 = vmatpush.msra.mxu0 0.0
        %1916 = vmatpush.msra.mxu0 0.0
        %1917 = vmatpush.msra.mxu0 0.0
        %1918 = vmatpush.msra.mxu0 0.0
        %1919 = vmatpush.msra.mxu0 0.0
        %1920 = vmatpush.msra.mxu0 0.0
        %1921 = vmatpush.msra.mxu0 0.0
        %1922 = vmatpush.msra.mxu0 0.0
        %v1923 = vand.u32 %v1621, 4294901760
        %v1924 = vsub.f32 %v1621, %v1923
        %v1925 = vand.u32 %v1924, 4294901760
        %1926 = vmatpush.msra.mxu0 %v1925
        %v1927 = vand.u32 %v1624, 4294901760
        %1928 = vmatmul.f32.gmra.mxu0 %v1927
        %v1929 = vpop.f32.mrf.mxu0
        %v1930 = vadd.f32 %v1864, %v1929
        %v1931 = vand.u32 %v1627, 4294901760
        %1932 = vmatmul.f32.gmra.mxu0 %v1931
        %v1933 = vpop.f32.mrf.mxu0
        %v1934 = vadd.f32 %v1870, %v1933
        %v1935 = vand.u32 %v1630, 4294901760
        %1936 = vmatmul.f32.gmra.mxu0 %v1935
        %v1937 = vpop.f32.mrf.mxu0
        %v1938 = vadd.f32 %v1876, %v1937
        %v1939 = vand.u32 %v1633, 4294901760
        %1940 = vmatmul.f32.gmra.mxu0 %v1939
        %v1941 = vpop.f32.mrf.mxu0
        %v1942 = vadd.f32 %v1882, %v1941
        %v1943 = vand.u32 %v1636, 4294901760
        %1944 = vmatmul.f32.gmra.mxu0 %v1943
        %v1945 = vpop.f32.mrf.mxu0
        %v1946 = vadd.f32 %v1888, %v1945
        %v1947 = vand.u32 %v1639, 4294901760
        %1948 = vmatmul.f32.gmra.mxu0 %v1947
        %v1949 = vpop.f32.mrf.mxu0
        %v1950 = vadd.f32 %v1894, %v1949
        %v1951 = vand.u32 %v1642, 4294901760
        %1952 = vmatmul.f32.gmra.mxu0 %v1951
        %v1953 = vpop.f32.mrf.mxu0
        %v1954 = vadd.f32 %v1900, %v1953
        %v1955 = vand.u32 %v1645, 4294901760
        %1956 = vmatmul.f32.gmra.mxu0 %v1955
        %v1957 = vpop.f32.mrf.mxu0
        %v1958 = vadd.f32 %v1906, %v1957
        %1959 = vdwg.mxu0
        %1960 = vmatpush.msra.mxu0 0.0
        %1961 = vmatpush.msra.mxu0 0.0
        %1962 = vmatpush.msra.mxu0 0.0
        %1963 = vmatpush.msra.mxu0 0.0
        %1964 = vmatpush.msra.mxu0 0.0
        %1965 = vmatpush.msra.mxu0 0.0
        %1966 = vmatpush.msra.mxu0 0.0
        %1967 = vmatpush.msra.mxu0 0.0
        %1968 = vmatpush.msra.mxu0 0.0
        %1969 = vmatpush.msra.mxu0 0.0
        %1970 = vmatpush.msra.mxu0 0.0
        %1971 = vmatpush.msra.mxu0 0.0
        %1972 = vmatpush.msra.mxu0 0.0
        %1973 = vmatpush.msra.mxu0 0.0
        %1974 = vmatpush.msra.mxu0 0.0
        %v1975 = vand.u32 %v1621, 4294901760
        %1976 = vmatpush.msra.mxu0 %v1975
        %v1977 = vand.u32 %v1624, 4294901760
        %1978 = vmatmul.f32.gmra.mxu0 %v1977
        %v1979 = vpop.f32.mrf.mxu0
        %v1980 = vadd.f32 %v1930, %v1979
        %v1981 = vand.u32 %v1627, 4294901760
        %1982 = vmatmul.f32.gmra.mxu0 %v1981
        %v1983 = vpop.f32.mrf.mxu0
        %v1984 = vadd.f32 %v1934, %v1983
        %v1985 = vand.u32 %v1630, 4294901760
        %1986 = vmatmul.f32.gmra.mxu0 %v1985
        %v1987 = vpop.f32.mrf.mxu0
        %v1988 = vadd.f32 %v1938, %v1987
        %v1989 = vand.u32 %v1633, 4294901760
        %1990 = vmatmul.f32.gmra.mxu0 %v1989
        %v1991 = vpop.f32.mrf.mxu0
        %v1992 = vadd.f32 %v1942, %v1991
        %v1993 = vand.u32 %v1636, 4294901760
        %1994 = vmatmul.f32.gmra.mxu0 %v1993
        %v1995 = vpop.f32.mrf.mxu0
        %v1996 = vadd.f32 %v1946, %v1995
        %v1997 = vand.u32 %v1639, 4294901760
        %1998 = vmatmul.f32.gmra.mxu0 %v1997
        %v1999 = vpop.f32.mrf.mxu0
        %v2000 = vadd.f32 %v1950, %v1999
        %v2001 = vand.u32 %v1642, 4294901760
        %2002 = vmatmul.f32.gmra.mxu0 %v2001
        %v2003 = vpop.f32.mrf.mxu0
        %v2004 = vadd.f32 %v1954, %v2003
        %v2005 = vand.u32 %v1645, 4294901760
        %2006 = vmatmul.f32.gmra.mxu0 %v2005
        %v2007 = vpop.f32.mrf.mxu0
        %v2008 = vadd.f32 %v1958, %v2007
        %2009 = vdwg.mxu0
        %v2010 = vmul.f32 %v1493, %v1550
        %v2011 = vmul.f32 %v1494, %v1560
        %v2012 = vmul.f32 %v1495, %v1570
        %v2013 = vmul.f32 %v1496, %v1580
        %v2014 = vmul.f32 %v1497, %v1590
        %v2015 = vmul.f32 %v1498, %v1600
        %v2016 = vmul.f32 %v1499, %v1610
        %v2017 = vmul.f32 %v1500, %v1620
        %v2019 = vsel %vm1622, %v2010, 0
        %v2022 = vsel %vm1622, %v2011, 0
        %v2025 = vsel %vm1622, %v2012, 0
        %v2028 = vsel %vm1622, %v2013, 0
        %v2031 = vsel %vm1622, %v2014, 0
        %v2034 = vsel %vm1622, %v2015, 0
        %v2037 = vsel %vm1622, %v2016, 0
        %v2040 = vsel %vm1622, %v2017, 0
        %2042 = vmatpush.msra.mxu0 0.0
        %2043 = vmatpush.msra.mxu0 0.0
        %2044 = vmatpush.msra.mxu0 0.0
        %2045 = vmatpush.msra.mxu0 0.0
        %2046 = vmatpush.msra.mxu0 0.0
        %2047 = vmatpush.msra.mxu0 0.0
        %2048 = vmatpush.msra.mxu0 0.0
        %2049 = vmatpush.msra.mxu0 0.0
        %2050 = vmatpush.msra.mxu0 0.0
        %2051 = vmatpush.msra.mxu0 0.0
        %2052 = vmatpush.msra.mxu0 0.0
        %2053 = vmatpush.msra.mxu0 0.0
        %2054 = vmatpush.msra.mxu0 0.0
        %2055 = vmatpush.msra.mxu0 0.0
        %2056 = vmatpush.msra.mxu0 0.0
        %v2057 = vand.u32 %v1621, 4294901760
        %2058 = vmatpush.msra.mxu0 %v2057
        %v2059 = vand.u32 %v2019, 4294901760
        %v2060 = vsub.f32 %v2019, %v2059
        %v2061 = vand.u32 %v2060, 4294901760
        %v2062 = vsub.f32 %v2060, %v2061
        %v2063 = vand.u32 %v2062, 4294901760
        %2064 = vmatmul.f32.gmra.mxu0 %v2063
        %v2065 = vpop.f32.mrf.mxu0
        %v2066 = vadd.f32 0.0, %v2065
        %v2067 = vand.u32 %v2022, 4294901760
        %v2068 = vsub.f32 %v2022, %v2067
        %v2069 = vand.u32 %v2068, 4294901760
        %v2070 = vsub.f32 %v2068, %v2069
        %v2071 = vand.u32 %v2070, 4294901760
        %2072 = vmatmul.f32.gmra.mxu0 %v2071
        %v2073 = vpop.f32.mrf.mxu0
        %v2074 = vadd.f32 0.0, %v2073
        %v2075 = vand.u32 %v2025, 4294901760
        %v2076 = vsub.f32 %v2025, %v2075
        %v2077 = vand.u32 %v2076, 4294901760
        %v2078 = vsub.f32 %v2076, %v2077
        %v2079 = vand.u32 %v2078, 4294901760
        %2080 = vmatmul.f32.gmra.mxu0 %v2079
        %v2081 = vpop.f32.mrf.mxu0
        %v2082 = vadd.f32 0.0, %v2081
        %v2083 = vand.u32 %v2028, 4294901760
        %v2084 = vsub.f32 %v2028, %v2083
        %v2085 = vand.u32 %v2084, 4294901760
        %v2086 = vsub.f32 %v2084, %v2085
        %v2087 = vand.u32 %v2086, 4294901760
        %2088 = vmatmul.f32.gmra.mxu0 %v2087
        %v2089 = vpop.f32.mrf.mxu0
        %v2090 = vadd.f32 0.0, %v2089
        %v2091 = vand.u32 %v2031, 4294901760
        %v2092 = vsub.f32 %v2031, %v2091
        %v2093 = vand.u32 %v2092, 4294901760
        %v2094 = vsub.f32 %v2092, %v2093
        %v2095 = vand.u32 %v2094, 4294901760
        %2096 = vmatmul.f32.gmra.mxu0 %v2095
        %v2097 = vpop.f32.mrf.mxu0
        %v2098 = vadd.f32 0.0, %v2097
        %v2099 = vand.u32 %v2034, 4294901760
        %v2100 = vsub.f32 %v2034, %v2099
        %v2101 = vand.u32 %v2100, 4294901760
        %v2102 = vsub.f32 %v2100, %v2101
        %v2103 = vand.u32 %v2102, 4294901760
        %2104 = vmatmul.f32.gmra.mxu0 %v2103
        %v2105 = vpop.f32.mrf.mxu0
        %v2106 = vadd.f32 0.0, %v2105
        %v2107 = vand.u32 %v2037, 4294901760
        %v2108 = vsub.f32 %v2037, %v2107
        %v2109 = vand.u32 %v2108, 4294901760
        %v2110 = vsub.f32 %v2108, %v2109
        %v2111 = vand.u32 %v2110, 4294901760
        %2112 = vmatmul.f32.gmra.mxu0 %v2111
        %v2113 = vpop.f32.mrf.mxu0
        %v2114 = vadd.f32 0.0, %v2113
        %v2115 = vand.u32 %v2040, 4294901760
        %v2116 = vsub.f32 %v2040, %v2115
        %v2117 = vand.u32 %v2116, 4294901760
        %v2118 = vsub.f32 %v2116, %v2117
        %v2119 = vand.u32 %v2118, 4294901760
        %2120 = vmatmul.f32.gmra.mxu0 %v2119
        %v2121 = vpop.f32.mrf.mxu0
        %v2122 = vadd.f32 0.0, %v2121
        %2123 = vdwg.mxu0
        %2124 = vmatpush.msra.mxu0 0.0
        %2125 = vmatpush.msra.mxu0 0.0
        %2126 = vmatpush.msra.mxu0 0.0
        %2127 = vmatpush.msra.mxu0 0.0
        %2128 = vmatpush.msra.mxu0 0.0
        %2129 = vmatpush.msra.mxu0 0.0
        %2130 = vmatpush.msra.mxu0 0.0
        %2131 = vmatpush.msra.mxu0 0.0
        %2132 = vmatpush.msra.mxu0 0.0
        %2133 = vmatpush.msra.mxu0 0.0
        %2134 = vmatpush.msra.mxu0 0.0
        %2135 = vmatpush.msra.mxu0 0.0
        %2136 = vmatpush.msra.mxu0 0.0
        %2137 = vmatpush.msra.mxu0 0.0
        %2138 = vmatpush.msra.mxu0 0.0
        %v2139 = vand.u32 %v1621, 4294901760
        %v2140 = vsub.f32 %v1621, %v2139
        %v2141 = vand.u32 %v2140, 4294901760
        %v2142 = vsub.f32 %v2140, %v2141
        %v2143 = vand.u32 %v2142, 4294901760
        %2144 = vmatpush.msra.mxu0 %v2143
        %v2145 = vand.u32 %v2019, 4294901760
        %2146 = vmatmul.f32.gmra.mxu0 %v2145
        %v2147 = vpop.f32.mrf.mxu0
        %v2148 = vadd.f32 %v2066, %v2147
        %v2149 = vand.u32 %v2022, 4294901760
        %2150 = vmatmul.f32.gmra.mxu0 %v2149
        %v2151 = vpop.f32.mrf.mxu0
        %v2152 = vadd.f32 %v2074, %v2151
        %v2153 = vand.u32 %v2025, 4294901760
        %2154 = vmatmul.f32.gmra.mxu0 %v2153
        %v2155 = vpop.f32.mrf.mxu0
        %v2156 = vadd.f32 %v2082, %v2155
        %v2157 = vand.u32 %v2028, 4294901760
        %2158 = vmatmul.f32.gmra.mxu0 %v2157
        %v2159 = vpop.f32.mrf.mxu0
        %v2160 = vadd.f32 %v2090, %v2159
        %v2161 = vand.u32 %v2031, 4294901760
        %2162 = vmatmul.f32.gmra.mxu0 %v2161
        %v2163 = vpop.f32.mrf.mxu0
        %v2164 = vadd.f32 %v2098, %v2163
        %v2165 = vand.u32 %v2034, 4294901760
        %2166 = vmatmul.f32.gmra.mxu0 %v2165
        %v2167 = vpop.f32.mrf.mxu0
        %v2168 = vadd.f32 %v2106, %v2167
        %v2169 = vand.u32 %v2037, 4294901760
        %2170 = vmatmul.f32.gmra.mxu0 %v2169
        %v2171 = vpop.f32.mrf.mxu0
        %v2172 = vadd.f32 %v2114, %v2171
        %v2173 = vand.u32 %v2040, 4294901760
        %2174 = vmatmul.f32.gmra.mxu0 %v2173
        %v2175 = vpop.f32.mrf.mxu0
        %v2176 = vadd.f32 %v2122, %v2175
        %2177 = vdwg.mxu0
        %2178 = vmatpush.msra.mxu0 0.0
        %2179 = vmatpush.msra.mxu0 0.0
        %2180 = vmatpush.msra.mxu0 0.0
        %2181 = vmatpush.msra.mxu0 0.0
        %2182 = vmatpush.msra.mxu0 0.0
        %2183 = vmatpush.msra.mxu0 0.0
        %2184 = vmatpush.msra.mxu0 0.0
        %2185 = vmatpush.msra.mxu0 0.0
        %2186 = vmatpush.msra.mxu0 0.0
        %2187 = vmatpush.msra.mxu0 0.0
        %2188 = vmatpush.msra.mxu0 0.0
        %2189 = vmatpush.msra.mxu0 0.0
        %2190 = vmatpush.msra.mxu0 0.0
        %2191 = vmatpush.msra.mxu0 0.0
        %2192 = vmatpush.msra.mxu0 0.0
        %v2193 = vand.u32 %v1621, 4294901760
        %v2194 = vsub.f32 %v1621, %v2193
        %2195 = vmatpush.msra.mxu0 %v2194
        %v2196 = vand.u32 %v2019, 4294901760
        %v2197 = vsub.f32 %v2019, %v2196
        %2198 = vmatmul.f32.gmra.mxu0 %v2197
        %v2199 = vpop.f32.mrf.mxu0
        %v2200 = vadd.f32 %v2148, %v2199
        %v2201 = vand.u32 %v2022, 4294901760
        %v2202 = vsub.f32 %v2022, %v2201
        %2203 = vmatmul.f32.gmra.mxu0 %v2202
        %v2204 = vpop.f32.mrf.mxu0
        %v2205 = vadd.f32 %v2152, %v2204
        %v2206 = vand.u32 %v2025, 4294901760
        %v2207 = vsub.f32 %v2025, %v2206
        %2208 = vmatmul.f32.gmra.mxu0 %v2207
        %v2209 = vpop.f32.mrf.mxu0
        %v2210 = vadd.f32 %v2156, %v2209
        %v2211 = vand.u32 %v2028, 4294901760
        %v2212 = vsub.f32 %v2028, %v2211
        %2213 = vmatmul.f32.gmra.mxu0 %v2212
        %v2214 = vpop.f32.mrf.mxu0
        %v2215 = vadd.f32 %v2160, %v2214
        %v2216 = vand.u32 %v2031, 4294901760
        %v2217 = vsub.f32 %v2031, %v2216
        %2218 = vmatmul.f32.gmra.mxu0 %v2217
        %v2219 = vpop.f32.mrf.mxu0
        %v2220 = vadd.f32 %v2164, %v2219
        %v2221 = vand.u32 %v2034, 4294901760
        %v2222 = vsub.f32 %v2034, %v2221
        %2223 = vmatmul.f32.gmra.mxu0 %v2222
        %v2224 = vpop.f32.mrf.mxu0
        %v2225 = vadd.f32 %v2168, %v2224
        %v2226 = vand.u32 %v2037, 4294901760
        %v2227 = vsub.f32 %v2037, %v2226
        %2228 = vmatmul.f32.gmra.mxu0 %v2227
        %v2229 = vpop.f32.mrf.mxu0
        %v2230 = vadd.f32 %v2172, %v2229
        %v2231 = vand.u32 %v2040, 4294901760
        %v2232 = vsub.f32 %v2040, %v2231
        %2233 = vmatmul.f32.gmra.mxu0 %v2232
        %v2234 = vpop.f32.mrf.mxu0
        %v2235 = vadd.f32 %v2176, %v2234
        %2236 = vdwg.mxu0
        %2237 = vmatpush.msra.mxu0 0.0
        %2238 = vmatpush.msra.mxu0 0.0
        %2239 = vmatpush.msra.mxu0 0.0
        %2240 = vmatpush.msra.mxu0 0.0
        %2241 = vmatpush.msra.mxu0 0.0
        %2242 = vmatpush.msra.mxu0 0.0
        %2243 = vmatpush.msra.mxu0 0.0
        %2244 = vmatpush.msra.mxu0 0.0
        %2245 = vmatpush.msra.mxu0 0.0
        %2246 = vmatpush.msra.mxu0 0.0
        %2247 = vmatpush.msra.mxu0 0.0
        %2248 = vmatpush.msra.mxu0 0.0
        %2249 = vmatpush.msra.mxu0 0.0
        %2250 = vmatpush.msra.mxu0 0.0
        %2251 = vmatpush.msra.mxu0 0.0
        %v2252 = vand.u32 %v1621, 4294901760
        %2253 = vmatpush.msra.mxu0 %v2252
        %v2254 = vand.u32 %v2019, 4294901760
        %v2255 = vsub.f32 %v2019, %v2254
        %v2256 = vand.u32 %v2255, 4294901760
        %2257 = vmatmul.f32.gmra.mxu0 %v2256
        %v2258 = vpop.f32.mrf.mxu0
        %v2259 = vadd.f32 %v2200, %v2258
        %v2260 = vand.u32 %v2022, 4294901760
        %v2261 = vsub.f32 %v2022, %v2260
        %v2262 = vand.u32 %v2261, 4294901760
        %2263 = vmatmul.f32.gmra.mxu0 %v2262
        %v2264 = vpop.f32.mrf.mxu0
        %v2265 = vadd.f32 %v2205, %v2264
        %v2266 = vand.u32 %v2025, 4294901760
        %v2267 = vsub.f32 %v2025, %v2266
        %v2268 = vand.u32 %v2267, 4294901760
        %2269 = vmatmul.f32.gmra.mxu0 %v2268
        %v2270 = vpop.f32.mrf.mxu0
        %v2271 = vadd.f32 %v2210, %v2270
        %v2272 = vand.u32 %v2028, 4294901760
        %v2273 = vsub.f32 %v2028, %v2272
        %v2274 = vand.u32 %v2273, 4294901760
        %2275 = vmatmul.f32.gmra.mxu0 %v2274
        %v2276 = vpop.f32.mrf.mxu0
        %v2277 = vadd.f32 %v2215, %v2276
        %v2278 = vand.u32 %v2031, 4294901760
        %v2279 = vsub.f32 %v2031, %v2278
        %v2280 = vand.u32 %v2279, 4294901760
        %2281 = vmatmul.f32.gmra.mxu0 %v2280
        %v2282 = vpop.f32.mrf.mxu0
        %v2283 = vadd.f32 %v2220, %v2282
        %v2284 = vand.u32 %v2034, 4294901760
        %v2285 = vsub.f32 %v2034, %v2284
        %v2286 = vand.u32 %v2285, 4294901760
        %2287 = vmatmul.f32.gmra.mxu0 %v2286
        %v2288 = vpop.f32.mrf.mxu0
        %v2289 = vadd.f32 %v2225, %v2288
        %v2290 = vand.u32 %v2037, 4294901760
        %v2291 = vsub.f32 %v2037, %v2290
        %v2292 = vand.u32 %v2291, 4294901760
        %2293 = vmatmul.f32.gmra.mxu0 %v2292
        %v2294 = vpop.f32.mrf.mxu0
        %v2295 = vadd.f32 %v2230, %v2294
        %v2296 = vand.u32 %v2040, 4294901760
        %v2297 = vsub.f32 %v2040, %v2296
        %v2298 = vand.u32 %v2297, 4294901760
        %2299 = vmatmul.f32.gmra.mxu0 %v2298
        %v2300 = vpop.f32.mrf.mxu0
        %v2301 = vadd.f32 %v2235, %v2300
        %2302 = vdwg.mxu0
        %2303 = vmatpush.msra.mxu0 0.0
        %2304 = vmatpush.msra.mxu0 0.0
        %2305 = vmatpush.msra.mxu0 0.0
        %2306 = vmatpush.msra.mxu0 0.0
        %2307 = vmatpush.msra.mxu0 0.0
        %2308 = vmatpush.msra.mxu0 0.0
        %2309 = vmatpush.msra.mxu0 0.0
        %2310 = vmatpush.msra.mxu0 0.0
        %2311 = vmatpush.msra.mxu0 0.0
        %2312 = vmatpush.msra.mxu0 0.0
        %2313 = vmatpush.msra.mxu0 0.0
        %2314 = vmatpush.msra.mxu0 0.0
        %2315 = vmatpush.msra.mxu0 0.0
        %2316 = vmatpush.msra.mxu0 0.0
        %2317 = vmatpush.msra.mxu0 0.0
        %v2318 = vand.u32 %v1621, 4294901760
        %v2319 = vsub.f32 %v1621, %v2318
        %v2320 = vand.u32 %v2319, 4294901760
        %2321 = vmatpush.msra.mxu0 %v2320
        %v2322 = vand.u32 %v2019, 4294901760
        %2323 = vmatmul.f32.gmra.mxu0 %v2322
        %v2324 = vpop.f32.mrf.mxu0
        %v2325 = vadd.f32 %v2259, %v2324
        %v2326 = vand.u32 %v2022, 4294901760
        %2327 = vmatmul.f32.gmra.mxu0 %v2326
        %v2328 = vpop.f32.mrf.mxu0
        %v2329 = vadd.f32 %v2265, %v2328
        %v2330 = vand.u32 %v2025, 4294901760
        %2331 = vmatmul.f32.gmra.mxu0 %v2330
        %v2332 = vpop.f32.mrf.mxu0
        %v2333 = vadd.f32 %v2271, %v2332
        %v2334 = vand.u32 %v2028, 4294901760
        %2335 = vmatmul.f32.gmra.mxu0 %v2334
        %v2336 = vpop.f32.mrf.mxu0
        %v2337 = vadd.f32 %v2277, %v2336
        %v2338 = vand.u32 %v2031, 4294901760
        %2339 = vmatmul.f32.gmra.mxu0 %v2338
        %v2340 = vpop.f32.mrf.mxu0
        %v2341 = vadd.f32 %v2283, %v2340
        %v2342 = vand.u32 %v2034, 4294901760
        %2343 = vmatmul.f32.gmra.mxu0 %v2342
        %v2344 = vpop.f32.mrf.mxu0
        %v2345 = vadd.f32 %v2289, %v2344
        %v2346 = vand.u32 %v2037, 4294901760
        %2347 = vmatmul.f32.gmra.mxu0 %v2346
        %v2348 = vpop.f32.mrf.mxu0
        %v2349 = vadd.f32 %v2295, %v2348
        %v2350 = vand.u32 %v2040, 4294901760
        %2351 = vmatmul.f32.gmra.mxu0 %v2350
        %v2352 = vpop.f32.mrf.mxu0
        %v2353 = vadd.f32 %v2301, %v2352
        %2354 = vdwg.mxu0
        %2355 = vmatpush.msra.mxu0 0.0
        %2356 = vmatpush.msra.mxu0 0.0
        %2357 = vmatpush.msra.mxu0 0.0
        %2358 = vmatpush.msra.mxu0 0.0
        %2359 = vmatpush.msra.mxu0 0.0
        %2360 = vmatpush.msra.mxu0 0.0
        %2361 = vmatpush.msra.mxu0 0.0
        %2362 = vmatpush.msra.mxu0 0.0
        %2363 = vmatpush.msra.mxu0 0.0
        %2364 = vmatpush.msra.mxu0 0.0
        %2365 = vmatpush.msra.mxu0 0.0
        %2366 = vmatpush.msra.mxu0 0.0
        %2367 = vmatpush.msra.mxu0 0.0
        %2368 = vmatpush.msra.mxu0 0.0
        %2369 = vmatpush.msra.mxu0 0.0
        %v2370 = vand.u32 %v1621, 4294901760
        %2371 = vmatpush.msra.mxu0 %v2370
        %v2372 = vand.u32 %v2019, 4294901760
        %2373 = vmatmul.f32.gmra.mxu0 %v2372
        %v2374 = vpop.f32.mrf.mxu0
        %v2375 = vadd.f32 %v2325, %v2374
        %v2376 = vand.u32 %v2022, 4294901760
        %2377 = vmatmul.f32.gmra.mxu0 %v2376
        %v2378 = vpop.f32.mrf.mxu0
        %v2379 = vadd.f32 %v2329, %v2378
        %v2380 = vand.u32 %v2025, 4294901760
        %2381 = vmatmul.f32.gmra.mxu0 %v2380
        %v2382 = vpop.f32.mrf.mxu0
        %v2383 = vadd.f32 %v2333, %v2382
        %v2384 = vand.u32 %v2028, 4294901760
        %2385 = vmatmul.f32.gmra.mxu0 %v2384
        %v2386 = vpop.f32.mrf.mxu0
        %v2387 = vadd.f32 %v2337, %v2386
        %v2388 = vand.u32 %v2031, 4294901760
        %2389 = vmatmul.f32.gmra.mxu0 %v2388
        %v2390 = vpop.f32.mrf.mxu0
        %v2391 = vadd.f32 %v2341, %v2390
        %v2392 = vand.u32 %v2034, 4294901760
        %2393 = vmatmul.f32.gmra.mxu0 %v2392
        %v2394 = vpop.f32.mrf.mxu0
        %v2395 = vadd.f32 %v2345, %v2394
        %v2396 = vand.u32 %v2037, 4294901760
        %2397 = vmatmul.f32.gmra.mxu0 %v2396
        %v2398 = vpop.f32.mrf.mxu0
        %v2399 = vadd.f32 %v2349, %v2398
        %v2400 = vand.u32 %v2040, 4294901760
        %2401 = vmatmul.f32.gmra.mxu0 %v2400
        %v2402 = vpop.f32.mrf.mxu0
        %v2403 = vadd.f32 %v2353, %v2402
        %2404 = vdwg.mxu0
        %v2405 = vmul.f32 %v345, %v1980
        %v2406 = vmul.f32 %v346, %v1984
        %v2407 = vmul.f32 %v347, %v1988
        %v2408 = vmul.f32 %v348, %v1992
        %v2409 = vmul.f32 %v349, %v1996
        %v2410 = vmul.f32 %v350, %v2000
        %v2411 = vmul.f32 %v351, %v2004
        %v2412 = vmul.f32 %v352, %v2008
        %v2413 = vsub.f32 %v2405, %v2375
        %v2414 = vsub.f32 %v2406, %v2379
        %v2415 = vsub.f32 %v2407, %v2383
        %v2416 = vsub.f32 %v2408, %v2387
        %v2417 = vsub.f32 %v2409, %v2391
        %v2418 = vsub.f32 %v2410, %v2395
        %v2419 = vsub.f32 %v2411, %v2399
        %v2420 = vsub.f32 %v2412, %v2403
        %v2421 = vld [vmem:[%s3] sm:$0x1]
        %v2423 = vperm.slane %v2421, 0
        %v2425 = vadd.f32 %v2413, %v2423
        %v2426 = vadd.f32 %v2414, %v2423
        %v2427 = vadd.f32 %v2415, %v2423
        %v2428 = vadd.f32 %v2416, %v2423
        %v2429 = vadd.f32 %v2417, %v2423
        %v2430 = vadd.f32 %v2418, %v2423
        %v2431 = vadd.f32 %v2419, %v2423
        %v2432 = vadd.f32 %v2420, %v2423
        %v2433 = vxor.u32 %v2425, 2147483648
        %v2434 = vxor.u32 %v2426, 2147483648
        %v2435 = vxor.u32 %v2427, 2147483648
        %v2436 = vxor.u32 %v2428, 2147483648
        %v2437 = vxor.u32 %v2429, 2147483648
        %v2438 = vxor.u32 %v2430, 2147483648
        %v2439 = vxor.u32 %v2431, 2147483648
        %v2440 = vxor.u32 %v2432, 2147483648
        %v2441 = vmul.f32 %v2433, 1.442695
        %v2442 = vpow.pop %v2441
        %v2443 = vmul.f32 %v2434, 1.442695
        %v2444 = vpow.pop %v2443
        %v2445 = vmul.f32 %v2435, 1.442695
        %v2446 = vpow.pop %v2445
        %v2447 = vmul.f32 %v2436, 1.442695
        %v2448 = vpow.pop %v2447
        %v2449 = vmul.f32 %v2437, 1.442695
        %v2450 = vpow.pop %v2449
        %v2451 = vmul.f32 %v2438, 1.442695
        %v2452 = vpow.pop %v2451
        %v2453 = vmul.f32 %v2439, 1.442695
        %v2454 = vpow.pop %v2453
        %v2455 = vmul.f32 %v2440, 1.442695
        %v2456 = vpow.pop %v2455
        %v2457 = vadd.f32 %v2442, 1.0
        %v2458 = vadd.f32 %v2444, 1.0
        %v2459 = vadd.f32 %v2446, 1.0
        %v2460 = vadd.f32 %v2448, 1.0
        %v2461 = vadd.f32 %v2450, 1.0
        %v2462 = vadd.f32 %v2452, 1.0
        %v2463 = vadd.f32 %v2454, 1.0
        %v2464 = vadd.f32 %v2456, 1.0
        %v2465 = vrcp.pop %v2457
        %v2466 = vmul.f32 %v2457, %v2465
        %v2467 = vsub.f32 1.0, %v2466
        %v2468 = vmul.f32 %v2465, %v2467
        %v2469 = vadd.f32 %v2465, %v2468
        %vm2470 = vweird.f32 %v2457
        %vm2471 = vweird.f32 %v2465
        %vm2472 = vmor %vm2470, %vm2471
        %v2473 = vsel %vm2472, %v2465, %v2469
        %v2474 = vand.u32 2147483647, %v2457
        %vm2475 = vcmp.eq.f32.partialorder %v2474, 8.507059e+37
        %v2476 = vand.u32 %v2457, 2147483648
        %v2477 = vor.u32 1.1754944e-38, %v2476
        %v2478 = vsel %vm2475, %v2477, %v2473
        %v2479 = vmul.f32 1.0, %v2478
        %v2480 = vrcp.pop %v2458
        %v2481 = vmul.f32 %v2458, %v2480
        %v2482 = vsub.f32 1.0, %v2481
        %v2483 = vmul.f32 %v2480, %v2482
        %v2484 = vadd.f32 %v2480, %v2483
        %vm2485 = vweird.f32 %v2458
        %vm2486 = vweird.f32 %v2480
        %vm2487 = vmor %vm2485, %vm2486
        %v2488 = vsel %vm2487, %v2480, %v2484
        %v2489 = vand.u32 2147483647, %v2458
        %vm2490 = vcmp.eq.f32.partialorder %v2489, 8.507059e+37
        %v2491 = vand.u32 %v2458, 2147483648
        %v2492 = vor.u32 1.1754944e-38, %v2491
        %v2493 = vsel %vm2490, %v2492, %v2488
        %v2494 = vmul.f32 1.0, %v2493
        %v2495 = vrcp.pop %v2459
        %v2496 = vmul.f32 %v2459, %v2495
        %v2497 = vsub.f32 1.0, %v2496
        %v2498 = vmul.f32 %v2495, %v2497
        %v2499 = vadd.f32 %v2495, %v2498
        %vm2500 = vweird.f32 %v2459
        %vm2501 = vweird.f32 %v2495
        %vm2502 = vmor %vm2500, %vm2501
        %v2503 = vsel %vm2502, %v2495, %v2499
        %v2504 = vand.u32 2147483647, %v2459
        %vm2505 = vcmp.eq.f32.partialorder %v2504, 8.507059e+37
        %v2506 = vand.u32 %v2459, 2147483648
        %v2507 = vor.u32 1.1754944e-38, %v2506
        %v2508 = vsel %vm2505, %v2507, %v2503
        %v2509 = vmul.f32 1.0, %v2508
        %v2510 = vrcp.pop %v2460
        %v2511 = vmul.f32 %v2460, %v2510
        %v2512 = vsub.f32 1.0, %v2511
        %v2513 = vmul.f32 %v2510, %v2512
        %v2514 = vadd.f32 %v2510, %v2513
        %vm2515 = vweird.f32 %v2460
        %vm2516 = vweird.f32 %v2510
        %vm2517 = vmor %vm2515, %vm2516
        %v2518 = vsel %vm2517, %v2510, %v2514
        %v2519 = vand.u32 2147483647, %v2460
        %vm2520 = vcmp.eq.f32.partialorder %v2519, 8.507059e+37
        %v2521 = vand.u32 %v2460, 2147483648
        %v2522 = vor.u32 1.1754944e-38, %v2521
        %v2523 = vsel %vm2520, %v2522, %v2518
        %v2524 = vmul.f32 1.0, %v2523
        %v2525 = vrcp.pop %v2461
        %v2526 = vmul.f32 %v2461, %v2525
        %v2527 = vsub.f32 1.0, %v2526
        %v2528 = vmul.f32 %v2525, %v2527
        %v2529 = vadd.f32 %v2525, %v2528
        %vm2530 = vweird.f32 %v2461
        %vm2531 = vweird.f32 %v2525
        %vm2532 = vmor %vm2530, %vm2531
        %v2533 = vsel %vm2532, %v2525, %v2529
        %v2534 = vand.u32 2147483647, %v2461
        %vm2535 = vcmp.eq.f32.partialorder %v2534, 8.507059e+37
        %v2536 = vand.u32 %v2461, 2147483648
        %v2537 = vor.u32 1.1754944e-38, %v2536
        %v2538 = vsel %vm2535, %v2537, %v2533
        %v2539 = vmul.f32 1.0, %v2538
        %v2540 = vrcp.pop %v2462
        %v2541 = vmul.f32 %v2462, %v2540
        %v2542 = vsub.f32 1.0, %v2541
        %v2543 = vmul.f32 %v2540, %v2542
        %v2544 = vadd.f32 %v2540, %v2543
        %vm2545 = vweird.f32 %v2462
        %vm2546 = vweird.f32 %v2540
        %vm2547 = vmor %vm2545, %vm2546
        %v2548 = vsel %vm2547, %v2540, %v2544
        %v2549 = vand.u32 2147483647, %v2462
        %vm2550 = vcmp.eq.f32.partialorder %v2549, 8.507059e+37
        %v2551 = vand.u32 %v2462, 2147483648
        %v2552 = vor.u32 1.1754944e-38, %v2551
        %v2553 = vsel %vm2550, %v2552, %v2548
        %v2554 = vmul.f32 1.0, %v2553
        %v2555 = vrcp.pop %v2463
        %v2556 = vmul.f32 %v2463, %v2555
        %v2557 = vsub.f32 1.0, %v2556
        %v2558 = vmul.f32 %v2555, %v2557
        %v2559 = vadd.f32 %v2555, %v2558
        %vm2560 = vweird.f32 %v2463
        %vm2561 = vweird.f32 %v2555
        %vm2562 = vmor %vm2560, %vm2561
        %v2563 = vsel %vm2562, %v2555, %v2559
        %v2564 = vand.u32 2147483647, %v2463
        %vm2565 = vcmp.eq.f32.partialorder %v2564, 8.507059e+37
        %v2566 = vand.u32 %v2463, 2147483648
        %v2567 = vor.u32 1.1754944e-38, %v2566
        %v2568 = vsel %vm2565, %v2567, %v2563
        %v2569 = vmul.f32 1.0, %v2568
        %v2570 = vrcp.pop %v2464
        %v2571 = vmul.f32 %v2464, %v2570
        %v2572 = vsub.f32 1.0, %v2571
        %v2573 = vmul.f32 %v2570, %v2572
        %v2574 = vadd.f32 %v2570, %v2573
        %vm2575 = vweird.f32 %v2464
        %vm2576 = vweird.f32 %v2570
        %vm2577 = vmor %vm2575, %vm2576
        %v2578 = vsel %vm2577, %v2570, %v2574
        %v2579 = vand.u32 2147483647, %v2464
        %vm2580 = vcmp.eq.f32.partialorder %v2579, 8.507059e+37
        %v2581 = vand.u32 %v2464, 2147483648
        %v2582 = vor.u32 1.1754944e-38, %v2581
        %v2583 = vsel %vm2580, %v2582, %v2578
        %v2584 = vmul.f32 1.0, %v2583
        %v2585 = vmul.f32 %v2425, %v2479
        %v2586 = vmul.f32 %v2426, %v2494
        %v2587 = vmul.f32 %v2427, %v2509
        %v2588 = vmul.f32 %v2428, %v2524
        %v2589 = vmul.f32 %v2429, %v2539
        %v2590 = vmul.f32 %v2430, %v2554
        %v2591 = vmul.f32 %v2431, %v2569
        %v2592 = vmul.f32 %v2432, %v2584
        %v2593 = vpack.c.bf16 %v2586, %v2585
        %v2594 = vpack.c.bf16 %v2588, %v2587
        %v2595 = vpack.c.bf16 %v2590, %v2589
        %v2596 = vpack.c.bf16 %v2592, %v2591
        %v2597 = vld [vmem:[%s4] sm:$0xf]
        %v2598 = vld [vmem:[%s4 + $0x4] sm:$0xf]
        %v2599 = vld [vmem:[%s4 + $0x8] sm:$0xf]
        %v2600 = vld [vmem:[%s4 + $0xc] sm:$0xf]
        %v2601 = vld [vmem:[%s4 + $0x10] sm:$0xf]
        %v2602 = vld [vmem:[%s4 + $0x14] sm:$0xf]
        %v2603 = vld [vmem:[%s4 + $0x18] sm:$0xf]
        %v2604 = vld [vmem:[%s4 + $0x1c] sm:$0xf]
        %v2605 = vld [vmem:[%s4 + $0x20] sm:$0xf]
        %v2606 = vld [vmem:[%s4 + $0x24] sm:$0xf]
        %v2607 = vld [vmem:[%s4 + $0x28] sm:$0xf]
        %v2608 = vld [vmem:[%s4 + $0x2c] sm:$0xf]
        %v2609 = vld [vmem:[%s4 + $0x30] sm:$0xf]
        %v2610 = vld [vmem:[%s4 + $0x34] sm:$0xf]
        %v2611 = vld [vmem:[%s4 + $0x38] sm:$0xf]
        %v2612 = vld [vmem:[%s4 + $0x3c] sm:$0xf]
        %v2613 = vld [vmem:[%s5] sm:$0x1]
        %v2615 = vperm.slane %v2613, 0
        %v2633 = vunpack.c.l.b16 %v2597
        %v2634 = vunpack.c.l.b16 %v2598
        %v2635 = vunpack.c.l.b16 %v2599
        %v2636 = vunpack.c.l.b16 %v2600
        %v2637 = vunpack.c.l.b16 %v2601
        %v2638 = vunpack.c.l.b16 %v2602
        %v2639 = vunpack.c.l.b16 %v2603
        %v2640 = vunpack.c.l.b16 %v2604
        %v2641 = vunpack.c.l.b16 %v2605
        %v2642 = vunpack.c.l.b16 %v2606
        %v2643 = vunpack.c.l.b16 %v2607
        %v2644 = vunpack.c.l.b16 %v2608
        %v2645 = vunpack.c.l.b16 %v2609
        %v2646 = vunpack.c.l.b16 %v2610
        %v2647 = vunpack.c.l.b16 %v2611
        %v2648 = vunpack.c.l.b16 %v2612
        %v2649 = vpack.c.b16 %v2634, %v2633
        %v2650 = vpack.c.b16 %v2636, %v2635
        %v2651 = vpack.c.b16 %v2638, %v2637
        %v2652 = vpack.c.b16 %v2640, %v2639
        %v2653 = vpack.c.b16 %v2642, %v2641
        %v2654 = vpack.c.b16 %v2644, %v2643
        %v2655 = vpack.c.b16 %v2646, %v2645
        %v2656 = vpack.c.b16 %v2648, %v2647
        %2665 = vmatpush.bf16.msra.mxu0 %v2656
        %2666 = vmatpush.bf16.msra.mxu0 %v2655
        %2667 = vmatpush.bf16.msra.mxu0 %v2654
        %2668 = vmatpush.bf16.msra.mxu0 %v2653
        %2669 = vmatpush.bf16.msra.mxu0 %v2652
        %2670 = vmatpush.bf16.msra.mxu0 %v2651
        %2671 = vmatpush.bf16.msra.mxu0 %v2650
        %2672 = vmatpush.bf16.msra.mxu0 %v2649
        %2673 = vmatmul.bf16.gmra.mxu0 %v2593
        %v2674 = vpop.f32.mrf.mxu0
        %v2675 = vadd.f32 %v2615, %v2674
        %v2676 = vpop.f32.mrf.mxu0
        %v2677 = vadd.f32 %v2615, %v2676
        %2678 = vmatmul.bf16.gmra.mxu0 %v2594
        %v2679 = vpop.f32.mrf.mxu0
        %v2680 = vadd.f32 %v2615, %v2679
        %v2681 = vpop.f32.mrf.mxu0
        %v2682 = vadd.f32 %v2615, %v2681
        %2683 = vmatmul.bf16.gmra.mxu0 %v2595
        %v2684 = vpop.f32.mrf.mxu0
        %v2685 = vadd.f32 %v2615, %v2684
        %v2686 = vpop.f32.mrf.mxu0
        %v2687 = vadd.f32 %v2615, %v2686
        %2688 = vmatmul.bf16.gmra.mxu0 %v2596
        %v2689 = vpop.f32.mrf.mxu0
        %v2690 = vadd.f32 %v2615, %v2689
        %v2691 = vpop.f32.mrf.mxu0
        %v2692 = vadd.f32 %v2615, %v2691
        %2693 = vdwg.mxu0
        %v2694 = vld [vmem:[%s305] sm:$0xff]
        %v2695 = vld [vmem:[%s305 + $0x8] sm:$0xff]
        %v2696 = vld [vmem:[%s305 + $0x10] sm:$0xff]
        %v2697 = vld [vmem:[%s305 + $0x18] sm:$0xff]
        %v2698 = vld [vmem:[%s305 + $0x20] sm:$0xff]
        %v2699 = vld [vmem:[%s305 + $0x28] sm:$0xff]
        %v2700 = vld [vmem:[%s305 + $0x30] sm:$0xff]
        %v2701 = vld [vmem:[%s305 + $0x38] sm:$0xff]
        %v2702 = vunpack.c.l.bf16 %v2694
        %v2703 = vunpack.c.h.bf16 %v2694
        %v2704 = vunpack.c.l.bf16 %v2695
        %v2705 = vunpack.c.h.bf16 %v2695
        %v2706 = vunpack.c.l.bf16 %v2696
        %v2707 = vunpack.c.h.bf16 %v2696
        %v2708 = vunpack.c.l.bf16 %v2697
        %v2709 = vunpack.c.h.bf16 %v2697
        %v2710 = vunpack.c.l.bf16 %v2698
        %v2711 = vunpack.c.h.bf16 %v2698
        %v2712 = vunpack.c.l.bf16 %v2699
        %v2713 = vunpack.c.h.bf16 %v2699
        %v2714 = vunpack.c.l.bf16 %v2700
        %v2715 = vunpack.c.h.bf16 %v2700
        %v2716 = vunpack.c.l.bf16 %v2701
        %v2717 = vunpack.c.h.bf16 %v2701
        %v2718 = vadd.f32 %v2702, 1.0
        %v2719 = vadd.f32 %v2704, 1.0
        %v2720 = vadd.f32 %v2706, 1.0
        %v2721 = vadd.f32 %v2708, 1.0
        %v2722 = vadd.f32 %v2710, 1.0
        %v2723 = vadd.f32 %v2712, 1.0
        %v2724 = vadd.f32 %v2714, 1.0
        %v2725 = vadd.f32 %v2716, 1.0
        %v2726 = vmul.f32 %v2675, %v2718
        %v2727 = vmul.f32 %v2677, %v2719
        %v2728 = vmul.f32 %v2680, %v2720
        %v2729 = vmul.f32 %v2682, %v2721
        %v2730 = vmul.f32 %v2685, %v2722
        %v2731 = vmul.f32 %v2687, %v2723
        %v2732 = vmul.f32 %v2690, %v2724
        %v2733 = vmul.f32 %v2692, %v2725
        %v2734 = vadd.f32 %v2726, %v2703
        %v2735 = vadd.f32 %v2727, %v2705
        %v2736 = vadd.f32 %v2728, %v2707
        %v2737 = vadd.f32 %v2729, %v2709
        %v2738 = vadd.f32 %v2730, %v2711
        %v2739 = vadd.f32 %v2731, %v2713
        %v2740 = vadd.f32 %v2732, %v2715
        %v2741 = vadd.f32 %v2733, %v2717
        %v2742 = vadd.f32 %v2734, %v345
        %v2743 = vadd.f32 %v2735, %v346
        %v2744 = vadd.f32 %v2736, %v347
        %v2745 = vadd.f32 %v2737, %v348
        %v2746 = vadd.f32 %v2738, %v349
        %v2747 = vadd.f32 %v2739, %v350
        %v2748 = vadd.f32 %v2740, %v351
        %v2749 = vadd.f32 %v2741, %v352
        %2750 = vst [vmem:[%s341] sm:$0xff] %v2742
        %2751 = vst [vmem:[%s341 + $0x8] sm:$0xff] %v2743
        %2752 = vst [vmem:[%s341 + $0x10] sm:$0xff] %v2744
        %2753 = vst [vmem:[%s341 + $0x18] sm:$0xff] %v2745
        %2754 = vst [vmem:[%s341 + $0x20] sm:$0xff] %v2746
        %2755 = vst [vmem:[%s341 + $0x28] sm:$0xff] %v2747
        %2756 = vst [vmem:[%s341 + $0x30] sm:$0xff] %v2748
        %2757 = vst [vmem:[%s341 + $0x38] sm:$0xff] %v2749
        %s2758 = sand.u32 %s192, 1
        %s2759 = scalar_lea.sflag [#allocation4], %s2758
        %s2760 = sand.u32 %s192, 1
        %s2761 = smul.addr %s2760, 64
        %s2762 = scalar_lea.vmem [#allocation7], %s2761
        // Predicated region
        $region57: #{tpu_custom_call.1} parent=47 // pred_check
          %p2763 = pneg %p202
        $region58: #{tpu_custom_call.1} parent=47 // pred_check_branch
          %2765 = sbr.rel (%p2763) target = $region60
        $region59: #{tpu_custom_call.1} parent=47 // pred_region
          %s2766 = smul.u32 8, %s27
          %2768 = vsyncadd %s2759, 0
          %s2769 = smul.addr %s2766, 8
          %s2770 = scalar_lea.hbm %s7, %s2769
          %s2771 = sshll.u32 %s2762, 4
          %s2772 = int_to_ptr.vmem [resolvable:$true] %s2771
          %s2773 = sshll.u32 %s2770, 4
          %s2774 = int_to_ptr.hbm [resolvable:$true] %s2773
          %2779 = dma.vmem_to_hbm [thread:$0]  %s2772, 1024, %s2774, %s2759, 128, 128, 8
        $region60: #{tpu_custom_call.1} parent=47 // pred_fallthru
          _
      $region48: #{tpu_custom_call.1} parent=5 // pred_fallthru
        _
      %p2780 = scmp.le.s32.totalorder 2, %s22
      // Predicated region
      $region61: #{tpu_custom_call.1} parent=5 // pred_check
        %p2781 = pneg %p2780
      $region62: #{tpu_custom_call.1} parent=5 // pred_check_branch
        %2783 = sbr.rel (%p2781) target = $region64
      $region63: #{tpu_custom_call.1} parent=5 // pred_region
        %s2784 = ssub.s32 %s22, 2
        // Predicated region
        $region65: #{tpu_custom_call.1} parent=63 // pred_check
          %p2785 = pneg %p208
        $region66: #{tpu_custom_call.1} parent=63 // pred_check_branch
          %2787 = sbr.rel (%p2785) target = $region68
        $region67: #{tpu_custom_call.1} parent=63 // pred_region
          %s2788 = sand.u32 %s193, 1
          %s2789 = scalar_lea.sflag [#allocation4], %s2788
          %s2790 = sand.u32 %s193, 1
          %s2791 = smul.addr %s2790, 64
          %s2792 = scalar_lea.vmem [#allocation7], %s2791
          %2794 = dma.done %s2789, 1024
        $region68: #{tpu_custom_call.1} parent=63 // pred_fallthru
          _
      $region64: #{tpu_custom_call.1} parent=5 // pred_fallthru
        _
    $region6: #{tpu_custom_call.1} parent=1 // loop_footer
      %s26 = sadd.s32 1, %s22
    $region7: #{tpu_custom_call.1} parent=1 // loop_footer_branch
      %21 = sbr.rel target = $region3
    $region8: #{tpu_custom_call.1} parent=1 // loop_exit
      _
    %2795 = vsyncpa [#allocation3], 1
    %s2796 = scalar_lea.sflag [#allocation3], 1
    %2797 = vsyncpa %s2796, 1
    %2798 = vsyncpa [#allocation6], 1
    %s2799 = scalar_lea.sflag [#allocation6], 1
    %2800 = vsyncpa %s2799, 1
    %2801 = vsyncpa [#allocation4], 1
    %s2802 = scalar_lea.sflag [#allocation4], 1
    %2803 = vsyncpa %s2802, 1

// kernel: tpu_custom_call.1
$region0: #{tpu_custom_call.1}
  #allocation0 [shape = 'u32[]', space=smem, size = 0x4, offset = 0x4, fixed_abs, tag = 'smem constant byte address 0x4 - core index']
  #allocation1 [shape = 'u32[72,128]{1,0:T(1,128)}', space=vmem, size = 0x9000, scoped, tag = 'internal scratch']
  %s0 = inlined_call_operand.hbm [shape: f32[256,128], index: 0, kind: input, shape index: {}]
  %s1 = inlined_call_operand.vmem [shape: f32[128,8], index: 1, kind: input, shape index: {}]
  %s2 = inlined_call_operand.vmem [shape: f32[8,128], index: 2, kind: input, shape index: {}]
  %s3 = inlined_call_operand.vmem [shape: f32[1,128], index: 3, kind: input, shape index: {}]
  %s4 = inlined_call_operand.vmem [shape: bf16[128,128], index: 4, kind: input, shape index: {}]
  %s5 = inlined_call_operand.vmem [shape: f32[1,128], index: 5, kind: input, shape index: {}]
  %s6 = inlined_call_operand.hbm [shape: bf16[256,256], index: 6, kind: input, shape index: {}]
  %s7 = inlined_call_operand.hbm [shape: f32[256,128], index: 7, kind: output, shape index: {}]
  %s8 = sld [smem:[#allocation0]]
  $region69: #{tpu_custom_call.1} parent=0
    _
  %s10 = ssub.s32 1, %s8
  %s11 = scalar_select 0, %s10, %s8
  $region1: #{tpu_custom_call.1} parent=0
    #allocation2 [shape = 'u8[65536]{0}', space=vmem, size = 0x10000, scoped, tag = 'input window, operand 0']
    #allocation3 [shape = 's32[2]{0}', space=sflag, size = 0x8, scoped, tag = 'scoped memory for tpu_custom_call.1']
    #allocation4 [shape = 's32[2]{0}', space=sflag, size = 0x8, scoped, tag = 'scoped memory for tpu_custom_call.1']
    #allocation5 [shape = 'u8[65536]{0}', space=vmem, size = 0x10000, scoped, tag = 'input window, operand 6']
    #allocation6 [shape = 's32[2]{0}', space=sflag, size = 0x8, scoped, tag = 'scoped memory for tpu_custom_call.1']
    #allocation7 [shape = 'u8[65536]{0}', space=vmem, size = 0x10000, scoped, tag = 'output window, operand 0']
    %12 = vsyncpa [#allocation3], 0
    %s13 = scalar_lea.sflag [#allocation3], 1
    %14 = vsyncpa %s13, 0
    %15 = vsyncpa [#allocation6], 0
    %s16 = scalar_lea.sflag [#allocation6], 1
    %17 = vsyncpa %s16, 0
    %18 = vsyncpa [#allocation4], 0
    %s19 = scalar_lea.sflag [#allocation4], 1
    %20 = vsyncpa %s19, 0
    loop: start=0, step=1, limit=6
    $region2: #{tpu_custom_call.1} parent=1 // loop_pre_header
      _
    $region3: #{tpu_custom_call.1} parent=1 // loop_header
      %s22 = sphi 0, %s26
      %p23 = scmp.ge.s32.totalorder %s22, 6
      %s32 = sphi 0, %s34
      %s35 = sphi 0, %s32
      %s36 = sphi 0, %s35
      %s52 = sphi 0, %s36
      %s56 = sphi 0, %s56
      %s58 = sphi 0, %s56
      %s59 = sphi 0, %s58
      %s73 = sphi 0, %s59
      %s77 = sphi 0, %s77
      %s79 = sphi 0, %s77
      %s80 = sphi 0, %s79
      %s94 = sphi 0, %s80
      %s98 = sphi 0, %s98
      %s100 = sphi 0, %s98
      %s101 = sphi 0, %s100
      %s115 = sphi 0, %s101
      %s119 = sphi 0, %s119
      %s121 = sphi 0, %s119
      %s122 = sphi 0, %s121
      %s136 = sphi 0, %s122
      %s140 = sphi 0, %s140
      %s142 = sphi 0, %s140
      %s143 = sphi 0, %s142
      %s157 = sphi 0, %s143
      %s163 = sphi 0, %s165
      %s166 = sphi 0, %s163
      %s167 = sphi 0, %s166
      %s183 = sphi 0, %s167
      %s189 = sphi 0, %s191
      %s192 = sphi 0, %s189
      %s193 = sphi 0, %s192
      %s209 = sphi 0, %s193
    $region4: #{tpu_custom_call.1} parent=1 // loop_header_branch
      %25 = sbr.rel (%p23) target = $region8
    $region5: #{tpu_custom_call.1} parent=1 // loop_body
      %s27 = ssub.s32 %s22, 1
      %s28 = ssub.s32 %s22, 2
      %s29 = sadd.s32 %s22, 1
      %s30 = ssub.s32 %s22, %s29
      %p31 = scmp.eq.s32.totalorder %s30, 0
      %s33 = sadd.s32 %s32, 1
      %s34 = scalar_select %p31, %s32, %s33
      %p37 = pneg %p31
      %p38 = scmp.eq.s32.totalorder %s22, 3
      %p39 = por %p37, %p38
      %p40 = scmp.ne.s32.totalorder %s32, %s35
      %p41 = scmp.eq.s32.totalorder %s22, 0
      %p42 = por %p40, %p41
      %p43 = scmp.ne.s32.totalorder %s32, %s35
      %p44 = scmp.eq.s32.totalorder %s27, 3
      %p45 = por %p43, %p44
      %p46 = scmp.ne.s32.totalorder %s35, %s36
      %p47 = scmp.eq.s32.totalorder %s27, 0
      %p48 = por %p46, %p47
      %p49 = scmp.ne.s32.totalorder %s35, %s36
      %p50 = scmp.eq.s32.totalorder %s28, 3
      %p51 = por %p49, %p50
      %p53 = scmp.ne.s32.totalorder %s36, %s52
      %p54 = scmp.eq.s32.totalorder %s28, 0
      %p55 = por %p53, %p54
      %s57 = sadd.s32 %s56, 1
      %p60 = scmp.eq.s32.totalorder %s22, 3
      %p61 = scmp.ne.s32.totalorder %s56, %s58
      %p62 = scmp.eq.s32.totalorder %s22, 0
      %p63 = por %p61, %p62
      %p64 = scmp.ne.s32.totalorder %s56, %s58
      %p65 = scmp.eq.s32.totalorder %s27, 3
      %p66 = por %p64, %p65
      %p67 = scmp.ne.s32.totalorder %s58, %s59
      %p68 = scmp.eq.s32.totalorder %s27, 0
      %p69 = por %p67, %p68
      %p70 = scmp.ne.s32.totalorder %s58, %s59
      %p71 = scmp.eq.s32.totalorder %s28, 3
      %p72 = por %p70, %p71
      %p74 = scmp.ne.s32.totalorder %s59, %s73
      %p75 = scmp.eq.s32.totalorder %s28, 0
      %p76 = por %p74, %p75
      %s78 = sadd.s32 %s77, 1
      %p81 = scmp.eq.s32.totalorder %s22, 3
      %p82 = scmp.ne.s32.totalorder %s77, %s79
      %p83 = scmp.eq.s32.totalorder %s22, 0
      %p84 = por %p82, %p83
      %p85 = scmp.ne.s32.totalorder %s77, %s79
      %p86 = scmp.eq.s32.totalorder %s27, 3
      %p87 = por %p85, %p86
      %p88 = scmp.ne.s32.totalorder %s79, %s80
      %p89 = scmp.eq.s32.totalorder %s27, 0
      %p90 = por %p88, %p89
      %p91 = scmp.ne.s32.totalorder %s79, %s80
      %p92 = scmp.eq.s32.totalorder %s28, 3
      %p93 = por %p91, %p92
      %p95 = scmp.ne.s32.totalorder %s80, %s94
      %p96 = scmp.eq.s32.totalorder %s28, 0
      %p97 = por %p95, %p96
      %s99 = sadd.s32 %s98, 1
      %p102 = scmp.eq.s32.totalorder %s22, 3
      %p103 = scmp.ne.s32.totalorder %s98, %s100
      %p104 = scmp.eq.s32.totalorder %s22, 0
      %p105 = por %p103, %p104
      %p106 = scmp.ne.s32.totalorder %s98, %s100
      %p107 = scmp.eq.s32.totalorder %s27, 3
      %p108 = por %p106, %p107
      %p109 = scmp.ne.s32.totalorder %s100, %s101
      %p110 = scmp.eq.s32.totalorder %s27, 0
      %p111 = por %p109, %p110
      %p112 = scmp.ne.s32.totalorder %s100, %s101
      %p113 = scmp.eq.s32.totalorder %s28, 3
      %p114 = por %p112, %p113
      %p116 = scmp.ne.s32.totalorder %s101, %s115
      %p117 = scmp.eq.s32.totalorder %s28, 0
      %p118 = por %p116, %p117
      %s120 = sadd.s32 %s119, 1
      %p123 = scmp.eq.s32.totalorder %s22, 3
      %p124 = scmp.ne.s32.totalorder %s119, %s121
      %p125 = scmp.eq.s32.totalorder %s22, 0
      %p126 = por %p124, %p125
      %p127 = scmp.ne.s32.totalorder %s119, %s121
      %p128 = scmp.eq.s32.totalorder %s27, 3
      %p129 = por %p127, %p128
      %p130 = scmp.ne.s32.totalorder %s121, %s122
      %p131 = scmp.eq.s32.totalorder %s27, 0
      %p132 = por %p130, %p131
      %p133 = scmp.ne.s32.totalorder %s121, %s122
      %p134 = scmp.eq.s32.totalorder %s28, 3
      %p135 = por %p133, %p134
      %p137 = scmp.ne.s32.totalorder %s122, %s136
      %p138 = scmp.eq.s32.totalorder %s28, 0
      %p139 = por %p137, %p138
      %s141 = sadd.s32 %s140, 1
      %p144 = scmp.eq.s32.totalorder %s22, 3
      %p145 = scmp.ne.s32.totalorder %s140, %s142
      %p146 = scmp.eq.s32.totalorder %s22, 0
      %p147 = por %p145, %p146
      %p148 = scmp.ne.s32.totalorder %s140, %s142
      %p149 = scmp.eq.s32.totalorder %s27, 3
      %p150 = por %p148, %p149
      %p151 = scmp.ne.s32.totalorder %s142, %s143
      %p152 = scmp.eq.s32.totalorder %s27, 0
      %p153 = por %p151, %p152
      %p154 = scmp.ne.s32.totalorder %s142, %s143
      %p155 = scmp.eq.s32.totalorder %s28, 3
      %p156 = por %p154, %p155
      %p158 = scmp.ne.s32.totalorder %s143, %s157
      %p159 = scmp.eq.s32.totalorder %s28, 0
      %p160 = por %p158, %p159
      %s161 = ssub.s32 %s22, %s29
      %p162 = scmp.eq.s32.totalorder %s161, 0
      %s164 = sadd.s32 %s163, 1
      %s165 = scalar_select %p162, %s163, %s164
      %p168 = pneg %p162
      %p169 = scmp.eq.s32.totalorder %s22, 3
      %p170 = por %p168, %p169
      %p171 = scmp.ne.s32.totalorder %s163, %s166
      %p172 = scmp.eq.s32.totalorder %s22, 0
      %p173 = por %p171, %p172
      %p174 = scmp.ne.s32.totalorder %s163, %s166
      %p175 = scmp.eq.s32.totalorder %s27, 3
      %p176 = por %p174, %p175
      %p177 = scmp.ne.s32.totalorder %s166, %s167
      %p178 = scmp.eq.s32.totalorder %s27, 0
      %p179 = por %p177, %p178
      %p180 = scmp.ne.s32.totalorder %s166, %s167
      %p181 = scmp.eq.s32.totalorder %s28, 3
      %p182 = por %p180, %p181
      %p184 = scmp.ne.s32.totalorder %s167, %s183
      %p185 = scmp.eq.s32.totalorder %s28, 0
      %p186 = por %p184, %p185
      %s187 = ssub.s32 %s22, %s29
      %p188 = scmp.eq.s32.totalorder %s187, 0
      %s190 = sadd.s32 %s189, 1
      %s191 = scalar_select %p188, %s189, %s190
      %p194 = pneg %p188
      %p195 = scmp.eq.s32.totalorder %s22, 3
      %p196 = por %p194, %p195
      %p197 = scmp.ne.s32.totalorder %s189, %s192
      %p198 = scmp.eq.s32.totalorder %s22, 0
      %p199 = por %p197, %p198
      %p200 = scmp.ne.s32.totalorder %s189, %s192
      %p201 = scmp.eq.s32.totalorder %s27, 3
      %p202 = por %p200, %p201
      %p203 = scmp.ne.s32.totalorder %s192, %s193
      %p204 = scmp.eq.s32.totalorder %s27, 0
      %p205 = por %p203, %p204
      %p206 = scmp.ne.s32.totalorder %s192, %s193
      %p207 = scmp.eq.s32.totalorder %s28, 3
      %p208 = por %p206, %p207
      %p210 = scmp.ne.s32.totalorder %s193, %s209
      %p211 = scmp.eq.s32.totalorder %s28, 0
      %p212 = por %p210, %p211
      %p213 = scmp.le.s32.totalorder 1, %s22
      %p214 = scmp.lt.s32.totalorder %s22, 5
      %p215 = pnand %p213, %p214
      %p216 = pneg %p215
      // Predicated region
      $region9: #{tpu_custom_call.1} parent=5 // pred_check
        _
      $region10: #{tpu_custom_call.1} parent=5 // pred_check_branch
        %218 = sbr.rel (%p215) target = $region12
      $region11: #{tpu_custom_call.1} parent=5 // pred_region
        %s219 = ssub.s32 %s22, 1
        // Predicated region
        $region13: #{tpu_custom_call.1} parent=11 // pred_check
          %p220 = pneg %p69
        $region14: #{tpu_custom_call.1} parent=11 // pred_check_branch
          %222 = sbr.rel (%p220) target = $region16
        $region15: #{tpu_custom_call.1} parent=11 // pred_region
          _
        $region16: #{tpu_custom_call.1} parent=11 // pred_fallthru
          _
        // Predicated region
        $region17: #{tpu_custom_call.1} parent=11 // pred_check
          %p223 = pneg %p90
        $region18: #{tpu_custom_call.1} parent=11 // pred_check_branch
          %225 = sbr.rel (%p223) target = $region20
        $region19: #{tpu_custom_call.1} parent=11 // pred_region
          _
        $region20: #{tpu_custom_call.1} parent=11 // pred_fallthru
          _
        // Predicated region
        $region21: #{tpu_custom_call.1} parent=11 // pred_check
          %p226 = pneg %p111
        $region22: #{tpu_custom_call.1} parent=11 // pred_check_branch
          %228 = sbr.rel (%p226) target = $region24
        $region23: #{tpu_custom_call.1} parent=11 // pred_region
          _
        $region24: #{tpu_custom_call.1} parent=11 // pred_fallthru
          _
        // Predicated region
        $region25: #{tpu_custom_call.1} parent=11 // pred_check
          %p229 = pneg %p132
        $region26: #{tpu_custom_call.1} parent=11 // pred_check_branch
          %231 = sbr.rel (%p229) target = $region28
        $region27: #{tpu_custom_call.1} parent=11 // pred_region
          _
        $region28: #{tpu_custom_call.1} parent=11 // pred_fallthru
          _
        // Predicated region
        $region29: #{tpu_custom_call.1} parent=11 // pred_check
          %p232 = pneg %p153
        $region30: #{tpu_custom_call.1} parent=11 // pred_check_branch
          %234 = sbr.rel (%p232) target = $region32
        $region31: #{tpu_custom_call.1} parent=11 // pred_region
          _
        $region32: #{tpu_custom_call.1} parent=11 // pred_fallthru
          _
      $region12: #{tpu_custom_call.1} parent=5 // pred_fallthru
        _
      %p235 = scmp.lt.s32.totalorder %s22, 4
      // Predicated region
      $region33: #{tpu_custom_call.1} parent=5 // pred_check
        %p236 = pneg %p235
      $region34: #{tpu_custom_call.1} parent=5 // pred_check_branch
        %238 = sbr.rel (%p236) target = $region36
      $region35: #{tpu_custom_call.1} parent=5 // pred_region
        // Predicated region
        $region37: #{tpu_custom_call.1} parent=35 // pred_check
          %p239 = pneg %p42
        $region38: #{tpu_custom_call.1} parent=35 // pred_check_branch
          %241 = sbr.rel (%p239) target = $region40
        $region39: #{tpu_custom_call.1} parent=35 // pred_region
          %s242 = sand.u32 %s32, 1
          %s243 = scalar_lea.sflag [#allocation3], %s242
          %s244 = sand.u32 %s32, 1
          %s245 = smul.addr %s244, 64
          %s246 = scalar_lea.vmem [#allocation2], %s245
          %s247 = smul.u32 8, %s22
          %249 = vsyncadd %s243, 0
          %s250 = smul.addr %s247, 8
          %s251 = scalar_lea.hbm %s0, %s250
          %s252 = sshll.u32 %s251, 4
          %s253 = int_to_ptr.hbm [resolvable:$true] %s252
          %s254 = sshll.u32 %s246, 4
          %s255 = int_to_ptr.vmem [resolvable:$true] %s254
          %260 = dma.hbm_to_vmem [thread:$0]  %s253, 1024, %s255, %s243, 128, 128, 8
        $region40: #{tpu_custom_call.1} parent=35 // pred_fallthru
          _
        // Predicated region
        $region41: #{tpu_custom_call.1} parent=35 // pred_check
          %p261 = pneg %p173
        $region42: #{tpu_custom_call.1} parent=35 // pred_check_branch
          %263 = sbr.rel (%p261) target = $region44
        $region43: #{tpu_custom_call.1} parent=35 // pred_region
          %s264 = sand.u32 %s163, 1
          %s265 = scalar_lea.sflag [#allocation6], %s264
          %s266 = sand.u32 %s163, 1
          %s267 = smul.addr %s266, 64
          %s268 = scalar_lea.vmem [#allocation5], %s267
          %s269 = smul.u32 8, %s22
          %271 = vsyncadd %s265, 0
          %s272 = smul.addr %s269, 2
          %s273 = smul.addr %s272, 4
          %s274 = scalar_lea.hbm %s6, %s273
          %s275 = sshll.u32 %s274, 4
          %s276 = int_to_ptr.hbm [resolvable:$true] %s275
          %s277 = sshll.u32 %s268, 4
          %s278 = int_to_ptr.vmem [resolvable:$true] %s277
          %283 = dma.hbm_to_vmem [thread:$0]  %s276, 1024, %s278, %s265, 128, 128, 8
        $region44: #{tpu_custom_call.1} parent=35 // pred_fallthru
          _
      $region36: #{tpu_custom_call.1} parent=5 // pred_fallthru
        _
      %p284 = scmp.le.s32.totalorder 1, %s22
      %p285 = scmp.lt.s32.totalorder %s22, 5
      %p286 = pnand %p284, %p285
      %p287 = pneg %p286
      // Predicated region
      $region45: #{tpu_custom_call.1} parent=5 // pred_check
        _
      $region46: #{tpu_custom_call.1} parent=5 // pred_check_branch
        %289 = sbr.rel (%p286) target = $region48
      $region47: #{tpu_custom_call.1} parent=5 // pred_region
        %s290 = ssub.s32 %s22, 1
        %s291 = sand.u32 %s35, 1
        %s292 = scalar_lea.sflag [#allocation3], %s291
        %s293 = sand.u32 %s35, 1
        %s294 = smul.addr %s293, 64
        %s295 = scalar_lea.vmem [#allocation2], %s294
        // Predicated region
        $region49: #{tpu_custom_call.1} parent=47 // pred_check
          %p296 = pneg %p48
        $region50: #{tpu_custom_call.1} parent=47 // pred_check_branch
          %298 = sbr.rel (%p296) target = $region52
        $region51: #{tpu_custom_call.1} parent=47 // pred_region
          %300 = dma.done %s292, 1024
        $region52: #{tpu_custom_call.1} parent=47 // pred_fallthru
          _
        %s301 = sand.u32 %s166, 1
        %s302 = scalar_lea.sflag [#allocation6], %s301
        %s303 = sand.u32 %s166, 1
        %s304 = smul.addr %s303, 64
        %s305 = scalar_lea.vmem [#allocation5], %s304
        // Predicated region
        $region53: #{tpu_custom_call.1} parent=47 // pred_check
          %p306 = pneg %p179
        $region54: #{tpu_custom_call.1} parent=47 // pred_check_branch
          %308 = sbr.rel (%p306) target = $region56
        $region55: #{tpu_custom_call.1} parent=47 // pred_region
          %310 = dma.done %s302, 1024
        $region56: #{tpu_custom_call.1} parent=47 // pred_fallthru
          _
        %s311 = sand.u32 %s35, 1
        %s312 = scalar_lea.sflag [#allocation3], %s311
        %s313 = sand.u32 %s35, 1
        %s314 = smul.addr %s313, 64
        %s315 = scalar_lea.vmem [#allocation2], %s314
        %p316 = pneg %p48
        %p317 = pneg %p45
        %p318 = pneg %p69
        %p319 = pneg %p66
        %p320 = pneg %p90
        %p321 = pneg %p87
        %p322 = pneg %p111
        %p323 = pneg %p108
        %p324 = pneg %p132
        %p325 = pneg %p129
        %p326 = pneg %p153
        %p327 = pneg %p150
        %s328 = sand.u32 %s166, 1
        %s329 = scalar_lea.sflag [#allocation6], %s328
        %s330 = sand.u32 %s166, 1
        %s331 = smul.addr %s330, 64
        %s332 = scalar_lea.vmem [#allocation5], %s331
        %p333 = pneg %p179
        %p334 = pneg %p176
        %p335 = pneg %p205
        %p336 = pneg %p202
        %s337 = sand.u32 %s192, 1
        %s338 = scalar_lea.sflag [#allocation4], %s337
        %s339 = sand.u32 %s192, 1
        %s340 = smul.addr %s339, 64
        %s341 = scalar_lea.vmem [#allocation7], %s340
        %s342 = smul.u32 8, %s27
        %s343 = smul.u32 8, %s27
        %s344 = smul.u32 8, %s27
        %v345 = vld [vmem:[%s295] sm:$0xff]
        %v346 = vld [vmem:[%s295 + $0x8] sm:$0xff]
        %v347 = vld [vmem:[%s295 + $0x10] sm:$0xff]
        %v348 = vld [vmem:[%s295 + $0x18] sm:$0xff]
        %v349 = vld [vmem:[%s295 + $0x20] sm:$0xff]
        %v350 = vld [vmem:[%s295 + $0x28] sm:$0xff]
        %v351 = vld [vmem:[%s295 + $0x30] sm:$0xff]
        %v352 = vld [vmem:[%s295 + $0x38] sm:$0xff]
        %v353 = vld [vmem:[%s1] sm:$0xff]
        %v354 = vld [vmem:[%s1 + $0x8] sm:$0xff]
        %v355 = vld [vmem:[%s1 + $0x10] sm:$0xff]
        %v356 = vld [vmem:[%s1 + $0x18] sm:$0xff]
        %v357 = vld [vmem:[%s1 + $0x20] sm:$0xff]
        %v358 = vld [vmem:[%s1 + $0x28] sm:$0xff]
        %v359 = vld [vmem:[%s1 + $0x30] sm:$0xff]
        %v360 = vld [vmem:[%s1 + $0x38] sm:$0xff]
        %v361 = vld [vmem:[%s1 + $0x40] sm:$0xff]
        %v362 = vld [vmem:[%s1 + $0x48] sm:$0xff]
        %v363 = vld [vmem:[%s1 + $0x50] sm:$0xff]
        %v364 = vld [vmem:[%s1 + $0x58] sm:$0xff]
        %v365 = vld [vmem:[%s1 + $0x60] sm:$0xff]
        %v366 = vld [vmem:[%s1 + $0x68] sm:$0xff]
        %v367 = vld [vmem:[%s1 + $0x70] sm:$0xff]
        %v368 = vld [vmem:[%s1 + $0x78] sm:$0xff]
        %v369 = vand.u32 %v368, 4294901760
        %370 = vmatpush.msra.mxu0 %v369
        %v371 = vand.u32 %v367, 4294901760
        %372 = vmatpush.msra.mxu0 %v371
        %v373 = vand.u32 %v366, 4294901760
        %374 = vmatpush.msra.mxu0 %v373
        %v375 = vand.u32 %v365, 4294901760
        %376 = vmatpush.msra.mxu0 %v375
        %v377 = vand.u32 %v364, 4294901760
        %378 = vmatpush.msra.mxu0 %v377
        %v379 = vand.u32 %v363, 4294901760
        %380 = vmatpush.msra.mxu0 %v379
        %v381 = vand.u32 %v362, 4294901760
        %382 = vmatpush.msra.mxu0 %v381
        %v383 = vand.u32 %v361, 4294901760
        %384 = vmatpush.msra.mxu0 %v383
        %v385 = vand.u32 %v360, 4294901760
        %386 = vmatpush.msra.mxu0 %v385
        %v387 = vand.u32 %v359, 4294901760
        %388 = vmatpush.msra.mxu0 %v387
        %v389 = vand.u32 %v358, 4294901760
        %390 = vmatpush.msra.mxu0 %v389
        %v391 = vand.u32 %v357, 4294901760
        %392 = vmatpush.msra.mxu0 %v391
        %v393 = vand.u32 %v356, 4294901760
        %394 = vmatpush.msra.mxu0 %v393
        %v395 = vand.u32 %v355, 4294901760
        %396 = vmatpush.msra.mxu0 %v395
        %v397 = vand.u32 %v354, 4294901760
        %398 = vmatpush.msra.mxu0 %v397
        %v399 = vand.u32 %v353, 4294901760
        %400 = vmatpush.msra.mxu0 %v399
        %v401 = vand.u32 %v345, 4294901760
        %v402 = vsub.f32 %v345, %v401
        %v403 = vand.u32 %v402, 4294901760
        %v404 = vsub.f32 %v402, %v403
        %v405 = vand.u32 %v404, 4294901760
        %406 = vmatmul.f32.gmra.mxu0 %v405
        %v407 = vpop.f32.mrf.mxu0
        %v408 = vadd.f32 0.0, %v407
        %v409 = vand.u32 %v346, 4294901760
        %v410 = vsub.f32 %v346, %v409
        %v411 = vand.u32 %v410, 4294901760
        %v412 = vsub.f32 %v410, %v411
        %v413 = vand.u32 %v412, 4294901760
        %414 = vmatmul.f32.gmra.mxu0 %v413
        %v415 = vpop.f32.mrf.mxu0
        %v416 = vadd.f32 0.0, %v415
        %v417 = vand.u32 %v347, 4294901760
        %v418 = vsub.f32 %v347, %v417
        %v419 = vand.u32 %v418, 4294901760
        %v420 = vsub.f32 %v418, %v419
        %v421 = vand.u32 %v420, 4294901760
        %422 = vmatmul.f32.gmra.mxu0 %v421
        %v423 = vpop.f32.mrf.mxu0
        %v424 = vadd.f32 0.0, %v423
        %v425 = vand.u32 %v348, 4294901760
        %v426 = vsub.f32 %v348, %v425
        %v427 = vand.u32 %v426, 4294901760
        %v428 = vsub.f32 %v426, %v427
        %v429 = vand.u32 %v428, 4294901760
        %430 = vmatmul.f32.gmra.mxu0 %v429
        %v431 = vpop.f32.mrf.mxu0
        %v432 = vadd.f32 0.0, %v431
        %v433 = vand.u32 %v349, 4294901760
        %v434 = vsub.f32 %v349, %v433
        %v435 = vand.u32 %v434, 4294901760
        %v436 = vsub.f32 %v434, %v435
        %v437 = vand.u32 %v436, 4294901760
        %438 = vmatmul.f32.gmra.mxu0 %v437
        %v439 = vpop.f32.mrf.mxu0
        %v440 = vadd.f32 0.0, %v439
        %v441 = vand.u32 %v350, 4294901760
        %v442 = vsub.f32 %v350, %v441
        %v443 = vand.u32 %v442, 4294901760
        %v444 = vsub.f32 %v442, %v443
        %v445 = vand.u32 %v444, 4294901760
        %446 = vmatmul.f32.gmra.mxu0 %v445
        %v447 = vpop.f32.mrf.mxu0
        %v448 = vadd.f32 0.0, %v447
        %v449 = vand.u32 %v351, 4294901760
        %v450 = vsub.f32 %v351, %v449
        %v451 = vand.u32 %v450, 4294901760
        %v452 = vsub.f32 %v450, %v451
        %v453 = vand.u32 %v452, 4294901760
        %454 = vmatmul.f32.gmra.mxu0 %v453
        %v455 = vpop.f32.mrf.mxu0
        %v456 = vadd.f32 0.0, %v455
        %v457 = vand.u32 %v352, 4294901760
        %v458 = vsub.f32 %v352, %v457
        %v459 = vand.u32 %v458, 4294901760
        %v460 = vsub.f32 %v458, %v459
        %v461 = vand.u32 %v460, 4294901760
        %462 = vmatmul.f32.gmra.mxu0 %v461
        %v463 = vpop.f32.mrf.mxu0
        %v464 = vadd.f32 0.0, %v463
        %465 = vdwg.mxu0
        %v466 = vand.u32 %v368, 4294901760
        %v467 = vsub.f32 %v368, %v466
        %v468 = vand.u32 %v467, 4294901760
        %v469 = vsub.f32 %v467, %v468
        %v470 = vand.u32 %v469, 4294901760
        %471 = vmatpush.msra.mxu0 %v470
        %v472 = vand.u32 %v367, 4294901760
        %v473 = vsub.f32 %v367, %v472
        %v474 = vand.u32 %v473, 4294901760
        %v475 = vsub.f32 %v473, %v474
        %v476 = vand.u32 %v475, 4294901760
        %477 = vmatpush.msra.mxu0 %v476
        %v478 = vand.u32 %v366, 4294901760
        %v479 = vsub.f32 %v366, %v478
        %v480 = vand.u32 %v479, 4294901760
        %v481 = vsub.f32 %v479, %v480
        %v482 = vand.u32 %v481, 4294901760
        %483 = vmatpush.msra.mxu0 %v482
        %v484 = vand.u32 %v365, 4294901760
        %v485 = vsub.f32 %v365, %v484
        %v486 = vand.u32 %v485, 4294901760
        %v487 = vsub.f32 %v485, %v486
        %v488 = vand.u32 %v487, 4294901760
        %489 = vmatpush.msra.mxu0 %v488
        %v490 = vand.u32 %v364, 4294901760
        %v491 = vsub.f32 %v364, %v490
        %v492 = vand.u32 %v491, 4294901760
        %v493 = vsub.f32 %v491, %v492
        %v494 = vand.u32 %v493, 4294901760
        %495 = vmatpush.msra.mxu0 %v494
        %v496 = vand.u32 %v363, 4294901760
        %v497 = vsub.f32 %v363, %v496
        %v498 = vand.u32 %v497, 4294901760
        %v499 = vsub.f32 %v497, %v498
        %v500 = vand.u32 %v499, 4294901760
        %501 = vmatpush.msra.mxu0 %v500
        %v502 = vand.u32 %v362, 4294901760
        %v503 = vsub.f32 %v362, %v502
        %v504 = vand.u32 %v503, 4294901760
        %v505 = vsub.f32 %v503, %v504
        %v506 = vand.u32 %v505, 4294901760
        %507 = vmatpush.msra.mxu0 %v506
        %v508 = vand.u32 %v361, 4294901760
        %v509 = vsub.f32 %v361, %v508
        %v510 = vand.u32 %v509, 4294901760
        %v511 = vsub.f32 %v509, %v510
        %v512 = vand.u32 %v511, 4294901760
        %513 = vmatpush.msra.mxu0 %v512
        %v514 = vand.u32 %v360, 4294901760
        %v515 = vsub.f32 %v360, %v514
        %v516 = vand.u32 %v515, 4294901760
        %v517 = vsub.f32 %v515, %v516
        %v518 = vand.u32 %v517, 4294901760
        %519 = vmatpush.msra.mxu0 %v518
        %v520 = vand.u32 %v359, 4294901760
        %v521 = vsub.f32 %v359, %v520
        %v522 = vand.u32 %v521, 4294901760
        %v523 = vsub.f32 %v521, %v522
        %v524 = vand.u32 %v523, 4294901760
        %525 = vmatpush.msra.mxu0 %v524
        %v526 = vand.u32 %v358, 4294901760
        %v527 = vsub.f32 %v358, %v526
        %v528 = vand.u32 %v527, 4294901760
        %v529 = vsub.f32 %v527, %v528
        %v530 = vand.u32 %v529, 4294901760
        %531 = vmatpush.msra.mxu0 %v530
        %v532 = vand.u32 %v357, 4294901760
        %v533 = vsub.f32 %v357, %v532
        %v534 = vand.u32 %v533, 4294901760
        %v535 = vsub.f32 %v533, %v534
        %v536 = vand.u32 %v535, 4294901760
        %537 = vmatpush.msra.mxu0 %v536
        %v538 = vand.u32 %v356, 4294901760
        %v539 = vsub.f32 %v356, %v538
        %v540 = vand.u32 %v539, 4294901760
        %v541 = vsub.f32 %v539, %v540
        %v542 = vand.u32 %v541, 4294901760
        %543 = vmatpush.msra.mxu0 %v542
        %v544 = vand.u32 %v355, 4294901760
        %v545 = vsub.f32 %v355, %v544
        %v546 = vand.u32 %v545, 4294901760
        %v547 = vsub.f32 %v545, %v546
        %v548 = vand.u32 %v547, 4294901760
        %549 = vmatpush.msra.mxu0 %v548
        %v550 = vand.u32 %v354, 4294901760
        %v551 = vsub.f32 %v354, %v550
        %v552 = vand.u32 %v551, 4294901760
        %v553 = vsub.f32 %v551, %v552
        %v554 = vand.u32 %v553, 4294901760
        %555 = vmatpush.msra.mxu0 %v554
        %v556 = vand.u32 %v353, 4294901760
        %v557 = vsub.f32 %v353, %v556
        %v558 = vand.u32 %v557, 4294901760
        %v559 = vsub.f32 %v557, %v558
        %v560 = vand.u32 %v559, 4294901760
        %561 = vmatpush.msra.mxu0 %v560
        %v562 = vand.u32 %v345, 4294901760
        %563 = vmatmul.f32.gmra.mxu0 %v562
        %v564 = vpop.f32.mrf.mxu0
        %v565 = vadd.f32 %v408, %v564
        %v566 = vand.u32 %v346, 4294901760
        %567 = vmatmul.f32.gmra.mxu0 %v566
        %v568 = vpop.f32.mrf.mxu0
        %v569 = vadd.f32 %v416, %v568
        %v570 = vand.u32 %v347, 4294901760
        %571 = vmatmul.f32.gmra.mxu0 %v570
        %v572 = vpop.f32.mrf.mxu0
        %v573 = vadd.f32 %v424, %v572
        %v574 = vand.u32 %v348, 4294901760
        %575 = vmatmul.f32.gmra.mxu0 %v574
        %v576 = vpop.f32.mrf.mxu0
        %v577 = vadd.f32 %v432, %v576
        %v578 = vand.u32 %v349, 4294901760
        %579 = vmatmul.f32.gmra.mxu0 %v578
        %v580 = vpop.f32.mrf.mxu0
        %v581 = vadd.f32 %v440, %v580
        %v582 = vand.u32 %v350, 4294901760
        %583 = vmatmul.f32.gmra.mxu0 %v582
        %v584 = vpop.f32.mrf.mxu0
        %v585 = vadd.f32 %v448, %v584
        %v586 = vand.u32 %v351, 4294901760
        %587 = vmatmul.f32.gmra.mxu0 %v586
        %v588 = vpop.f32.mrf.mxu0
        %v589 = vadd.f32 %v456, %v588
        %v590 = vand.u32 %v352, 4294901760
        %591 = vmatmul.f32.gmra.mxu0 %v590
        %v592 = vpop.f32.mrf.mxu0
        %v593 = vadd.f32 %v464, %v592
        %594 = vdwg.mxu0
        %v595 = vand.u32 %v368, 4294901760
        %v596 = vsub.f32 %v368, %v595
        %597 = vmatpush.msra.mxu0 %v596
        %v598 = vand.u32 %v367, 4294901760
        %v599 = vsub.f32 %v367, %v598
        %600 = vmatpush.msra.mxu0 %v599
        %v601 = vand.u32 %v366, 4294901760
        %v602 = vsub.f32 %v366, %v601
        %603 = vmatpush.msra.mxu0 %v602
        %v604 = vand.u32 %v365, 4294901760
        %v605 = vsub.f32 %v365, %v604
        %606 = vmatpush.msra.mxu0 %v605
        %v607 = vand.u32 %v364, 4294901760
        %v608 = vsub.f32 %v364, %v607
        %609 = vmatpush.msra.mxu0 %v608
        %v610 = vand.u32 %v363, 4294901760
        %v611 = vsub.f32 %v363, %v610
        %612 = vmatpush.msra.mxu0 %v611
        %v613 = vand.u32 %v362, 4294901760
        %v614 = vsub.f32 %v362, %v613
        %615 = vmatpush.msra.mxu0 %v614
        %v616 = vand.u32 %v361, 4294901760
        %v617 = vsub.f32 %v361, %v616
        %618 = vmatpush.msra.mxu0 %v617
        %v619 = vand.u32 %v360, 4294901760
        %v620 = vsub.f32 %v360, %v619
        %621 = vmatpush.msra.mxu0 %v620
        %v622 = vand.u32 %v359, 4294901760
        %v623 = vsub.f32 %v359, %v622
        %624 = vmatpush.msra.mxu0 %v623
        %v625 = vand.u32 %v358, 4294901760
        %v626 = vsub.f32 %v358, %v625
        %627 = vmatpush.msra.mxu0 %v626
        %v628 = vand.u32 %v357, 4294901760
        %v629 = vsub.f32 %v357, %v628
        %630 = vmatpush.msra.mxu0 %v629
        %v631 = vand.u32 %v356, 4294901760
        %v632 = vsub.f32 %v356, %v631
        %633 = vmatpush.msra.mxu0 %v632
        %v634 = vand.u32 %v355, 4294901760
        %v635 = vsub.f32 %v355, %v634
        %636 = vmatpush.msra.mxu0 %v635
        %v637 = vand.u32 %v354, 4294901760
        %v638 = vsub.f32 %v354, %v637
        %639 = vmatpush.msra.mxu0 %v638
        %v640 = vand.u32 %v353, 4294901760
        %v641 = vsub.f32 %v353, %v640
        %642 = vmatpush.msra.mxu0 %v641
        %v643 = vand.u32 %v345, 4294901760
        %v644 = vsub.f32 %v345, %v643
        %645 = vmatmul.f32.gmra.mxu0 %v644
        %v646 = vpop.f32.mrf.mxu0
        %v647 = vadd.f32 %v565, %v646
        %v648 = vand.u32 %v346, 4294901760
        %v649 = vsub.f32 %v346, %v648
        %650 = vmatmul.f32.gmra.mxu0 %v649
        %v651 = vpop.f32.mrf.mxu0
        %v652 = vadd.f32 %v569, %v651
        %v653 = vand.u32 %v347, 4294901760
        %v654 = vsub.f32 %v347, %v653
        %655 = vmatmul.f32.gmra.mxu0 %v654
        %v656 = vpop.f32.mrf.mxu0
        %v657 = vadd.f32 %v573, %v656
        %v658 = vand.u32 %v348, 4294901760
        %v659 = vsub.f32 %v348, %v658
        %660 = vmatmul.f32.gmra.mxu0 %v659
        %v661 = vpop.f32.mrf.mxu0
        %v662 = vadd.f32 %v577, %v661
        %v663 = vand.u32 %v349, 4294901760
        %v664 = vsub.f32 %v349, %v663
        %665 = vmatmul.f32.gmra.mxu0 %v664
        %v666 = vpop.f32.mrf.mxu0
        %v667 = vadd.f32 %v581, %v666
        %v668 = vand.u32 %v350, 4294901760
        %v669 = vsub.f32 %v350, %v668
        %670 = vmatmul.f32.gmra.mxu0 %v669
        %v671 = vpop.f32.mrf.mxu0
        %v672 = vadd.f32 %v585, %v671
        %v673 = vand.u32 %v351, 4294901760
        %v674 = vsub.f32 %v351, %v673
        %675 = vmatmul.f32.gmra.mxu0 %v674
        %v676 = vpop.f32.mrf.mxu0
        %v677 = vadd.f32 %v589, %v676
        %v678 = vand.u32 %v352, 4294901760
        %v679 = vsub.f32 %v352, %v678
        %680 = vmatmul.f32.gmra.mxu0 %v679
        %v681 = vpop.f32.mrf.mxu0
        %v682 = vadd.f32 %v593, %v681
        %683 = vdwg.mxu0
        %v684 = vand.u32 %v368, 4294901760
        %685 = vmatpush.msra.mxu0 %v684
        %v686 = vand.u32 %v367, 4294901760
        %687 = vmatpush.msra.mxu0 %v686
        %v688 = vand.u32 %v366, 4294901760
        %689 = vmatpush.msra.mxu0 %v688
        %v690 = vand.u32 %v365, 4294901760
        %691 = vmatpush.msra.mxu0 %v690
        %v692 = vand.u32 %v364, 4294901760
        %693 = vmatpush.msra.mxu0 %v692
        %v694 = vand.u32 %v363, 4294901760
        %695 = vmatpush.msra.mxu0 %v694
        %v696 = vand.u32 %v362, 4294901760
        %697 = vmatpush.msra.mxu0 %v696
        %v698 = vand.u32 %v361, 4294901760
        %699 = vmatpush.msra.mxu0 %v698
        %v700 = vand.u32 %v360, 4294901760
        %701 = vmatpush.msra.mxu0 %v700
        %v702 = vand.u32 %v359, 4294901760
        %703 = vmatpush.msra.mxu0 %v702
        %v704 = vand.u32 %v358, 4294901760
        %705 = vmatpush.msra.mxu0 %v704
        %v706 = vand.u32 %v357, 4294901760
        %707 = vmatpush.msra.mxu0 %v706
        %v708 = vand.u32 %v356, 4294901760
        %709 = vmatpush.msra.mxu0 %v708
        %v710 = vand.u32 %v355, 4294901760
        %711 = vmatpush.msra.mxu0 %v710
        %v712 = vand.u32 %v354, 4294901760
        %713 = vmatpush.msra.mxu0 %v712
        %v714 = vand.u32 %v353, 4294901760
        %715 = vmatpush.msra.mxu0 %v714
        %v716 = vand.u32 %v345, 4294901760
        %v717 = vsub.f32 %v345, %v716
        %v718 = vand.u32 %v717, 4294901760
        %719 = vmatmul.f32.gmra.mxu0 %v718
        %v720 = vpop.f32.mrf.mxu0
        %v721 = vadd.f32 %v647, %v720
        %v722 = vand.u32 %v346, 4294901760
        %v723 = vsub.f32 %v346, %v722
        %v724 = vand.u32 %v723, 4294901760
        %725 = vmatmul.f32.gmra.mxu0 %v724
        %v726 = vpop.f32.mrf.mxu0
        %v727 = vadd.f32 %v652, %v726
        %v728 = vand.u32 %v347, 4294901760
        %v729 = vsub.f32 %v347, %v728
        %v730 = vand.u32 %v729, 4294901760
        %731 = vmatmul.f32.gmra.mxu0 %v730
        %v732 = vpop.f32.mrf.mxu0
        %v733 = vadd.f32 %v657, %v732
        %v734 = vand.u32 %v348, 4294901760
        %v735 = vsub.f32 %v348, %v734
        %v736 = vand.u32 %v735, 4294901760
        %737 = vmatmul.f32.gmra.mxu0 %v736
        %v738 = vpop.f32.mrf.mxu0
        %v739 = vadd.f32 %v662, %v738
        %v740 = vand.u32 %v349, 4294901760
        %v741 = vsub.f32 %v349, %v740
        %v742 = vand.u32 %v741, 4294901760
        %743 = vmatmul.f32.gmra.mxu0 %v742
        %v744 = vpop.f32.mrf.mxu0
        %v745 = vadd.f32 %v667, %v744
        %v746 = vand.u32 %v350, 4294901760
        %v747 = vsub.f32 %v350, %v746
        %v748 = vand.u32 %v747, 4294901760
        %749 = vmatmul.f32.gmra.mxu0 %v748
        %v750 = vpop.f32.mrf.mxu0
        %v751 = vadd.f32 %v672, %v750
        %v752 = vand.u32 %v351, 4294901760
        %v753 = vsub.f32 %v351, %v752
        %v754 = vand.u32 %v753, 4294901760
        %755 = vmatmul.f32.gmra.mxu0 %v754
        %v756 = vpop.f32.mrf.mxu0
        %v757 = vadd.f32 %v677, %v756
        %v758 = vand.u32 %v352, 4294901760
        %v759 = vsub.f32 %v352, %v758
        %v760 = vand.u32 %v759, 4294901760
        %761 = vmatmul.f32.gmra.mxu0 %v760
        %v762 = vpop.f32.mrf.mxu0
        %v763 = vadd.f32 %v682, %v762
        %764 = vdwg.mxu0
        %v765 = vand.u32 %v368, 4294901760
        %v766 = vsub.f32 %v368, %v765
        %v767 = vand.u32 %v766, 4294901760
        %768 = vmatpush.msra.mxu0 %v767
        %v769 = vand.u32 %v367, 4294901760
        %v770 = vsub.f32 %v367, %v769
        %v771 = vand.u32 %v770, 4294901760
        %772 = vmatpush.msra.mxu0 %v771
        %v773 = vand.u32 %v366, 4294901760
        %v774 = vsub.f32 %v366, %v773
        %v775 = vand.u32 %v774, 4294901760
        %776 = vmatpush.msra.mxu0 %v775
        %v777 = vand.u32 %v365, 4294901760
        %v778 = vsub.f32 %v365, %v777
        %v779 = vand.u32 %v778, 4294901760
        %780 = vmatpush.msra.mxu0 %v779
        %v781 = vand.u32 %v364, 4294901760
        %v782 = vsub.f32 %v364, %v781
        %v783 = vand.u32 %v782, 4294901760
        %784 = vmatpush.msra.mxu0 %v783
        %v785 = vand.u32 %v363, 4294901760
        %v786 = vsub.f32 %v363, %v785
        %v787 = vand.u32 %v786, 4294901760
        %788 = vmatpush.msra.mxu0 %v787
        %v789 = vand.u32 %v362, 4294901760
        %v790 = vsub.f32 %v362, %v789
        %v791 = vand.u32 %v790, 4294901760
        %792 = vmatpush.msra.mxu0 %v791
        %v793 = vand.u32 %v361, 4294901760
        %v794 = vsub.f32 %v361, %v793
        %v795 = vand.u32 %v794, 4294901760
        %796 = vmatpush.msra.mxu0 %v795
        %v797 = vand.u32 %v360, 4294901760
        %v798 = vsub.f32 %v360, %v797
        %v799 = vand.u32 %v798, 4294901760
        %800 = vmatpush.msra.mxu0 %v799
        %v801 = vand.u32 %v359, 4294901760
        %v802 = vsub.f32 %v359, %v801
        %v803 = vand.u32 %v802, 4294901760
        %804 = vmatpush.msra.mxu0 %v803
        %v805 = vand.u32 %v358, 4294901760
        %v806 = vsub.f32 %v358, %v805
        %v807 = vand.u32 %v806, 4294901760
        %808 = vmatpush.msra.mxu0 %v807
        %v809 = vand.u32 %v357, 4294901760
        %v810 = vsub.f32 %v357, %v809
        %v811 = vand.u32 %v810, 4294901760
        %812 = vmatpush.msra.mxu0 %v811
        %v813 = vand.u32 %v356, 4294901760
        %v814 = vsub.f32 %v356, %v813
        %v815 = vand.u32 %v814, 4294901760
        %816 = vmatpush.msra.mxu0 %v815
        %v817 = vand.u32 %v355, 4294901760
        %v818 = vsub.f32 %v355, %v817
        %v819 = vand.u32 %v818, 4294901760
        %820 = vmatpush.msra.mxu0 %v819
        %v821 = vand.u32 %v354, 4294901760
        %v822 = vsub.f32 %v354, %v821
        %v823 = vand.u32 %v822, 4294901760
        %824 = vmatpush.msra.mxu0 %v823
        %v825 = vand.u32 %v353, 4294901760
        %v826 = vsub.f32 %v353, %v825
        %v827 = vand.u32 %v826, 4294901760
        %828 = vmatpush.msra.mxu0 %v827
        %v829 = vand.u32 %v345, 4294901760
        %830 = vmatmul.f32.gmra.mxu0 %v829
        %v831 = vpop.f32.mrf.mxu0
        %v832 = vadd.f32 %v721, %v831
        %v833 = vand.u32 %v346, 4294901760
        %834 = vmatmul.f32.gmra.mxu0 %v833
        %v835 = vpop.f32.mrf.mxu0
        %v836 = vadd.f32 %v727, %v835
        %v837 = vand.u32 %v347, 4294901760
        %838 = vmatmul.f32.gmra.mxu0 %v837
        %v839 = vpop.f32.mrf.mxu0
        %v840 = vadd.f32 %v733, %v839
        %v841 = vand.u32 %v348, 4294901760
        %842 = vmatmul.f32.gmra.mxu0 %v841
        %v843 = vpop.f32.mrf.mxu0
        %v844 = vadd.f32 %v739, %v843
        %v845 = vand.u32 %v349, 4294901760
        %846 = vmatmul.f32.gmra.mxu0 %v845
        %v847 = vpop.f32.mrf.mxu0
        %v848 = vadd.f32 %v745, %v847
        %v849 = vand.u32 %v350, 4294901760
        %850 = vmatmul.f32.gmra.mxu0 %v849
        %v851 = vpop.f32.mrf.mxu0
        %v852 = vadd.f32 %v751, %v851
        %v853 = vand.u32 %v351, 4294901760
        %854 = vmatmul.f32.gmra.mxu0 %v853
        %v855 = vpop.f32.mrf.mxu0
        %v856 = vadd.f32 %v757, %v855
        %v857 = vand.u32 %v352, 4294901760
        %858 = vmatmul.f32.gmra.mxu0 %v857
        %v859 = vpop.f32.mrf.mxu0
        %v860 = vadd.f32 %v763, %v859
        %861 = vdwg.mxu0
        %v862 = vand.u32 %v368, 4294901760
        %863 = vmatpush.msra.mxu0 %v862
        %v864 = vand.u32 %v367, 4294901760
        %865 = vmatpush.msra.mxu0 %v864
        %v866 = vand.u32 %v366, 4294901760
        %867 = vmatpush.msra.mxu0 %v866
        %v868 = vand.u32 %v365, 4294901760
        %869 = vmatpush.msra.mxu0 %v868
        %v870 = vand.u32 %v364, 4294901760
        %871 = vmatpush.msra.mxu0 %v870
        %v872 = vand.u32 %v363, 4294901760
        %873 = vmatpush.msra.mxu0 %v872
        %v874 = vand.u32 %v362, 4294901760
        %875 = vmatpush.msra.mxu0 %v874
        %v876 = vand.u32 %v361, 4294901760
        %877 = vmatpush.msra.mxu0 %v876
        %v878 = vand.u32 %v360, 4294901760
        %879 = vmatpush.msra.mxu0 %v878
        %v880 = vand.u32 %v359, 4294901760
        %881 = vmatpush.msra.mxu0 %v880
        %v882 = vand.u32 %v358, 4294901760
        %883 = vmatpush.msra.mxu0 %v882
        %v884 = vand.u32 %v357, 4294901760
        %885 = vmatpush.msra.mxu0 %v884
        %v886 = vand.u32 %v356, 4294901760
        %887 = vmatpush.msra.mxu0 %v886
        %v888 = vand.u32 %v355, 4294901760
        %889 = vmatpush.msra.mxu0 %v888
        %v890 = vand.u32 %v354, 4294901760
        %891 = vmatpush.msra.mxu0 %v890
        %v892 = vand.u32 %v353, 4294901760
        %893 = vmatpush.msra.mxu0 %v892
        %v894 = vand.u32 %v345, 4294901760
        %895 = vmatmul.f32.gmra.mxu0 %v894
        %v896 = vpop.f32.mrf.mxu0
        %v897 = vadd.f32 %v832, %v896
        %v898 = vand.u32 %v346, 4294901760
        %899 = vmatmul.f32.gmra.mxu0 %v898
        %v900 = vpop.f32.mrf.mxu0
        %v901 = vadd.f32 %v836, %v900
        %v902 = vand.u32 %v347, 4294901760
        %903 = vmatmul.f32.gmra.mxu0 %v902
        %v904 = vpop.f32.mrf.mxu0
        %v905 = vadd.f32 %v840, %v904
        %v906 = vand.u32 %v348, 4294901760
        %907 = vmatmul.f32.gmra.mxu0 %v906
        %v908 = vpop.f32.mrf.mxu0
        %v909 = vadd.f32 %v844, %v908
        %v910 = vand.u32 %v349, 4294901760
        %911 = vmatmul.f32.gmra.mxu0 %v910
        %v912 = vpop.f32.mrf.mxu0
        %v913 = vadd.f32 %v848, %v912
        %v914 = vand.u32 %v350, 4294901760
        %915 = vmatmul.f32.gmra.mxu0 %v914
        %v916 = vpop.f32.mrf.mxu0
        %v917 = vadd.f32 %v852, %v916
        %v918 = vand.u32 %v351, 4294901760
        %919 = vmatmul.f32.gmra.mxu0 %v918
        %v920 = vpop.f32.mrf.mxu0
        %v921 = vadd.f32 %v856, %v920
        %v922 = vand.u32 %v352, 4294901760
        %923 = vmatmul.f32.gmra.mxu0 %v922
        %v924 = vpop.f32.mrf.mxu0
        %v925 = vadd.f32 %v860, %v924
        %926 = vdwg.mxu0
        %v927 = vmul.f32 %v345, %v345
        %v928 = vmul.f32 %v346, %v346
        %v929 = vmul.f32 %v347, %v347
        %v930 = vmul.f32 %v348, %v348
        %v931 = vmul.f32 %v349, %v349
        %v932 = vmul.f32 %v350, %v350
        %v933 = vmul.f32 %v351, %v351
        %v934 = vmul.f32 %v352, %v352
        %v935 = vand.u32 %v368, 4294901760
        %936 = vmatpush.msra.mxu0 %v935
        %v937 = vand.u32 %v367, 4294901760
        %938 = vmatpush.msra.mxu0 %v937
        %v939 = vand.u32 %v366, 4294901760
        %940 = vmatpush.msra.mxu0 %v939
        %v941 = vand.u32 %v365, 4294901760
        %942 = vmatpush.msra.mxu0 %v941
        %v943 = vand.u32 %v364, 4294901760
        %944 = vmatpush.msra.mxu0 %v943
        %v945 = vand.u32 %v363, 4294901760
        %946 = vmatpush.msra.mxu0 %v945
        %v947 = vand.u32 %v362, 4294901760
        %948 = vmatpush.msra.mxu0 %v947
        %v949 = vand.u32 %v361, 4294901760
        %950 = vmatpush.msra.mxu0 %v949
        %v951 = vand.u32 %v360, 4294901760
        %952 = vmatpush.msra.mxu0 %v951
        %v953 = vand.u32 %v359, 4294901760
        %954 = vmatpush.msra.mxu0 %v953
        %v955 = vand.u32 %v358, 4294901760
        %956 = vmatpush.msra.mxu0 %v955
        %v957 = vand.u32 %v357, 4294901760
        %958 = vmatpush.msra.mxu0 %v957
        %v959 = vand.u32 %v356, 4294901760
        %960 = vmatpush.msra.mxu0 %v959
        %v961 = vand.u32 %v355, 4294901760
        %962 = vmatpush.msra.mxu0 %v961
        %v963 = vand.u32 %v354, 4294901760
        %964 = vmatpush.msra.mxu0 %v963
        %v965 = vand.u32 %v353, 4294901760
        %966 = vmatpush.msra.mxu0 %v965
        %v967 = vand.u32 %v927, 4294901760
        %v968 = vsub.f32 %v927, %v967
        %v969 = vand.u32 %v968, 4294901760
        %v970 = vsub.f32 %v968, %v969
        %v971 = vand.u32 %v970, 4294901760
        %972 = vmatmul.f32.gmra.mxu0 %v971
        %v973 = vpop.f32.mrf.mxu0
        %v974 = vadd.f32 0.0, %v973
        %v975 = vand.u32 %v928, 4294901760
        %v976 = vsub.f32 %v928, %v975
        %v977 = vand.u32 %v976, 4294901760
        %v978 = vsub.f32 %v976, %v977
        %v979 = vand.u32 %v978, 4294901760
        %980 = vmatmul.f32.gmra.mxu0 %v979
        %v981 = vpop.f32.mrf.mxu0
        %v982 = vadd.f32 0.0, %v981
        %v983 = vand.u32 %v929, 4294901760
        %v984 = vsub.f32 %v929, %v983
        %v985 = vand.u32 %v984, 4294901760
        %v986 = vsub.f32 %v984, %v985
        %v987 = vand.u32 %v986, 4294901760
        %988 = vmatmul.f32.gmra.mxu0 %v987
        %v989 = vpop.f32.mrf.mxu0
        %v990 = vadd.f32 0.0, %v989
        %v991 = vand.u32 %v930, 4294901760
        %v992 = vsub.f32 %v930, %v991
        %v993 = vand.u32 %v992, 4294901760
        %v994 = vsub.f32 %v992, %v993
        %v995 = vand.u32 %v994, 4294901760
        %996 = vmatmul.f32.gmra.mxu0 %v995
        %v997 = vpop.f32.mrf.mxu0
        %v998 = vadd.f32 0.0, %v997
        %v999 = vand.u32 %v931, 4294901760
        %v1000 = vsub.f32 %v931, %v999
        %v1001 = vand.u32 %v1000, 4294901760
        %v1002 = vsub.f32 %v1000, %v1001
        %v1003 = vand.u32 %v1002, 4294901760
        %1004 = vmatmul.f32.gmra.mxu0 %v1003
        %v1005 = vpop.f32.mrf.mxu0
        %v1006 = vadd.f32 0.0, %v1005
        %v1007 = vand.u32 %v932, 4294901760
        %v1008 = vsub.f32 %v932, %v1007
        %v1009 = vand.u32 %v1008, 4294901760
        %v1010 = vsub.f32 %v1008, %v1009
        %v1011 = vand.u32 %v1010, 4294901760
        %1012 = vmatmul.f32.gmra.mxu0 %v1011
        %v1013 = vpop.f32.mrf.mxu0
        %v1014 = vadd.f32 0.0, %v1013
        %v1015 = vand.u32 %v933, 4294901760
        %v1016 = vsub.f32 %v933, %v1015
        %v1017 = vand.u32 %v1016, 4294901760
        %v1018 = vsub.f32 %v1016, %v1017
        %v1019 = vand.u32 %v1018, 4294901760
        %1020 = vmatmul.f32.gmra.mxu0 %v1019
        %v1021 = vpop.f32.mrf.mxu0
        %v1022 = vadd.f32 0.0, %v1021
        %v1023 = vand.u32 %v934, 4294901760
        %v1024 = vsub.f32 %v934, %v1023
        %v1025 = vand.u32 %v1024, 4294901760
        %v1026 = vsub.f32 %v1024, %v1025
        %v1027 = vand.u32 %v1026, 4294901760
        %1028 = vmatmul.f32.gmra.mxu0 %v1027
        %v1029 = vpop.f32.mrf.mxu0
        %v1030 = vadd.f32 0.0, %v1029
        %1031 = vdwg.mxu0
        %v1032 = vand.u32 %v368, 4294901760
        %v1033 = vsub.f32 %v368, %v1032
        %v1034 = vand.u32 %v1033, 4294901760
        %v1035 = vsub.f32 %v1033, %v1034
        %v1036 = vand.u32 %v1035, 4294901760
        %1037 = vmatpush.msra.mxu0 %v1036
        %v1038 = vand.u32 %v367, 4294901760
        %v1039 = vsub.f32 %v367, %v1038
        %v1040 = vand.u32 %v1039, 4294901760
        %v1041 = vsub.f32 %v1039, %v1040
        %v1042 = vand.u32 %v1041, 4294901760
        %1043 = vmatpush.msra.mxu0 %v1042
        %v1044 = vand.u32 %v366, 4294901760
        %v1045 = vsub.f32 %v366, %v1044
        %v1046 = vand.u32 %v1045, 4294901760
        %v1047 = vsub.f32 %v1045, %v1046
        %v1048 = vand.u32 %v1047, 4294901760
        %1049 = vmatpush.msra.mxu0 %v1048
        %v1050 = vand.u32 %v365, 4294901760
        %v1051 = vsub.f32 %v365, %v1050
        %v1052 = vand.u32 %v1051, 4294901760
        %v1053 = vsub.f32 %v1051, %v1052
        %v1054 = vand.u32 %v1053, 4294901760
        %1055 = vmatpush.msra.mxu0 %v1054
        %v1056 = vand.u32 %v364, 4294901760
        %v1057 = vsub.f32 %v364, %v1056
        %v1058 = vand.u32 %v1057, 4294901760
        %v1059 = vsub.f32 %v1057, %v1058
        %v1060 = vand.u32 %v1059, 4294901760
        %1061 = vmatpush.msra.mxu0 %v1060
        %v1062 = vand.u32 %v363, 4294901760
        %v1063 = vsub.f32 %v363, %v1062
        %v1064 = vand.u32 %v1063, 4294901760
        %v1065 = vsub.f32 %v1063, %v1064
        %v1066 = vand.u32 %v1065, 4294901760
        %1067 = vmatpush.msra.mxu0 %v1066
        %v1068 = vand.u32 %v362, 4294901760
        %v1069 = vsub.f32 %v362, %v1068
        %v1070 = vand.u32 %v1069, 4294901760
        %v1071 = vsub.f32 %v1069, %v1070
        %v1072 = vand.u32 %v1071, 4294901760
        %1073 = vmatpush.msra.mxu0 %v1072
        %v1074 = vand.u32 %v361, 4294901760
        %v1075 = vsub.f32 %v361, %v1074
        %v1076 = vand.u32 %v1075, 4294901760
        %v1077 = vsub.f32 %v1075, %v1076
        %v1078 = vand.u32 %v1077, 4294901760
        %1079 = vmatpush.msra.mxu0 %v1078
        %v1080 = vand.u32 %v360, 4294901760
        %v1081 = vsub.f32 %v360, %v1080
        %v1082 = vand.u32 %v1081, 4294901760
        %v1083 = vsub.f32 %v1081, %v1082
        %v1084 = vand.u32 %v1083, 4294901760
        %1085 = vmatpush.msra.mxu0 %v1084
        %v1086 = vand.u32 %v359, 4294901760
        %v1087 = vsub.f32 %v359, %v1086
        %v1088 = vand.u32 %v1087, 4294901760
        %v1089 = vsub.f32 %v1087, %v1088
        %v1090 = vand.u32 %v1089, 4294901760
        %1091 = vmatpush.msra.mxu0 %v1090
        %v1092 = vand.u32 %v358, 4294901760
        %v1093 = vsub.f32 %v358, %v1092
        %v1094 = vand.u32 %v1093, 4294901760
        %v1095 = vsub.f32 %v1093, %v1094
        %v1096 = vand.u32 %v1095, 4294901760
        %1097 = vmatpush.msra.mxu0 %v1096
        %v1098 = vand.u32 %v357, 4294901760
        %v1099 = vsub.f32 %v357, %v1098
        %v1100 = vand.u32 %v1099, 4294901760
        %v1101 = vsub.f32 %v1099, %v1100
        %v1102 = vand.u32 %v1101, 4294901760
        %1103 = vmatpush.msra.mxu0 %v1102
        %v1104 = vand.u32 %v356, 4294901760
        %v1105 = vsub.f32 %v356, %v1104
        %v1106 = vand.u32 %v1105, 4294901760
        %v1107 = vsub.f32 %v1105, %v1106
        %v1108 = vand.u32 %v1107, 4294901760
        %1109 = vmatpush.msra.mxu0 %v1108
        %v1110 = vand.u32 %v355, 4294901760
        %v1111 = vsub.f32 %v355, %v1110
        %v1112 = vand.u32 %v1111, 4294901760
        %v1113 = vsub.f32 %v1111, %v1112
        %v1114 = vand.u32 %v1113, 4294901760
        %1115 = vmatpush.msra.mxu0 %v1114
        %v1116 = vand.u32 %v354, 4294901760
        %v1117 = vsub.f32 %v354, %v1116
        %v1118 = vand.u32 %v1117, 4294901760
        %v1119 = vsub.f32 %v1117, %v1118
        %v1120 = vand.u32 %v1119, 4294901760
        %1121 = vmatpush.msra.mxu0 %v1120
        %v1122 = vand.u32 %v353, 4294901760
        %v1123 = vsub.f32 %v353, %v1122
        %v1124 = vand.u32 %v1123, 4294901760
        %v1125 = vsub.f32 %v1123, %v1124
        %v1126 = vand.u32 %v1125, 4294901760
        %1127 = vmatpush.msra.mxu0 %v1126
        %v1128 = vand.u32 %v927, 4294901760
        %1129 = vmatmul.f32.gmra.mxu0 %v1128
        %v1130 = vpop.f32.mrf.mxu0
        %v1131 = vadd.f32 %v974, %v1130
        %v1132 = vand.u32 %v928, 4294901760
        %1133 = vmatmul.f32.gmra.mxu0 %v1132
        %v1134 = vpop.f32.mrf.mxu0
        %v1135 = vadd.f32 %v982, %v1134
        %v1136 = vand.u32 %v929, 4294901760
        %1137 = vmatmul.f32.gmra.mxu0 %v1136
        %v1138 = vpop.f32.mrf.mxu0
        %v1139 = vadd.f32 %v990, %v1138
        %v1140 = vand.u32 %v930, 4294901760
        %1141 = vmatmul.f32.gmra.mxu0 %v1140
        %v1142 = vpop.f32.mrf.mxu0
        %v1143 = vadd.f32 %v998, %v1142
        %v1144 = vand.u32 %v931, 4294901760
        %1145 = vmatmul.f32.gmra.mxu0 %v1144
        %v1146 = vpop.f32.mrf.mxu0
        %v1147 = vadd.f32 %v1006, %v1146
        %v1148 = vand.u32 %v932, 4294901760
        %1149 = vmatmul.f32.gmra.mxu0 %v1148
        %v1150 = vpop.f32.mrf.mxu0
        %v1151 = vadd.f32 %v1014, %v1150
        %v1152 = vand.u32 %v933, 4294901760
        %1153 = vmatmul.f32.gmra.mxu0 %v1152
        %v1154 = vpop.f32.mrf.mxu0
        %v1155 = vadd.f32 %v1022, %v1154
        %v1156 = vand.u32 %v934, 4294901760
        %1157 = vmatmul.f32.gmra.mxu0 %v1156
        %v1158 = vpop.f32.mrf.mxu0
        %v1159 = vadd.f32 %v1030, %v1158
        %1160 = vdwg.mxu0
        %v1161 = vand.u32 %v368, 4294901760
        %v1162 = vsub.f32 %v368, %v1161
        %1163 = vmatpush.msra.mxu0 %v1162
        %v1164 = vand.u32 %v367, 4294901760
        %v1165 = vsub.f32 %v367, %v1164
        %1166 = vmatpush.msra.mxu0 %v1165
        %v1167 = vand.u32 %v366, 4294901760
        %v1168 = vsub.f32 %v366, %v1167
        %1169 = vmatpush.msra.mxu0 %v1168
        %v1170 = vand.u32 %v365, 4294901760
        %v1171 = vsub.f32 %v365, %v1170
        %1172 = vmatpush.msra.mxu0 %v1171
        %v1173 = vand.u32 %v364, 4294901760
        %v1174 = vsub.f32 %v364, %v1173
        %1175 = vmatpush.msra.mxu0 %v1174
        %v1176 = vand.u32 %v363, 4294901760
        %v1177 = vsub.f32 %v363, %v1176
        %1178 = vmatpush.msra.mxu0 %v1177
        %v1179 = vand.u32 %v362, 4294901760
        %v1180 = vsub.f32 %v362, %v1179
        %1181 = vmatpush.msra.mxu0 %v1180
        %v1182 = vand.u32 %v361, 4294901760
        %v1183 = vsub.f32 %v361, %v1182
        %1184 = vmatpush.msra.mxu0 %v1183
        %v1185 = vand.u32 %v360, 4294901760
        %v1186 = vsub.f32 %v360, %v1185
        %1187 = vmatpush.msra.mxu0 %v1186
        %v1188 = vand.u32 %v359, 4294901760
        %v1189 = vsub.f32 %v359, %v1188
        %1190 = vmatpush.msra.mxu0 %v1189
        %v1191 = vand.u32 %v358, 4294901760
        %v1192 = vsub.f32 %v358, %v1191
        %1193 = vmatpush.msra.mxu0 %v1192
        %v1194 = vand.u32 %v357, 4294901760
        %v1195 = vsub.f32 %v357, %v1194
        %1196 = vmatpush.msra.mxu0 %v1195
        %v1197 = vand.u32 %v356, 4294901760
        %v1198 = vsub.f32 %v356, %v1197
        %1199 = vmatpush.msra.mxu0 %v1198
        %v1200 = vand.u32 %v355, 4294901760
        %v1201 = vsub.f32 %v355, %v1200
        %1202 = vmatpush.msra.mxu0 %v1201
        %v1203 = vand.u32 %v354, 4294901760
        %v1204 = vsub.f32 %v354, %v1203
        %1205 = vmatpush.msra.mxu0 %v1204
        %v1206 = vand.u32 %v353, 4294901760
        %v1207 = vsub.f32 %v353, %v1206
        %1208 = vmatpush.msra.mxu0 %v1207
        %v1209 = vand.u32 %v927, 4294901760
        %v1210 = vsub.f32 %v927, %v1209
        %1211 = vmatmul.f32.gmra.mxu0 %v1210
        %v1212 = vpop.f32.mrf.mxu0
        %v1213 = vadd.f32 %v1131, %v1212
        %v1214 = vand.u32 %v928, 4294901760
        %v1215 = vsub.f32 %v928, %v1214
        %1216 = vmatmul.f32.gmra.mxu0 %v1215
        %v1217 = vpop.f32.mrf.mxu0
        %v1218 = vadd.f32 %v1135, %v1217
        %v1219 = vand.u32 %v929, 4294901760
        %v1220 = vsub.f32 %v929, %v1219
        %1221 = vmatmul.f32.gmra.mxu0 %v1220
        %v1222 = vpop.f32.mrf.mxu0
        %v1223 = vadd.f32 %v1139, %v1222
        %v1224 = vand.u32 %v930, 4294901760
        %v1225 = vsub.f32 %v930, %v1224
        %1226 = vmatmul.f32.gmra.mxu0 %v1225
        %v1227 = vpop.f32.mrf.mxu0
        %v1228 = vadd.f32 %v1143, %v1227
        %v1229 = vand.u32 %v931, 4294901760
        %v1230 = vsub.f32 %v931, %v1229
        %1231 = vmatmul.f32.gmra.mxu0 %v1230
        %v1232 = vpop.f32.mrf.mxu0
        %v1233 = vadd.f32 %v1147, %v1232
        %v1234 = vand.u32 %v932, 4294901760
        %v1235 = vsub.f32 %v932, %v1234
        %1236 = vmatmul.f32.gmra.mxu0 %v1235
        %v1237 = vpop.f32.mrf.mxu0
        %v1238 = vadd.f32 %v1151, %v1237
        %v1239 = vand.u32 %v933, 4294901760
        %v1240 = vsub.f32 %v933, %v1239
        %1241 = vmatmul.f32.gmra.mxu0 %v1240
        %v1242 = vpop.f32.mrf.mxu0
        %v1243 = vadd.f32 %v1155, %v1242
        %v1244 = vand.u32 %v934, 4294901760
        %v1245 = vsub.f32 %v934, %v1244
        %1246 = vmatmul.f32.gmra.mxu0 %v1245
        %v1247 = vpop.f32.mrf.mxu0
        %v1248 = vadd.f32 %v1159, %v1247
        %1249 = vdwg.mxu0
        %v1250 = vand.u32 %v368, 4294901760
        %1251 = vmatpush.msra.mxu0 %v1250
        %v1252 = vand.u32 %v367, 4294901760
        %1253 = vmatpush.msra.mxu0 %v1252
        %v1254 = vand.u32 %v366, 4294901760
        %1255 = vmatpush.msra.mxu0 %v1254
        %v1256 = vand.u32 %v365, 4294901760
        %1257 = vmatpush.msra.mxu0 %v1256
        %v1258 = vand.u32 %v364, 4294901760
        %1259 = vmatpush.msra.mxu0 %v1258
        %v1260 = vand.u32 %v363, 4294901760
        %1261 = vmatpush.msra.mxu0 %v1260
        %v1262 = vand.u32 %v362, 4294901760
        %1263 = vmatpush.msra.mxu0 %v1262
        %v1264 = vand.u32 %v361, 4294901760
        %1265 = vmatpush.msra.mxu0 %v1264
        %v1266 = vand.u32 %v360, 4294901760
        %1267 = vmatpush.msra.mxu0 %v1266
        %v1268 = vand.u32 %v359, 4294901760
        %1269 = vmatpush.msra.mxu0 %v1268
        %v1270 = vand.u32 %v358, 4294901760
        %1271 = vmatpush.msra.mxu0 %v1270
        %v1272 = vand.u32 %v357, 4294901760
        %1273 = vmatpush.msra.mxu0 %v1272
        %v1274 = vand.u32 %v356, 4294901760
        %1275 = vmatpush.msra.mxu0 %v1274
        %v1276 = vand.u32 %v355, 4294901760
        %1277 = vmatpush.msra.mxu0 %v1276
        %v1278 = vand.u32 %v354, 4294901760
        %1279 = vmatpush.msra.mxu0 %v1278
        %v1280 = vand.u32 %v353, 4294901760
        %1281 = vmatpush.msra.mxu0 %v1280
        %v1282 = vand.u32 %v927, 4294901760
        %v1283 = vsub.f32 %v927, %v1282
        %v1284 = vand.u32 %v1283, 4294901760
        %1285 = vmatmul.f32.gmra.mxu0 %v1284
        %v1286 = vpop.f32.mrf.mxu0
        %v1287 = vadd.f32 %v1213, %v1286
        %v1288 = vand.u32 %v928, 4294901760
        %v1289 = vsub.f32 %v928, %v1288
        %v1290 = vand.u32 %v1289, 4294901760
        %1291 = vmatmul.f32.gmra.mxu0 %v1290
        %v1292 = vpop.f32.mrf.mxu0
        %v1293 = vadd.f32 %v1218, %v1292
        %v1294 = vand.u32 %v929, 4294901760
        %v1295 = vsub.f32 %v929, %v1294
        %v1296 = vand.u32 %v1295, 4294901760
        %1297 = vmatmul.f32.gmra.mxu0 %v1296
        %v1298 = vpop.f32.mrf.mxu0
        %v1299 = vadd.f32 %v1223, %v1298
        %v1300 = vand.u32 %v930, 4294901760
        %v1301 = vsub.f32 %v930, %v1300
        %v1302 = vand.u32 %v1301, 4294901760
        %1303 = vmatmul.f32.gmra.mxu0 %v1302
        %v1304 = vpop.f32.mrf.mxu0
        %v1305 = vadd.f32 %v1228, %v1304
        %v1306 = vand.u32 %v931, 4294901760
        %v1307 = vsub.f32 %v931, %v1306
        %v1308 = vand.u32 %v1307, 4294901760
        %1309 = vmatmul.f32.gmra.mxu0 %v1308
        %v1310 = vpop.f32.mrf.mxu0
        %v1311 = vadd.f32 %v1233, %v1310
        %v1312 = vand.u32 %v932, 4294901760
        %v1313 = vsub.f32 %v932, %v1312
        %v1314 = vand.u32 %v1313, 4294901760
        %1315 = vmatmul.f32.gmra.mxu0 %v1314
        %v1316 = vpop.f32.mrf.mxu0
        %v1317 = vadd.f32 %v1238, %v1316
        %v1318 = vand.u32 %v933, 4294901760
        %v1319 = vsub.f32 %v933, %v1318
        %v1320 = vand.u32 %v1319, 4294901760
        %1321 = vmatmul.f32.gmra.mxu0 %v1320
        %v1322 = vpop.f32.mrf.mxu0
        %v1323 = vadd.f32 %v1243, %v1322
        %v1324 = vand.u32 %v934, 4294901760
        %v1325 = vsub.f32 %v934, %v1324
        %v1326 = vand.u32 %v1325, 4294901760
        %1327 = vmatmul.f32.gmra.mxu0 %v1326
        %v1328 = vpop.f32.mrf.mxu0
        %v1329 = vadd.f32 %v1248, %v1328
        %1330 = vdwg.mxu0
        %v1331 = vand.u32 %v368, 4294901760
        %v1332 = vsub.f32 %v368, %v1331
        %v1333 = vand.u32 %v1332, 4294901760
        %1334 = vmatpush.msra.mxu0 %v1333
        %v1335 = vand.u32 %v367, 4294901760
        %v1336 = vsub.f32 %v367, %v1335
        %v1337 = vand.u32 %v1336, 4294901760
        %1338 = vmatpush.msra.mxu0 %v1337
        %v1339 = vand.u32 %v366, 4294901760
        %v1340 = vsub.f32 %v366, %v1339
        %v1341 = vand.u32 %v1340, 4294901760
        %1342 = vmatpush.msra.mxu0 %v1341
        %v1343 = vand.u32 %v365, 4294901760
        %v1344 = vsub.f32 %v365, %v1343
        %v1345 = vand.u32 %v1344, 4294901760
        %1346 = vmatpush.msra.mxu0 %v1345
        %v1347 = vand.u32 %v364, 4294901760
        %v1348 = vsub.f32 %v364, %v1347
        %v1349 = vand.u32 %v1348, 4294901760
        %1350 = vmatpush.msra.mxu0 %v1349
        %v1351 = vand.u32 %v363, 4294901760
        %v1352 = vsub.f32 %v363, %v1351
        %v1353 = vand.u32 %v1352, 4294901760
        %1354 = vmatpush.msra.mxu0 %v1353
        %v1355 = vand.u32 %v362, 4294901760
        %v1356 = vsub.f32 %v362, %v1355
        %v1357 = vand.u32 %v1356, 4294901760
        %1358 = vmatpush.msra.mxu0 %v1357
        %v1359 = vand.u32 %v361, 4294901760
        %v1360 = vsub.f32 %v361, %v1359
        %v1361 = vand.u32 %v1360, 4294901760
        %1362 = vmatpush.msra.mxu0 %v1361
        %v1363 = vand.u32 %v360, 4294901760
        %v1364 = vsub.f32 %v360, %v1363
        %v1365 = vand.u32 %v1364, 4294901760
        %1366 = vmatpush.msra.mxu0 %v1365
        %v1367 = vand.u32 %v359, 4294901760
        %v1368 = vsub.f32 %v359, %v1367
        %v1369 = vand.u32 %v1368, 4294901760
        %1370 = vmatpush.msra.mxu0 %v1369
        %v1371 = vand.u32 %v358, 4294901760
        %v1372 = vsub.f32 %v358, %v1371
        %v1373 = vand.u32 %v1372, 4294901760
        %1374 = vmatpush.msra.mxu0 %v1373
        %v1375 = vand.u32 %v357, 4294901760
        %v1376 = vsub.f32 %v357, %v1375
        %v1377 = vand.u32 %v1376, 4294901760
        %1378 = vmatpush.msra.mxu0 %v1377
        %v1379 = vand.u32 %v356, 4294901760
        %v1380 = vsub.f32 %v356, %v1379
        %v1381 = vand.u32 %v1380, 4294901760
        %1382 = vmatpush.msra.mxu0 %v1381
        %v1383 = vand.u32 %v355, 4294901760
        %v1384 = vsub.f32 %v355, %v1383
        %v1385 = vand.u32 %v1384, 4294901760
        %1386 = vmatpush.msra.mxu0 %v1385
        %v1387 = vand.u32 %v354, 4294901760
        %v1388 = vsub.f32 %v354, %v1387
        %v1389 = vand.u32 %v1388, 4294901760
        %1390 = vmatpush.msra.mxu0 %v1389
        %v1391 = vand.u32 %v353, 4294901760
        %v1392 = vsub.f32 %v353, %v1391
        %v1393 = vand.u32 %v1392, 4294901760
        %1394 = vmatpush.msra.mxu0 %v1393
        %v1395 = vand.u32 %v927, 4294901760
        %1396 = vmatmul.f32.gmra.mxu0 %v1395
        %v1397 = vpop.f32.mrf.mxu0
        %v1398 = vadd.f32 %v1287, %v1397
        %v1399 = vand.u32 %v928, 4294901760
        %1400 = vmatmul.f32.gmra.mxu0 %v1399
        %v1401 = vpop.f32.mrf.mxu0
        %v1402 = vadd.f32 %v1293, %v1401
        %v1403 = vand.u32 %v929, 4294901760
        %1404 = vmatmul.f32.gmra.mxu0 %v1403
        %v1405 = vpop.f32.mrf.mxu0
        %v1406 = vadd.f32 %v1299, %v1405
        %v1407 = vand.u32 %v930, 4294901760
        %1408 = vmatmul.f32.gmra.mxu0 %v1407
        %v1409 = vpop.f32.mrf.mxu0
        %v1410 = vadd.f32 %v1305, %v1409
        %v1411 = vand.u32 %v931, 4294901760
        %1412 = vmatmul.f32.gmra.mxu0 %v1411
        %v1413 = vpop.f32.mrf.mxu0
        %v1414 = vadd.f32 %v1311, %v1413
        %v1415 = vand.u32 %v932, 4294901760
        %1416 = vmatmul.f32.gmra.mxu0 %v1415
        %v1417 = vpop.f32.mrf.mxu0
        %v1418 = vadd.f32 %v1317, %v1417
        %v1419 = vand.u32 %v933, 4294901760
        %1420 = vmatmul.f32.gmra.mxu0 %v1419
        %v1421 = vpop.f32.mrf.mxu0
        %v1422 = vadd.f32 %v1323, %v1421
        %v1423 = vand.u32 %v934, 4294901760
        %1424 = vmatmul.f32.gmra.mxu0 %v1423
        %v1425 = vpop.f32.mrf.mxu0
        %v1426 = vadd.f32 %v1329, %v1425
        %1427 = vdwg.mxu0
        %v1428 = vand.u32 %v368, 4294901760
        %1429 = vmatpush.msra.mxu0 %v1428
        %v1430 = vand.u32 %v367, 4294901760
        %1431 = vmatpush.msra.mxu0 %v1430
        %v1432 = vand.u32 %v366, 4294901760
        %1433 = vmatpush.msra.mxu0 %v1432
        %v1434 = vand.u32 %v365, 4294901760
        %1435 = vmatpush.msra.mxu0 %v1434
        %v1436 = vand.u32 %v364, 4294901760
        %1437 = vmatpush.msra.mxu0 %v1436
        %v1438 = vand.u32 %v363, 4294901760
        %1439 = vmatpush.msra.mxu0 %v1438
        %v1440 = vand.u32 %v362, 4294901760
        %1441 = vmatpush.msra.mxu0 %v1440
        %v1442 = vand.u32 %v361, 4294901760
        %1443 = vmatpush.msra.mxu0 %v1442
        %v1444 = vand.u32 %v360, 4294901760
        %1445 = vmatpush.msra.mxu0 %v1444
        %v1446 = vand.u32 %v359, 4294901760
        %1447 = vmatpush.msra.mxu0 %v1446
        %v1448 = vand.u32 %v358, 4294901760
        %1449 = vmatpush.msra.mxu0 %v1448
        %v1450 = vand.u32 %v357, 4294901760
        %1451 = vmatpush.msra.mxu0 %v1450
        %v1452 = vand.u32 %v356, 4294901760
        %1453 = vmatpush.msra.mxu0 %v1452
        %v1454 = vand.u32 %v355, 4294901760
        %1455 = vmatpush.msra.mxu0 %v1454
        %v1456 = vand.u32 %v354, 4294901760
        %1457 = vmatpush.msra.mxu0 %v1456
        %v1458 = vand.u32 %v353, 4294901760
        %1459 = vmatpush.msra.mxu0 %v1458
        %v1460 = vand.u32 %v927, 4294901760
        %1461 = vmatmul.f32.gmra.mxu0 %v1460
        %v1462 = vpop.f32.mrf.mxu0
        %v1463 = vadd.f32 %v1398, %v1462
        %v1464 = vand.u32 %v928, 4294901760
        %1465 = vmatmul.f32.gmra.mxu0 %v1464
        %v1466 = vpop.f32.mrf.mxu0
        %v1467 = vadd.f32 %v1402, %v1466
        %v1468 = vand.u32 %v929, 4294901760
        %1469 = vmatmul.f32.gmra.mxu0 %v1468
        %v1470 = vpop.f32.mrf.mxu0
        %v1471 = vadd.f32 %v1406, %v1470
        %v1472 = vand.u32 %v930, 4294901760
        %1473 = vmatmul.f32.gmra.mxu0 %v1472
        %v1474 = vpop.f32.mrf.mxu0
        %v1475 = vadd.f32 %v1410, %v1474
        %v1476 = vand.u32 %v931, 4294901760
        %1477 = vmatmul.f32.gmra.mxu0 %v1476
        %v1478 = vpop.f32.mrf.mxu0
        %v1479 = vadd.f32 %v1414, %v1478
        %v1480 = vand.u32 %v932, 4294901760
        %1481 = vmatmul.f32.gmra.mxu0 %v1480
        %v1482 = vpop.f32.mrf.mxu0
        %v1483 = vadd.f32 %v1418, %v1482
        %v1484 = vand.u32 %v933, 4294901760
        %1485 = vmatmul.f32.gmra.mxu0 %v1484
        %v1486 = vpop.f32.mrf.mxu0
        %v1487 = vadd.f32 %v1422, %v1486
        %v1488 = vand.u32 %v934, 4294901760
        %1489 = vmatmul.f32.gmra.mxu0 %v1488
        %v1490 = vpop.f32.mrf.mxu0
        %v1491 = vadd.f32 %v1426, %v1490
        %1492 = vdwg.mxu0
        %v1493 = vmul.f32 %v897, 0.0625
        %v1494 = vmul.f32 %v901, 0.0625
        %v1495 = vmul.f32 %v905, 0.0625
        %v1496 = vmul.f32 %v909, 0.0625
        %v1497 = vmul.f32 %v913, 0.0625
        %v1498 = vmul.f32 %v917, 0.0625
        %v1499 = vmul.f32 %v921, 0.0625
        %v1500 = vmul.f32 %v925, 0.0625
        %v1501 = vmul.f32 %v1463, 0.0625
        %v1502 = vmul.f32 %v1467, 0.0625
        %v1503 = vmul.f32 %v1471, 0.0625
        %v1504 = vmul.f32 %v1475, 0.0625
        %v1505 = vmul.f32 %v1479, 0.0625
        %v1506 = vmul.f32 %v1483, 0.0625
        %v1507 = vmul.f32 %v1487, 0.0625
        %v1508 = vmul.f32 %v1491, 0.0625
        %v1509 = vmul.f32 %v1493, %v1493
        %v1510 = vmul.f32 %v1494, %v1494
        %v1511 = vmul.f32 %v1495, %v1495
        %v1512 = vmul.f32 %v1496, %v1496
        %v1513 = vmul.f32 %v1497, %v1497
        %v1514 = vmul.f32 %v1498, %v1498
        %v1515 = vmul.f32 %v1499, %v1499
        %v1516 = vmul.f32 %v1500, %v1500
        %v1517 = vsub.f32 %v1501, %v1509
        %v1518 = vsub.f32 %v1502, %v1510
        %v1519 = vsub.f32 %v1503, %v1511
        %v1520 = vsub.f32 %v1504, %v1512
        %v1521 = vsub.f32 %v1505, %v1513
        %v1522 = vsub.f32 %v1506, %v1514
        %v1523 = vsub.f32 %v1507, %v1515
        %v1524 = vsub.f32 %v1508, %v1516
        %v1525 = vmax.f32 %v1517, 0.0
        %v1526 = vmax.f32 %v1518, 0.0
        %v1527 = vmax.f32 %v1519, 0.0
        %v1528 = vmax.f32 %v1520, 0.0
        %v1529 = vmax.f32 %v1521, 0.0
        %v1530 = vmax.f32 %v1522, 0.0
        %v1531 = vmax.f32 %v1523, 0.0
        %v1532 = vmax.f32 %v1524, 0.0
        %v1533 = vadd.f32 %v1525, 1e-05
        %v1534 = vadd.f32 %v1526, 1e-05
        %v1535 = vadd.f32 %v1527, 1e-05
        %v1536 = vadd.f32 %v1528, 1e-05
        %v1537 = vadd.f32 %v1529, 1e-05
        %v1538 = vadd.f32 %v1530, 1e-05
        %v1539 = vadd.f32 %v1531, 1e-05
        %v1540 = vadd.f32 %v1532, 1e-05
        %v1541 = vrsqrt.pop %v1533
        %v1542 = vmul.f32 %v1541, %v1533
        %v1543 = vmul.f32 %v1542, %v1541
        %v1544 = vmul.f32 0.5, %v1543
        %v1545 = vsub.f32 1.5, %v1544
        %v1546 = vmul.f32 %v1541, %v1545
        %vm1547 = vweird.f32 %v1533
        %vm1548 = vweird.f32 %v1541
        %vm1549 = vmor %vm1547, %vm1548
        %v1550 = vsel %vm1549, %v1541, %v1546
        %v1551 = vrsqrt.pop %v1534
        %v1552 = vmul.f32 %v1551, %v1534
        %v1553 = vmul.f32 %v1552, %v1551
        %v1554 = vmul.f32 0.5, %v1553
        %v1555 = vsub.f32 1.5, %v1554
        %v1556 = vmul.f32 %v1551, %v1555
        %vm1557 = vweird.f32 %v1534
        %vm1558 = vweird.f32 %v1551
        %vm1559 = vmor %vm1557, %vm1558
        %v1560 = vsel %vm1559, %v1551, %v1556
        %v1561 = vrsqrt.pop %v1535
        %v1562 = vmul.f32 %v1561, %v1535
        %v1563 = vmul.f32 %v1562, %v1561
        %v1564 = vmul.f32 0.5, %v1563
        %v1565 = vsub.f32 1.5, %v1564
        %v1566 = vmul.f32 %v1561, %v1565
        %vm1567 = vweird.f32 %v1535
        %vm1568 = vweird.f32 %v1561
        %vm1569 = vmor %vm1567, %vm1568
        %v1570 = vsel %vm1569, %v1561, %v1566
        %v1571 = vrsqrt.pop %v1536
        %v1572 = vmul.f32 %v1571, %v1536
        %v1573 = vmul.f32 %v1572, %v1571
        %v1574 = vmul.f32 0.5, %v1573
        %v1575 = vsub.f32 1.5, %v1574
        %v1576 = vmul.f32 %v1571, %v1575
        %vm1577 = vweird.f32 %v1536
        %vm1578 = vweird.f32 %v1571
        %vm1579 = vmor %vm1577, %vm1578
        %v1580 = vsel %vm1579, %v1571, %v1576
        %v1581 = vrsqrt.pop %v1537
        %v1582 = vmul.f32 %v1581, %v1537
        %v1583 = vmul.f32 %v1582, %v1581
        %v1584 = vmul.f32 0.5, %v1583
        %v1585 = vsub.f32 1.5, %v1584
        %v1586 = vmul.f32 %v1581, %v1585
        %vm1587 = vweird.f32 %v1537
        %vm1588 = vweird.f32 %v1581
        %vm1589 = vmor %vm1587, %vm1588
        %v1590 = vsel %vm1589, %v1581, %v1586
        %v1591 = vrsqrt.pop %v1538
        %v1592 = vmul.f32 %v1591, %v1538
        %v1593 = vmul.f32 %v1592, %v1591
        %v1594 = vmul.f32 0.5, %v1593
        %v1595 = vsub.f32 1.5, %v1594
        %v1596 = vmul.f32 %v1591, %v1595
        %vm1597 = vweird.f32 %v1538
        %vm1598 = vweird.f32 %v1591
        %vm1599 = vmor %vm1597, %vm1598
        %v1600 = vsel %vm1599, %v1591, %v1596
        %v1601 = vrsqrt.pop %v1539
        %v1602 = vmul.f32 %v1601, %v1539
        %v1603 = vmul.f32 %v1602, %v1601
        %v1604 = vmul.f32 0.5, %v1603
        %v1605 = vsub.f32 1.5, %v1604
        %v1606 = vmul.f32 %v1601, %v1605
        %vm1607 = vweird.f32 %v1539
        %vm1608 = vweird.f32 %v1601
        %vm1609 = vmor %vm1607, %vm1608
        %v1610 = vsel %vm1609, %v1601, %v1606
        %v1611 = vrsqrt.pop %v1540
        %v1612 = vmul.f32 %v1611, %v1540
        %v1613 = vmul.f32 %v1612, %v1611
        %v1614 = vmul.f32 0.5, %v1613
        %v1615 = vsub.f32 1.5, %v1614
        %v1616 = vmul.f32 %v1611, %v1615
        %vm1617 = vweird.f32 %v1540
        %vm1618 = vweird.f32 %v1611
        %vm1619 = vmor %vm1617, %vm1618
        %v1620 = vsel %vm1619, %v1611, %v1616
        %v1621 = vld [vmem:[%s2] sm:$0xff]
        %vm1622 = vcmask 64512
        %v1624 = vsel %vm1622, %v1550, 0
        %v1627 = vsel %vm1622, %v1560, 0
        %v1630 = vsel %vm1622, %v1570, 0
        %v1633 = vsel %vm1622, %v1580, 0
        %v1636 = vsel %vm1622, %v1590, 0
        %v1639 = vsel %vm1622, %v1600, 0
        %v1642 = vsel %vm1622, %v1610, 0
        %v1645 = vsel %vm1622, %v1620, 0
        %1647 = vmatpush.msra.mxu0 0.0
        %1648 = vmatpush.msra.mxu0 0.0
        %1649 = vmatpush.msra.mxu0 0.0
        %1650 = vmatpush.msra.mxu0 0.0
        %1651 = vmatpush.msra.mxu0 0.0
        %1652 = vmatpush.msra.mxu0 0.0
        %1653 = vmatpush.msra.mxu0 0.0
        %1654 = vmatpush.msra.mxu0 0.0
        %1655 = vmatpush.msra.mxu0 0.0
        %1656 = vmatpush.msra.mxu0 0.0
        %1657 = vmatpush.msra.mxu0 0.0
        %1658 = vmatpush.msra.mxu0 0.0
        %1659 = vmatpush.msra.mxu0 0.0
        %1660 = vmatpush.msra.mxu0 0.0
        %1661 = vmatpush.msra.mxu0 0.0
        %v1662 = vand.u32 %v1621, 4294901760
        %1663 = vmatpush.msra.mxu0 %v1662
        %v1664 = vand.u32 %v1624, 4294901760
        %v1665 = vsub.f32 %v1624, %v1664
        %v1666 = vand.u32 %v1665, 4294901760
        %v1667 = vsub.f32 %v1665, %v1666
        %v1668 = vand.u32 %v1667, 4294901760
        %1669 = vmatmul.f32.gmra.mxu0 %v1668
        %v1670 = vpop.f32.mrf.mxu0
        %v1671 = vadd.f32 0.0, %v1670
        %v1672 = vand.u32 %v1627, 4294901760
        %v1673 = vsub.f32 %v1627, %v1672
        %v1674 = vand.u32 %v1673, 4294901760
        %v1675 = vsub.f32 %v1673, %v1674
        %v1676 = vand.u32 %v1675, 4294901760
        %1677 = vmatmul.f32.gmra.mxu0 %v1676
        %v1678 = vpop.f32.mrf.mxu0
        %v1679 = vadd.f32 0.0, %v1678
        %v1680 = vand.u32 %v1630, 4294901760
        %v1681 = vsub.f32 %v1630, %v1680
        %v1682 = vand.u32 %v1681, 4294901760
        %v1683 = vsub.f32 %v1681, %v1682
        %v1684 = vand.u32 %v1683, 4294901760
        %1685 = vmatmul.f32.gmra.mxu0 %v1684
        %v1686 = vpop.f32.mrf.mxu0
        %v1687 = vadd.f32 0.0, %v1686
        %v1688 = vand.u32 %v1633, 4294901760
        %v1689 = vsub.f32 %v1633, %v1688
        %v1690 = vand.u32 %v1689, 4294901760
        %v1691 = vsub.f32 %v1689, %v1690
        %v1692 = vand.u32 %v1691, 4294901760
        %1693 = vmatmul.f32.gmra.mxu0 %v1692
        %v1694 = vpop.f32.mrf.mxu0
        %v1695 = vadd.f32 0.0, %v1694
        %v1696 = vand.u32 %v1636, 4294901760
        %v1697 = vsub.f32 %v1636, %v1696
        %v1698 = vand.u32 %v1697, 4294901760
        %v1699 = vsub.f32 %v1697, %v1698
        %v1700 = vand.u32 %v1699, 4294901760
        %1701 = vmatmul.f32.gmra.mxu0 %v1700
        %v1702 = vpop.f32.mrf.mxu0
        %v1703 = vadd.f32 0.0, %v1702
        %v1704 = vand.u32 %v1639, 4294901760
        %v1705 = vsub.f32 %v1639, %v1704
        %v1706 = vand.u32 %v1705, 4294901760
        %v1707 = vsub.f32 %v1705, %v1706
        %v1708 = vand.u32 %v1707, 4294901760
        %1709 = vmatmul.f32.gmra.mxu0 %v1708
        %v1710 = vpop.f32.mrf.mxu0
        %v1711 = vadd.f32 0.0, %v1710
        %v1712 = vand.u32 %v1642, 4294901760
        %v1713 = vsub.f32 %v1642, %v1712
        %v1714 = vand.u32 %v1713, 4294901760
        %v1715 = vsub.f32 %v1713, %v1714
        %v1716 = vand.u32 %v1715, 4294901760
        %1717 = vmatmul.f32.gmra.mxu0 %v1716
        %v1718 = vpop.f32.mrf.mxu0
        %v1719 = vadd.f32 0.0, %v1718
        %v1720 = vand.u32 %v1645, 4294901760
        %v1721 = vsub.f32 %v1645, %v1720
        %v1722 = vand.u32 %v1721, 4294901760
        %v1723 = vsub.f32 %v1721, %v1722
        %v1724 = vand.u32 %v1723, 4294901760
        %1725 = vmatmul.f32.gmra.mxu0 %v1724
        %v1726 = vpop.f32.mrf.mxu0
        %v1727 = vadd.f32 0.0, %v1726
        %1728 = vdwg.mxu0
        %1729 = vmatpush.msra.mxu0 0.0
        %1730 = vmatpush.msra.mxu0 0.0
        %1731 = vmatpush.msra.mxu0 0.0
        %1732 = vmatpush.msra.mxu0 0.0
        %1733 = vmatpush.msra.mxu0 0.0
        %1734 = vmatpush.msra.mxu0 0.0
        %1735 = vmatpush.msra.mxu0 0.0
        %1736 = vmatpush.msra.mxu0 0.0
        %1737 = vmatpush.msra.mxu0 0.0
        %1738 = vmatpush.msra.mxu0 0.0
        %1739 = vmatpush.msra.mxu0 0.0
        %1740 = vmatpush.msra.mxu0 0.0
        %1741 = vmatpush.msra.mxu0 0.0
        %1742 = vmatpush.msra.mxu0 0.0
        %1743 = vmatpush.msra.mxu0 0.0
        %v1744 = vand.u32 %v1621, 4294901760
        %v1745 = vsub.f32 %v1621, %v1744
        %v1746 = vand.u32 %v1745, 4294901760
        %v1747 = vsub.f32 %v1745, %v1746
        %v1748 = vand.u32 %v1747, 4294901760
        %1749 = vmatpush.msra.mxu0 %v1748
        %v1750 = vand.u32 %v1624, 4294901760
        %1751 = vmatmul.f32.gmra.mxu0 %v1750
        %v1752 = vpop.f32.mrf.mxu0
        %v1753 = vadd.f32 %v1671, %v1752
        %v1754 = vand.u32 %v1627, 4294901760
        %1755 = vmatmul.f32.gmra.mxu0 %v1754
        %v1756 = vpop.f32.mrf.mxu0
        %v1757 = vadd.f32 %v1679, %v1756
        %v1758 = vand.u32 %v1630, 4294901760
        %1759 = vmatmul.f32.gmra.mxu0 %v1758
        %v1760 = vpop.f32.mrf.mxu0
        %v1761 = vadd.f32 %v1687, %v1760
        %v1762 = vand.u32 %v1633, 4294901760
        %1763 = vmatmul.f32.gmra.mxu0 %v1762
        %v1764 = vpop.f32.mrf.mxu0
        %v1765 = vadd.f32 %v1695, %v1764
        %v1766 = vand.u32 %v1636, 4294901760
        %1767 = vmatmul.f32.gmra.mxu0 %v1766
        %v1768 = vpop.f32.mrf.mxu0
        %v1769 = vadd.f32 %v1703, %v1768
        %v1770 = vand.u32 %v1639, 4294901760
        %1771 = vmatmul.f32.gmra.mxu0 %v1770
        %v1772 = vpop.f32.mrf.mxu0
        %v1773 = vadd.f32 %v1711, %v1772
        %v1774 = vand.u32 %v1642, 4294901760
        %1775 = vmatmul.f32.gmra.mxu0 %v1774
        %v1776 = vpop.f32.mrf.mxu0
        %v1777 = vadd.f32 %v1719, %v1776
        %v1778 = vand.u32 %v1645, 4294901760
        %1779 = vmatmul.f32.gmra.mxu0 %v1778
        %v1780 = vpop.f32.mrf.mxu0
        %v1781 = vadd.f32 %v1727, %v1780
        %1782 = vdwg.mxu0
        %1783 = vmatpush.msra.mxu0 0.0
        %1784 = vmatpush.msra.mxu0 0.0
        %1785 = vmatpush.msra.mxu0 0.0
        %1786 = vmatpush.msra.mxu0 0.0
        %1787 = vmatpush.msra.mxu0 0.0
        %1788 = vmatpush.msra.mxu0 0.0
        %1789 = vmatpush.msra.mxu0 0.0
        %1790 = vmatpush.msra.mxu0 0.0
        %1791 = vmatpush.msra.mxu0 0.0
        %1792 = vmatpush.msra.mxu0 0.0
        %1793 = vmatpush.msra.mxu0 0.0
        %1794 = vmatpush.msra.mxu0 0.0
        %1795 = vmatpush.msra.mxu0 0.0
        %1796 = vmatpush.msra.mxu0 0.0
        %1797 = vmatpush.msra.mxu0 0.0
        %v1798 = vand.u32 %v1621, 4294901760
        %v1799 = vsub.f32 %v1621, %v1798
        %1800 = vmatpush.msra.mxu0 %v1799
        %v1801 = vand.u32 %v1624, 4294901760
        %v1802 = vsub.f32 %v1624, %v1801
        %1803 = vmatmul.f32.gmra.mxu0 %v1802
        %v1804 = vpop.f32.mrf.mxu0
        %v1805 = vadd.f32 %v1753, %v1804
        %v1806 = vand.u32 %v1627, 4294901760
        %v1807 = vsub.f32 %v1627, %v1806
        %1808 = vmatmul.f32.gmra.mxu0 %v1807
        %v1809 = vpop.f32.mrf.mxu0
        %v1810 = vadd.f32 %v1757, %v1809
        %v1811 = vand.u32 %v1630, 4294901760
        %v1812 = vsub.f32 %v1630, %v1811
        %1813 = vmatmul.f32.gmra.mxu0 %v1812
        %v1814 = vpop.f32.mrf.mxu0
        %v1815 = vadd.f32 %v1761, %v1814
        %v1816 = vand.u32 %v1633, 4294901760
        %v1817 = vsub.f32 %v1633, %v1816
        %1818 = vmatmul.f32.gmra.mxu0 %v1817
        %v1819 = vpop.f32.mrf.mxu0
        %v1820 = vadd.f32 %v1765, %v1819
        %v1821 = vand.u32 %v1636, 4294901760
        %v1822 = vsub.f32 %v1636, %v1821
        %1823 = vmatmul.f32.gmra.mxu0 %v1822
        %v1824 = vpop.f32.mrf.mxu0
        %v1825 = vadd.f32 %v1769, %v1824
        %v1826 = vand.u32 %v1639, 4294901760
        %v1827 = vsub.f32 %v1639, %v1826
        %1828 = vmatmul.f32.gmra.mxu0 %v1827
        %v1829 = vpop.f32.mrf.mxu0
        %v1830 = vadd.f32 %v1773, %v1829
        %v1831 = vand.u32 %v1642, 4294901760
        %v1832 = vsub.f32 %v1642, %v1831
        %1833 = vmatmul.f32.gmra.mxu0 %v1832
        %v1834 = vpop.f32.mrf.mxu0
        %v1835 = vadd.f32 %v1777, %v1834
        %v1836 = vand.u32 %v1645, 4294901760
        %v1837 = vsub.f32 %v1645, %v1836
        %1838 = vmatmul.f32.gmra.mxu0 %v1837
        %v1839 = vpop.f32.mrf.mxu0
        %v1840 = vadd.f32 %v1781, %v1839
        %1841 = vdwg.mxu0
        %1842 = vmatpush.msra.mxu0 0.0
        %1843 = vmatpush.msra.mxu0 0.0
        %1844 = vmatpush.msra.mxu0 0.0
        %1845 = vmatpush.msra.mxu0 0.0
        %1846 = vmatpush.msra.mxu0 0.0
        %1847 = vmatpush.msra.mxu0 0.0
        %1848 = vmatpush.msra.mxu0 0.0
        %1849 = vmatpush.msra.mxu0 0.0
        %1850 = vmatpush.msra.mxu0 0.0
        %1851 = vmatpush.msra.mxu0 0.0
        %1852 = vmatpush.msra.mxu0 0.0
        %1853 = vmatpush.msra.mxu0 0.0
        %1854 = vmatpush.msra.mxu0 0.0
        %1855 = vmatpush.msra.mxu0 0.0
        %1856 = vmatpush.msra.mxu0 0.0
        %v1857 = vand.u32 %v1621, 4294901760
        %1858 = vmatpush.msra.mxu0 %v1857
        %v1859 = vand.u32 %v1624, 4294901760
        %v1860 = vsub.f32 %v1624, %v1859
        %v1861 = vand.u32 %v1860, 4294901760
        %1862 = vmatmul.f32.gmra.mxu0 %v1861
        %v1863 = vpop.f32.mrf.mxu0
        %v1864 = vadd.f32 %v1805, %v1863
        %v1865 = vand.u32 %v1627, 4294901760
        %v1866 = vsub.f32 %v1627, %v1865
        %v1867 = vand.u32 %v1866, 4294901760
        %1868 = vmatmul.f32.gmra.mxu0 %v1867
        %v1869 = vpop.f32.mrf.mxu0
        %v1870 = vadd.f32 %v1810, %v1869
        %v1871 = vand.u32 %v1630, 4294901760
        %v1872 = vsub.f32 %v1630, %v1871
        %v1873 = vand.u32 %v1872, 4294901760
        %1874 = vmatmul.f32.gmra.mxu0 %v1873
        %v1875 = vpop.f32.mrf.mxu0
        %v1876 = vadd.f32 %v1815, %v1875
        %v1877 = vand.u32 %v1633, 4294901760
        %v1878 = vsub.f32 %v1633, %v1877
        %v1879 = vand.u32 %v1878, 4294901760
        %1880 = vmatmul.f32.gmra.mxu0 %v1879
        %v1881 = vpop.f32.mrf.mxu0
        %v1882 = vadd.f32 %v1820, %v1881
        %v1883 = vand.u32 %v1636, 4294901760
        %v1884 = vsub.f32 %v1636, %v1883
        %v1885 = vand.u32 %v1884, 4294901760
        %1886 = vmatmul.f32.gmra.mxu0 %v1885
        %v1887 = vpop.f32.mrf.mxu0
        %v1888 = vadd.f32 %v1825, %v1887
        %v1889 = vand.u32 %v1639, 4294901760
        %v1890 = vsub.f32 %v1639, %v1889
        %v1891 = vand.u32 %v1890, 4294901760
        %1892 = vmatmul.f32.gmra.mxu0 %v1891
        %v1893 = vpop.f32.mrf.mxu0
        %v1894 = vadd.f32 %v1830, %v1893
        %v1895 = vand.u32 %v1642, 4294901760
        %v1896 = vsub.f32 %v1642, %v1895
        %v1897 = vand.u32 %v1896, 4294901760
        %1898 = vmatmul.f32.gmra.mxu0 %v1897
        %v1899 = vpop.f32.mrf.mxu0
        %v1900 = vadd.f32 %v1835, %v1899
        %v1901 = vand.u32 %v1645, 4294901760
        %v1902 = vsub.f32 %v1645, %v1901
        %v1903 = vand.u32 %v1902, 4294901760
        %1904 = vmatmul.f32.gmra.mxu0 %v1903
        %v1905 = vpop.f32.mrf.mxu0
        %v1906 = vadd.f32 %v1840, %v1905
        %1907 = vdwg.mxu0
        %1908 = vmatpush.msra.mxu0 0.0
        %1909 = vmatpush.msra.mxu0 0.0
        %1910 = vmatpush.msra.mxu0 0.0
        %1911 = vmatpush.msra.mxu0 0.0
        %1912 = vmatpush.msra.mxu0 0.0
        %1913 = vmatpush.msra.mxu0 0.0
        %1914 = vmatpush.msra.mxu0 0.0
        %1915 = vmatpush.msra.mxu0 0.0
        %1916 = vmatpush.msra.mxu0 0.0
        %1917 = vmatpush.msra.mxu0 0.0
        %1918 = vmatpush.msra.mxu0 0.0
        %1919 = vmatpush.msra.mxu0 0.0
        %1920 = vmatpush.msra.mxu0 0.0
        %1921 = vmatpush.msra.mxu0 0.0
        %1922 = vmatpush.msra.mxu0 0.0
        %v1923 = vand.u32 %v1621, 4294901760
        %v1924 = vsub.f32 %v1621, %v1923
        %v1925 = vand.u32 %v1924, 4294901760
        %1926 = vmatpush.msra.mxu0 %v1925
        %v1927 = vand.u32 %v1624, 4294901760
        %1928 = vmatmul.f32.gmra.mxu0 %v1927
        %v1929 = vpop.f32.mrf.mxu0
        %v1930 = vadd.f32 %v1864, %v1929
        %v1931 = vand.u32 %v1627, 4294901760
        %1932 = vmatmul.f32.gmra.mxu0 %v1931
        %v1933 = vpop.f32.mrf.mxu0
        %v1934 = vadd.f32 %v1870, %v1933
        %v1935 = vand.u32 %v1630, 4294901760
        %1936 = vmatmul.f32.gmra.mxu0 %v1935
        %v1937 = vpop.f32.mrf.mxu0
        %v1938 = vadd.f32 %v1876, %v1937
        %v1939 = vand.u32 %v1633, 4294901760
        %1940 = vmatmul.f32.gmra.mxu0 %v1939
        %v1941 = vpop.f32.mrf.mxu0
        %v1942 = vadd.f32 %v1882, %v1941
        %v1943 = vand.u32 %v1636, 4294901760
        %1944 = vmatmul.f32.gmra.mxu0 %v1943
        %v1945 = vpop.f32.mrf.mxu0
        %v1946 = vadd.f32 %v1888, %v1945
        %v1947 = vand.u32 %v1639, 4294901760
        %1948 = vmatmul.f32.gmra.mxu0 %v1947
        %v1949 = vpop.f32.mrf.mxu0
        %v1950 = vadd.f32 %v1894, %v1949
        %v1951 = vand.u32 %v1642, 4294901760
        %1952 = vmatmul.f32.gmra.mxu0 %v1951
        %v1953 = vpop.f32.mrf.mxu0
        %v1954 = vadd.f32 %v1900, %v1953
        %v1955 = vand.u32 %v1645, 4294901760
        %1956 = vmatmul.f32.gmra.mxu0 %v1955
        %v1957 = vpop.f32.mrf.mxu0
        %v1958 = vadd.f32 %v1906, %v1957
        %1959 = vdwg.mxu0
        %1960 = vmatpush.msra.mxu0 0.0
        %1961 = vmatpush.msra.mxu0 0.0
        %1962 = vmatpush.msra.mxu0 0.0
        %1963 = vmatpush.msra.mxu0 0.0
        %1964 = vmatpush.msra.mxu0 0.0
        %1965 = vmatpush.msra.mxu0 0.0
        %1966 = vmatpush.msra.mxu0 0.0
        %1967 = vmatpush.msra.mxu0 0.0
        %1968 = vmatpush.msra.mxu0 0.0
        %1969 = vmatpush.msra.mxu0 0.0
        %1970 = vmatpush.msra.mxu0 0.0
        %1971 = vmatpush.msra.mxu0 0.0
        %1972 = vmatpush.msra.mxu0 0.0
        %1973 = vmatpush.msra.mxu0 0.0
        %1974 = vmatpush.msra.mxu0 0.0
        %v1975 = vand.u32 %v1621, 4294901760
        %1976 = vmatpush.msra.mxu0 %v1975
        %v1977 = vand.u32 %v1624, 4294901760
        %1978 = vmatmul.f32.gmra.mxu0 %v1977
        %v1979 = vpop.f32.mrf.mxu0
        %v1980 = vadd.f32 %v1930, %v1979
        %v1981 = vand.u32 %v1627, 4294901760
        %1982 = vmatmul.f32.gmra.mxu0 %v1981
        %v1983 = vpop.f32.mrf.mxu0
        %v1984 = vadd.f32 %v1934, %v1983
        %v1985 = vand.u32 %v1630, 4294901760
        %1986 = vmatmul.f32.gmra.mxu0 %v1985
        %v1987 = vpop.f32.mrf.mxu0
        %v1988 = vadd.f32 %v1938, %v1987
        %v1989 = vand.u32 %v1633, 4294901760
        %1990 = vmatmul.f32.gmra.mxu0 %v1989
        %v1991 = vpop.f32.mrf.mxu0
        %v1992 = vadd.f32 %v1942, %v1991
        %v1993 = vand.u32 %v1636, 4294901760
        %1994 = vmatmul.f32.gmra.mxu0 %v1993
        %v1995 = vpop.f32.mrf.mxu0
        %v1996 = vadd.f32 %v1946, %v1995
        %v1997 = vand.u32 %v1639, 4294901760
        %1998 = vmatmul.f32.gmra.mxu0 %v1997
        %v1999 = vpop.f32.mrf.mxu0
        %v2000 = vadd.f32 %v1950, %v1999
        %v2001 = vand.u32 %v1642, 4294901760
        %2002 = vmatmul.f32.gmra.mxu0 %v2001
        %v2003 = vpop.f32.mrf.mxu0
        %v2004 = vadd.f32 %v1954, %v2003
        %v2005 = vand.u32 %v1645, 4294901760
        %2006 = vmatmul.f32.gmra.mxu0 %v2005
        %v2007 = vpop.f32.mrf.mxu0
        %v2008 = vadd.f32 %v1958, %v2007
        %2009 = vdwg.mxu0
        %v2010 = vmul.f32 %v1493, %v1550
        %v2011 = vmul.f32 %v1494, %v1560
        %v2012 = vmul.f32 %v1495, %v1570
        %v2013 = vmul.f32 %v1496, %v1580
        %v2014 = vmul.f32 %v1497, %v1590
        %v2015 = vmul.f32 %v1498, %v1600
        %v2016 = vmul.f32 %v1499, %v1610
        %v2017 = vmul.f32 %v1500, %v1620
        %v2019 = vsel %vm1622, %v2010, 0
        %v2022 = vsel %vm1622, %v2011, 0
        %v2025 = vsel %vm1622, %v2012, 0
        %v2028 = vsel %vm1622, %v2013, 0
        %v2031 = vsel %vm1622, %v2014, 0
        %v2034 = vsel %vm1622, %v2015, 0
        %v2037 = vsel %vm1622, %v2016, 0
        %v2040 = vsel %vm1622, %v2017, 0
        %2042 = vmatpush.msra.mxu0 0.0
        %2043 = vmatpush.msra.mxu0 0.0
        %2044 = vmatpush.msra.mxu0 0.0
        %2045 = vmatpush.msra.mxu0 0.0
        %2046 = vmatpush.msra.mxu0 0.0
        %2047 = vmatpush.msra.mxu0 0.0
        %2048 = vmatpush.msra.mxu0 0.0
        %2049 = vmatpush.msra.mxu0 0.0
        %2050 = vmatpush.msra.mxu0 0.0
        %2051 = vmatpush.msra.mxu0 0.0
        %2052 = vmatpush.msra.mxu0 0.0
        %2053 = vmatpush.msra.mxu0 0.0
        %2054 = vmatpush.msra.mxu0 0.0
        %2055 = vmatpush.msra.mxu0 0.0
        %2056 = vmatpush.msra.mxu0 0.0
        %v2057 = vand.u32 %v1621, 4294901760
        %2058 = vmatpush.msra.mxu0 %v2057
        %v2059 = vand.u32 %v2019, 4294901760
        %v2060 = vsub.f32 %v2019, %v2059
        %v2061 = vand.u32 %v2060, 4294901760
        %v2062 = vsub.f32 %v2060, %v2061
        %v2063 = vand.u32 %v2062, 4294901760
        %2064 = vmatmul.f32.gmra.mxu0 %v2063
        %v2065 = vpop.f32.mrf.mxu0
        %v2066 = vadd.f32 0.0, %v2065
        %v2067 = vand.u32 %v2022, 4294901760
        %v2068 = vsub.f32 %v2022, %v2067
        %v2069 = vand.u32 %v2068, 4294901760
        %v2070 = vsub.f32 %v2068, %v2069
        %v2071 = vand.u32 %v2070, 4294901760
        %2072 = vmatmul.f32.gmra.mxu0 %v2071
        %v2073 = vpop.f32.mrf.mxu0
        %v2074 = vadd.f32 0.0, %v2073
        %v2075 = vand.u32 %v2025, 4294901760
        %v2076 = vsub.f32 %v2025, %v2075
        %v2077 = vand.u32 %v2076, 4294901760
        %v2078 = vsub.f32 %v2076, %v2077
        %v2079 = vand.u32 %v2078, 4294901760
        %2080 = vmatmul.f32.gmra.mxu0 %v2079
        %v2081 = vpop.f32.mrf.mxu0
        %v2082 = vadd.f32 0.0, %v2081
        %v2083 = vand.u32 %v2028, 4294901760
        %v2084 = vsub.f32 %v2028, %v2083
        %v2085 = vand.u32 %v2084, 4294901760
        %v2086 = vsub.f32 %v2084, %v2085
        %v2087 = vand.u32 %v2086, 4294901760
        %2088 = vmatmul.f32.gmra.mxu0 %v2087
        %v2089 = vpop.f32.mrf.mxu0
        %v2090 = vadd.f32 0.0, %v2089
        %v2091 = vand.u32 %v2031, 4294901760
        %v2092 = vsub.f32 %v2031, %v2091
        %v2093 = vand.u32 %v2092, 4294901760
        %v2094 = vsub.f32 %v2092, %v2093
        %v2095 = vand.u32 %v2094, 4294901760
        %2096 = vmatmul.f32.gmra.mxu0 %v2095
        %v2097 = vpop.f32.mrf.mxu0
        %v2098 = vadd.f32 0.0, %v2097
        %v2099 = vand.u32 %v2034, 4294901760
        %v2100 = vsub.f32 %v2034, %v2099
        %v2101 = vand.u32 %v2100, 4294901760
        %v2102 = vsub.f32 %v2100, %v2101
        %v2103 = vand.u32 %v2102, 4294901760
        %2104 = vmatmul.f32.gmra.mxu0 %v2103
        %v2105 = vpop.f32.mrf.mxu0
        %v2106 = vadd.f32 0.0, %v2105
        %v2107 = vand.u32 %v2037, 4294901760
        %v2108 = vsub.f32 %v2037, %v2107
        %v2109 = vand.u32 %v2108, 4294901760
        %v2110 = vsub.f32 %v2108, %v2109
        %v2111 = vand.u32 %v2110, 4294901760
        %2112 = vmatmul.f32.gmra.mxu0 %v2111
        %v2113 = vpop.f32.mrf.mxu0
        %v2114 = vadd.f32 0.0, %v2113
        %v2115 = vand.u32 %v2040, 4294901760
        %v2116 = vsub.f32 %v2040, %v2115
        %v2117 = vand.u32 %v2116, 4294901760
        %v2118 = vsub.f32 %v2116, %v2117
        %v2119 = vand.u32 %v2118, 4294901760
        %2120 = vmatmul.f32.gmra.mxu0 %v2119
        %v2121 = vpop.f32.mrf.mxu0
        %v2122 = vadd.f32 0.0, %v2121
        %2123 = vdwg.mxu0
        %2124 = vmatpush.msra.mxu0 0.0
        %2125 = vmatpush.msra.mxu0 0.0
        %2126 = vmatpush.msra.mxu0 0.0
        %2127 = vmatpush.msra.mxu0 0.0
        %2128 = vmatpush.msra.mxu0 0.0
        %2129 = vmatpush.msra.mxu0 0.0
        %2130 = vmatpush.msra.mxu0 0.0
        %2131 = vmatpush.msra.mxu0 0.0
        %2132 = vmatpush.msra.mxu0 0.0
        %2133 = vmatpush.msra.mxu0 0.0
        %2134 = vmatpush.msra.mxu0 0.0
        %2135 = vmatpush.msra.mxu0 0.0
        %2136 = vmatpush.msra.mxu0 0.0
        %2137 = vmatpush.msra.mxu0 0.0
        %2138 = vmatpush.msra.mxu0 0.0
        %v2139 = vand.u32 %v1621, 4294901760
        %v2140 = vsub.f32 %v1621, %v2139
        %v2141 = vand.u32 %v2140, 4294901760
        %v2142 = vsub.f32 %v2140, %v2141
        %v2143 = vand.u32 %v2142, 4294901760
        %2144 = vmatpush.msra.mxu0 %v2143
        %v2145 = vand.u32 %v2019, 4294901760
        %2146 = vmatmul.f32.gmra.mxu0 %v2145
        %v2147 = vpop.f32.mrf.mxu0
        %v2148 = vadd.f32 %v2066, %v2147
        %v2149 = vand.u32 %v2022, 4294901760
        %2150 = vmatmul.f32.gmra.mxu0 %v2149
        %v2151 = vpop.f32.mrf.mxu0
        %v2152 = vadd.f32 %v2074, %v2151
        %v2153 = vand.u32 %v2025, 4294901760
        %2154 = vmatmul.f32.gmra.mxu0 %v2153
        %v2155 = vpop.f32.mrf.mxu0
        %v2156 = vadd.f32 %v2082, %v2155
        %v2157 = vand.u32 %v2028, 4294901760
        %2158 = vmatmul.f32.gmra.mxu0 %v2157
        %v2159 = vpop.f32.mrf.mxu0
        %v2160 = vadd.f32 %v2090, %v2159
        %v2161 = vand.u32 %v2031, 4294901760
        %2162 = vmatmul.f32.gmra.mxu0 %v2161
        %v2163 = vpop.f32.mrf.mxu0
        %v2164 = vadd.f32 %v2098, %v2163
        %v2165 = vand.u32 %v2034, 4294901760
        %2166 = vmatmul.f32.gmra.mxu0 %v2165
        %v2167 = vpop.f32.mrf.mxu0
        %v2168 = vadd.f32 %v2106, %v2167
        %v2169 = vand.u32 %v2037, 4294901760
        %2170 = vmatmul.f32.gmra.mxu0 %v2169
        %v2171 = vpop.f32.mrf.mxu0
        %v2172 = vadd.f32 %v2114, %v2171
        %v2173 = vand.u32 %v2040, 4294901760
        %2174 = vmatmul.f32.gmra.mxu0 %v2173
        %v2175 = vpop.f32.mrf.mxu0
        %v2176 = vadd.f32 %v2122, %v2175
        %2177 = vdwg.mxu0
        %2178 = vmatpush.msra.mxu0 0.0
        %2179 = vmatpush.msra.mxu0 0.0
        %2180 = vmatpush.msra.mxu0 0.0
        %2181 = vmatpush.msra.mxu0 0.0
        %2182 = vmatpush.msra.mxu0 0.0
        %2183 = vmatpush.msra.mxu0 0.0
        %2184 = vmatpush.msra.mxu0 0.0
        %2185 = vmatpush.msra.mxu0 0.0
        %2186 = vmatpush.msra.mxu0 0.0
        %2187 = vmatpush.msra.mxu0 0.0
        %2188 = vmatpush.msra.mxu0 0.0
        %2189 = vmatpush.msra.mxu0 0.0
        %2190 = vmatpush.msra.mxu0 0.0
        %2191 = vmatpush.msra.mxu0 0.0
        %2192 = vmatpush.msra.mxu0 0.0
        %v2193 = vand.u32 %v1621, 4294901760
        %v2194 = vsub.f32 %v1621, %v2193
        %2195 = vmatpush.msra.mxu0 %v2194
        %v2196 = vand.u32 %v2019, 4294901760
        %v2197 = vsub.f32 %v2019, %v2196
        %2198 = vmatmul.f32.gmra.mxu0 %v2197
        %v2199 = vpop.f32.mrf.mxu0
        %v2200 = vadd.f32 %v2148, %v2199
        %v2201 = vand.u32 %v2022, 4294901760
        %v2202 = vsub.f32 %v2022, %v2201
        %2203 = vmatmul.f32.gmra.mxu0 %v2202
        %v2204 = vpop.f32.mrf.mxu0
        %v2205 = vadd.f32 %v2152, %v2204
        %v2206 = vand.u32 %v2025, 4294901760
        %v2207 = vsub.f32 %v2025, %v2206
        %2208 = vmatmul.f32.gmra.mxu0 %v2207
        %v2209 = vpop.f32.mrf.mxu0
        %v2210 = vadd.f32 %v2156, %v2209
        %v2211 = vand.u32 %v2028, 4294901760
        %v2212 = vsub.f32 %v2028, %v2211
        %2213 = vmatmul.f32.gmra.mxu0 %v2212
        %v2214 = vpop.f32.mrf.mxu0
        %v2215 = vadd.f32 %v2160, %v2214
        %v2216 = vand.u32 %v2031, 4294901760
        %v2217 = vsub.f32 %v2031, %v2216
        %2218 = vmatmul.f32.gmra.mxu0 %v2217
        %v2219 = vpop.f32.mrf.mxu0
        %v2220 = vadd.f32 %v2164, %v2219
        %v2221 = vand.u32 %v2034, 4294901760
        %v2222 = vsub.f32 %v2034, %v2221
        %2223 = vmatmul.f32.gmra.mxu0 %v2222
        %v2224 = vpop.f32.mrf.mxu0
        %v2225 = vadd.f32 %v2168, %v2224
        %v2226 = vand.u32 %v2037, 4294901760
        %v2227 = vsub.f32 %v2037, %v2226
        %2228 = vmatmul.f32.gmra.mxu0 %v2227
        %v2229 = vpop.f32.mrf.mxu0
        %v2230 = vadd.f32 %v2172, %v2229
        %v2231 = vand.u32 %v2040, 4294901760
        %v2232 = vsub.f32 %v2040, %v2231
        %2233 = vmatmul.f32.gmra.mxu0 %v2232
        %v2234 = vpop.f32.mrf.mxu0
        %v2235 = vadd.f32 %v2176, %v2234
        %2236 = vdwg.mxu0
        %2237 = vmatpush.msra.mxu0 0.0
        %2238 = vmatpush.msra.mxu0 0.0
        %2239 = vmatpush.msra.mxu0 0.0
        %2240 = vmatpush.msra.mxu0 0.0
        %2241 = vmatpush.msra.mxu0 0.0
        %2242 = vmatpush.msra.mxu0 0.0
        %2243 = vmatpush.msra.mxu0 0.0
        %2244 = vmatpush.msra.mxu0 0.0
        %2245 = vmatpush.msra.mxu0 0.0
        %2246 = vmatpush.msra.mxu0 0.0
        %2247 = vmatpush.msra.mxu0 0.0
        %2248 = vmatpush.msra.mxu0 0.0
        %2249 = vmatpush.msra.mxu0 0.0
        %2250 = vmatpush.msra.mxu0 0.0
        %2251 = vmatpush.msra.mxu0 0.0
        %v2252 = vand.u32 %v1621, 4294901760
        %2253 = vmatpush.msra.mxu0 %v2252
        %v2254 = vand.u32 %v2019, 4294901760
        %v2255 = vsub.f32 %v2019, %v2254
        %v2256 = vand.u32 %v2255, 4294901760
        %2257 = vmatmul.f32.gmra.mxu0 %v2256
        %v2258 = vpop.f32.mrf.mxu0
        %v2259 = vadd.f32 %v2200, %v2258
        %v2260 = vand.u32 %v2022, 4294901760
        %v2261 = vsub.f32 %v2022, %v2260
        %v2262 = vand.u32 %v2261, 4294901760
        %2263 = vmatmul.f32.gmra.mxu0 %v2262
        %v2264 = vpop.f32.mrf.mxu0
        %v2265 = vadd.f32 %v2205, %v2264
        %v2266 = vand.u32 %v2025, 4294901760
        %v2267 = vsub.f32 %v2025, %v2266
        %v2268 = vand.u32 %v2267, 4294901760
        %2269 = vmatmul.f32.gmra.mxu0 %v2268
        %v2270 = vpop.f32.mrf.mxu0
        %v2271 = vadd.f32 %v2210, %v2270
        %v2272 = vand.u32 %v2028, 4294901760
        %v2273 = vsub.f32 %v2028, %v2272
        %v2274 = vand.u32 %v2273, 4294901760
        %2275 = vmatmul.f32.gmra.mxu0 %v2274
        %v2276 = vpop.f32.mrf.mxu0
        %v2277 = vadd.f32 %v2215, %v2276
        %v2278 = vand.u32 %v2031, 4294901760
        %v2279 = vsub.f32 %v2031, %v2278
        %v2280 = vand.u32 %v2279, 4294901760
        %2281 = vmatmul.f32.gmra.mxu0 %v2280
        %v2282 = vpop.f32.mrf.mxu0
        %v2283 = vadd.f32 %v2220, %v2282
        %v2284 = vand.u32 %v2034, 4294901760
        %v2285 = vsub.f32 %v2034, %v2284
        %v2286 = vand.u32 %v2285, 4294901760
        %2287 = vmatmul.f32.gmra.mxu0 %v2286
        %v2288 = vpop.f32.mrf.mxu0
        %v2289 = vadd.f32 %v2225, %v2288
        %v2290 = vand.u32 %v2037, 4294901760
        %v2291 = vsub.f32 %v2037, %v2290
        %v2292 = vand.u32 %v2291, 4294901760
        %2293 = vmatmul.f32.gmra.mxu0 %v2292
        %v2294 = vpop.f32.mrf.mxu0
        %v2295 = vadd.f32 %v2230, %v2294
        %v2296 = vand.u32 %v2040, 4294901760
        %v2297 = vsub.f32 %v2040, %v2296
        %v2298 = vand.u32 %v2297, 4294901760
        %2299 = vmatmul.f32.gmra.mxu0 %v2298
        %v2300 = vpop.f32.mrf.mxu0
        %v2301 = vadd.f32 %v2235, %v2300
        %2302 = vdwg.mxu0
        %2303 = vmatpush.msra.mxu0 0.0
        %2304 = vmatpush.msra.mxu0 0.0
        %2305 = vmatpush.msra.mxu0 0.0
        %2306 = vmatpush.msra.mxu0 0.0
        %2307 = vmatpush.msra.mxu0 0.0
        %2308 = vmatpush.msra.mxu0 0.0
        %2309 = vmatpush.msra.mxu0 0.0
        %2310 = vmatpush.msra.mxu0 0.0
        %2311 = vmatpush.msra.mxu0 0.0
        %2312 = vmatpush.msra.mxu0 0.0
        %2313 = vmatpush.msra.mxu0 0.0
        %2314 = vmatpush.msra.mxu0 0.0
        %2315 = vmatpush.msra.mxu0 0.0
        %2316 = vmatpush.msra.mxu0 0.0
        %2317 = vmatpush.msra.mxu0 0.0
        %v2318 = vand.u32 %v1621, 4294901760
        %v2319 = vsub.f32 %v1621, %v2318
        %v2320 = vand.u32 %v2319, 4294901760
        %2321 = vmatpush.msra.mxu0 %v2320
        %v2322 = vand.u32 %v2019, 4294901760
        %2323 = vmatmul.f32.gmra.mxu0 %v2322
        %v2324 = vpop.f32.mrf.mxu0
        %v2325 = vadd.f32 %v2259, %v2324
        %v2326 = vand.u32 %v2022, 4294901760
        %2327 = vmatmul.f32.gmra.mxu0 %v2326
        %v2328 = vpop.f32.mrf.mxu0
        %v2329 = vadd.f32 %v2265, %v2328
        %v2330 = vand.u32 %v2025, 4294901760
        %2331 = vmatmul.f32.gmra.mxu0 %v2330
        %v2332 = vpop.f32.mrf.mxu0
        %v2333 = vadd.f32 %v2271, %v2332
        %v2334 = vand.u32 %v2028, 4294901760
        %2335 = vmatmul.f32.gmra.mxu0 %v2334
        %v2336 = vpop.f32.mrf.mxu0
        %v2337 = vadd.f32 %v2277, %v2336
        %v2338 = vand.u32 %v2031, 4294901760
        %2339 = vmatmul.f32.gmra.mxu0 %v2338
        %v2340 = vpop.f32.mrf.mxu0
        %v2341 = vadd.f32 %v2283, %v2340
        %v2342 = vand.u32 %v2034, 4294901760
        %2343 = vmatmul.f32.gmra.mxu0 %v2342
        %v2344 = vpop.f32.mrf.mxu0
        %v2345 = vadd.f32 %v2289, %v2344
        %v2346 = vand.u32 %v2037, 4294901760
        %2347 = vmatmul.f32.gmra.mxu0 %v2346
        %v2348 = vpop.f32.mrf.mxu0
        %v2349 = vadd.f32 %v2295, %v2348
        %v2350 = vand.u32 %v2040, 4294901760
        %2351 = vmatmul.f32.gmra.mxu0 %v2350
        %v2352 = vpop.f32.mrf.mxu0
        %v2353 = vadd.f32 %v2301, %v2352
        %2354 = vdwg.mxu0
        %2355 = vmatpush.msra.mxu0 0.0
        %2356 = vmatpush.msra.mxu0 0.0
        %2357 = vmatpush.msra.mxu0 0.0
        %2358 = vmatpush.msra.mxu0 0.0
        %2359 = vmatpush.msra.mxu0 0.0
        %2360 = vmatpush.msra.mxu0 0.0
        %2361 = vmatpush.msra.mxu0 0.0
        %2362 = vmatpush.msra.mxu0 0.0
        %2363 = vmatpush.msra.mxu0 0.0
        %2364 = vmatpush.msra.mxu0 0.0
        %2365 = vmatpush.msra.mxu0 0.0
        %2366 = vmatpush.msra.mxu0 0.0
        %2367 = vmatpush.msra.mxu0 0.0
        %2368 = vmatpush.msra.mxu0 0.0
        %2369 = vmatpush.msra.mxu0 0.0
        %v2370 = vand.u32 %v1621, 4294901760
        %2371 = vmatpush.msra.mxu0 %v2370
        %v2372 = vand.u32 %v2019, 4294901760
        %2373 = vmatmul.f32.gmra.mxu0 %v2372
        %v2374 = vpop.f32.mrf.mxu0
        %v2375 = vadd.f32 %v2325, %v2374
        %v2376 = vand.u32 %v2022, 4294901760
        %2377 = vmatmul.f32.gmra.mxu0 %v2376
        %v2378 = vpop.f32.mrf.mxu0
        %v2379 = vadd.f32 %v2329, %v2378
        %v2380 = vand.u32 %v2025, 4294901760
        %2381 = vmatmul.f32.gmra.mxu0 %v2380
        %v2382 = vpop.f32.mrf.mxu0
        %v2383 = vadd.f32 %v2333, %v2382
        %v2384 = vand.u32 %v2028, 4294901760
        %2385 = vmatmul.f32.gmra.mxu0 %v2384
        %v2386 = vpop.f32.mrf.mxu0
        %v2387 = vadd.f32 %v2337, %v2386
        %v2388 = vand.u32 %v2031, 4294901760
        %2389 = vmatmul.f32.gmra.mxu0 %v2388
        %v2390 = vpop.f32.mrf.mxu0
        %v2391 = vadd.f32 %v2341, %v2390
        %v2392 = vand.u32 %v2034, 4294901760
        %2393 = vmatmul.f32.gmra.mxu0 %v2392
        %v2394 = vpop.f32.mrf.mxu0
        %v2395 = vadd.f32 %v2345, %v2394
        %v2396 = vand.u32 %v2037, 4294901760
        %2397 = vmatmul.f32.gmra.mxu0 %v2396
        %v2398 = vpop.f32.mrf.mxu0
        %v2399 = vadd.f32 %v2349, %v2398
        %v2400 = vand.u32 %v2040, 4294901760
        %2401 = vmatmul.f32.gmra.mxu0 %v2400
        %v2402 = vpop.f32.mrf.mxu0
        %v2403 = vadd.f32 %v2353, %v2402
        %2404 = vdwg.mxu0
        %v2405 = vmul.f32 %v345, %v1980
        %v2406 = vmul.f32 %v346, %v1984
        %v2407 = vmul.f32 %v347, %v1988
        %v2408 = vmul.f32 %v348, %v1992
        %v2409 = vmul.f32 %v349, %v1996
        %v2410 = vmul.f32 %v350, %v2000
        %v2411 = vmul.f32 %v351, %v2004
        %v2412 = vmul.f32 %v352, %v2008
        %v2413 = vsub.f32 %v2405, %v2375
        %v2414 = vsub.f32 %v2406, %v2379
        %v2415 = vsub.f32 %v2407, %v2383
        %v2416 = vsub.f32 %v2408, %v2387
        %v2417 = vsub.f32 %v2409, %v2391
        %v2418 = vsub.f32 %v2410, %v2395
        %v2419 = vsub.f32 %v2411, %v2399
        %v2420 = vsub.f32 %v2412, %v2403
        %v2421 = vld [vmem:[%s3] sm:$0x1]
        %v2423 = vperm.slane %v2421, 0
        %v2425 = vadd.f32 %v2413, %v2423
        %v2426 = vadd.f32 %v2414, %v2423
        %v2427 = vadd.f32 %v2415, %v2423
        %v2428 = vadd.f32 %v2416, %v2423
        %v2429 = vadd.f32 %v2417, %v2423
        %v2430 = vadd.f32 %v2418, %v2423
        %v2431 = vadd.f32 %v2419, %v2423
        %v2432 = vadd.f32 %v2420, %v2423
        %v2433 = vxor.u32 %v2425, 2147483648
        %v2434 = vxor.u32 %v2426, 2147483648
        %v2435 = vxor.u32 %v2427, 2147483648
        %v2436 = vxor.u32 %v2428, 2147483648
        %v2437 = vxor.u32 %v2429, 2147483648
        %v2438 = vxor.u32 %v2430, 2147483648
        %v2439 = vxor.u32 %v2431, 2147483648
        %v2440 = vxor.u32 %v2432, 2147483648
        %v2441 = vmul.f32 %v2433, 1.442695
        %v2442 = vpow.pop %v2441
        %v2443 = vmul.f32 %v2434, 1.442695
        %v2444 = vpow.pop %v2443
        %v2445 = vmul.f32 %v2435, 1.442695
        %v2446 = vpow.pop %v2445
        %v2447 = vmul.f32 %v2436, 1.442695
        %v2448 = vpow.pop %v2447
        %v2449 = vmul.f32 %v2437, 1.442695
        %v2450 = vpow.pop %v2449
        %v2451 = vmul.f32 %v2438, 1.442695
        %v2452 = vpow.pop %v2451
        %v2453 = vmul.f32 %v2439, 1.442695
        %v2454 = vpow.pop %v2453
        %v2455 = vmul.f32 %v2440, 1.442695
        %v2456 = vpow.pop %v2455
        %v2457 = vadd.f32 %v2442, 1.0
        %v2458 = vadd.f32 %v2444, 1.0
        %v2459 = vadd.f32 %v2446, 1.0
        %v2460 = vadd.f32 %v2448, 1.0
        %v2461 = vadd.f32 %v2450, 1.0
        %v2462 = vadd.f32 %v2452, 1.0
        %v2463 = vadd.f32 %v2454, 1.0
        %v2464 = vadd.f32 %v2456, 1.0
        %v2465 = vrcp.pop %v2457
        %v2466 = vmul.f32 %v2457, %v2465
        %v2467 = vsub.f32 1.0, %v2466
        %v2468 = vmul.f32 %v2465, %v2467
        %v2469 = vadd.f32 %v2465, %v2468
        %vm2470 = vweird.f32 %v2457
        %vm2471 = vweird.f32 %v2465
        %vm2472 = vmor %vm2470, %vm2471
        %v2473 = vsel %vm2472, %v2465, %v2469
        %v2474 = vand.u32 2147483647, %v2457
        %vm2475 = vcmp.eq.f32.partialorder %v2474, 8.507059e+37
        %v2476 = vand.u32 %v2457, 2147483648
        %v2477 = vor.u32 1.1754944e-38, %v2476
        %v2478 = vsel %vm2475, %v2477, %v2473
        %v2479 = vmul.f32 1.0, %v2478
        %v2480 = vrcp.pop %v2458
        %v2481 = vmul.f32 %v2458, %v2480
        %v2482 = vsub.f32 1.0, %v2481
        %v2483 = vmul.f32 %v2480, %v2482
        %v2484 = vadd.f32 %v2480, %v2483
        %vm2485 = vweird.f32 %v2458
        %vm2486 = vweird.f32 %v2480
        %vm2487 = vmor %vm2485, %vm2486
        %v2488 = vsel %vm2487, %v2480, %v2484
        %v2489 = vand.u32 2147483647, %v2458
        %vm2490 = vcmp.eq.f32.partialorder %v2489, 8.507059e+37
        %v2491 = vand.u32 %v2458, 2147483648
        %v2492 = vor.u32 1.1754944e-38, %v2491
        %v2493 = vsel %vm2490, %v2492, %v2488
        %v2494 = vmul.f32 1.0, %v2493
        %v2495 = vrcp.pop %v2459
        %v2496 = vmul.f32 %v2459, %v2495
        %v2497 = vsub.f32 1.0, %v2496
        %v2498 = vmul.f32 %v2495, %v2497
        %v2499 = vadd.f32 %v2495, %v2498
        %vm2500 = vweird.f32 %v2459
        %vm2501 = vweird.f32 %v2495
        %vm2502 = vmor %vm2500, %vm2501
        %v2503 = vsel %vm2502, %v2495, %v2499
        %v2504 = vand.u32 2147483647, %v2459
        %vm2505 = vcmp.eq.f32.partialorder %v2504, 8.507059e+37
        %v2506 = vand.u32 %v2459, 2147483648
        %v2507 = vor.u32 1.1754944e-38, %v2506
        %v2508 = vsel %vm2505, %v2507, %v2503
        %v2509 = vmul.f32 1.0, %v2508
        %v2510 = vrcp.pop %v2460
        %v2511 = vmul.f32 %v2460, %v2510
        %v2512 = vsub.f32 1.0, %v2511
        %v2513 = vmul.f32 %v2510, %v2512
        %v2514 = vadd.f32 %v2510, %v2513
        %vm2515 = vweird.f32 %v2460
        %vm2516 = vweird.f32 %v2510
        %vm2517 = vmor %vm2515, %vm2516
        %v2518 = vsel %vm2517, %v2510, %v2514
        %v2519 = vand.u32 2147483647, %v2460
        %vm2520 = vcmp.eq.f32.partialorder %v2519, 8.507059e+37
        %v2521 = vand.u32 %v2460, 2147483648
        %v2522 = vor.u32 1.1754944e-38, %v2521
        %v2523 = vsel %vm2520, %v2522, %v2518
        %v2524 = vmul.f32 1.0, %v2523
        %v2525 = vrcp.pop %v2461
        %v2526 = vmul.f32 %v2461, %v2525
        %v2527 = vsub.f32 1.0, %v2526
        %v2528 = vmul.f32 %v2525, %v2527
        %v2529 = vadd.f32 %v2525, %v2528
        %vm2530 = vweird.f32 %v2461
        %vm2531 = vweird.f32 %v2525
        %vm2532 = vmor %vm2530, %vm2531
        %v2533 = vsel %vm2532, %v2525, %v2529
        %v2534 = vand.u32 2147483647, %v2461
        %vm2535 = vcmp.eq.f32.partialorder %v2534, 8.507059e+37
        %v2536 = vand.u32 %v2461, 2147483648
        %v2537 = vor.u32 1.1754944e-38, %v2536
        %v2538 = vsel %vm2535, %v2537, %v2533
        %v2539 = vmul.f32 1.0, %v2538
        %v2540 = vrcp.pop %v2462
        %v2541 = vmul.f32 %v2462, %v2540
        %v2542 = vsub.f32 1.0, %v2541
        %v2543 = vmul.f32 %v2540, %v2542
        %v2544 = vadd.f32 %v2540, %v2543
        %vm2545 = vweird.f32 %v2462
        %vm2546 = vweird.f32 %v2540
        %vm2547 = vmor %vm2545, %vm2546
        %v2548 = vsel %vm2547, %v2540, %v2544
        %v2549 = vand.u32 2147483647, %v2462
        %vm2550 = vcmp.eq.f32.partialorder %v2549, 8.507059e+37
        %v2551 = vand.u32 %v2462, 2147483648
        %v2552 = vor.u32 1.1754944e-38, %v2551
        %v2553 = vsel %vm2550, %v2552, %v2548
        %v2554 = vmul.f32 1.0, %v2553
        %v2555 = vrcp.pop %v2463
        %v2556 = vmul.f32 %v2463, %v2555
        %v2557 = vsub.f32 1.0, %v2556
        %v2558 = vmul.f32 %v2555, %v2557
        %v2559 = vadd.f32 %v2555, %v2558
        %vm2560 = vweird.f32 %v2463
        %vm2561 = vweird.f32 %v2555
        %vm2562 = vmor %vm2560, %vm2561
        %v2563 = vsel %vm2562, %v2555, %v2559
        %v2564 = vand.u32 2147483647, %v2463
        %vm2565 = vcmp.eq.f32.partialorder %v2564, 8.507059e+37
        %v2566 = vand.u32 %v2463, 2147483648
        %v2567 = vor.u32 1.1754944e-38, %v2566
        %v2568 = vsel %vm2565, %v2567, %v2563
        %v2569 = vmul.f32 1.0, %v2568
        %v2570 = vrcp.pop %v2464
        %v2571 = vmul.f32 %v2464, %v2570
        %v2572 = vsub.f32 1.0, %v2571
        %v2573 = vmul.f32 %v2570, %v2572
        %v2574 = vadd.f32 %v2570, %v2573
        %vm2575 = vweird.f32 %v2464
        %vm2576 = vweird.f32 %v2570
        %vm2577 = vmor %vm2575, %vm2576
        %v2578 = vsel %vm2577, %v2570, %v2574
        %v2579 = vand.u32 2147483647, %v2464
        %vm2580 = vcmp.eq.f32.partialorder %v2579, 8.507059e+37
        %v2581 = vand.u32 %v2464, 2147483648
        %v2582 = vor.u32 1.1754944e-38, %v2581
        %v2583 = vsel %vm2580, %v2582, %v2578
        %v2584 = vmul.f32 1.0, %v2583
        %v2585 = vmul.f32 %v2425, %v2479
        %v2586 = vmul.f32 %v2426, %v2494
        %v2587 = vmul.f32 %v2427, %v2509
        %v2588 = vmul.f32 %v2428, %v2524
        %v2589 = vmul.f32 %v2429, %v2539
        %v2590 = vmul.f32 %v2430, %v2554
        %v2591 = vmul.f32 %v2431, %v2569
        %v2592 = vmul.f32 %v2432, %v2584
        %v2593 = vpack.c.bf16 %v2586, %v2585
        %v2594 = vpack.c.bf16 %v2588, %v2587
        %v2595 = vpack.c.bf16 %v2590, %v2589
        %v2596 = vpack.c.bf16 %v2592, %v2591
        %v2597 = vld [vmem:[%s4] sm:$0xf]
        %v2598 = vld [vmem:[%s4 + $0x4] sm:$0xf]
        %v2599 = vld [vmem:[%s4 + $0x8] sm:$0xf]
        %v2600 = vld [vmem:[%s4 + $0xc] sm:$0xf]
        %v2601 = vld [vmem:[%s4 + $0x10] sm:$0xf]
        %v2602 = vld [vmem:[%s4 + $0x14] sm:$0xf]
        %v2603 = vld [vmem:[%s4 + $0x18] sm:$0xf]
        %v2604 = vld [vmem:[%s4 + $0x1c] sm:$0xf]
        %v2605 = vld [vmem:[%s4 + $0x20] sm:$0xf]
        %v2606 = vld [vmem:[%s4 + $0x24] sm:$0xf]
        %v2607 = vld [vmem:[%s4 + $0x28] sm:$0xf]
        %v2608 = vld [vmem:[%s4 + $0x2c] sm:$0xf]
        %v2609 = vld [vmem:[%s4 + $0x30] sm:$0xf]
        %v2610 = vld [vmem:[%s4 + $0x34] sm:$0xf]
        %v2611 = vld [vmem:[%s4 + $0x38] sm:$0xf]
        %v2612 = vld [vmem:[%s4 + $0x3c] sm:$0xf]
        %v2613 = vld [vmem:[%s5] sm:$0x1]
        %v2615 = vperm.slane %v2613, 0
        %v2633 = vunpack.c.l.b16 %v2597
        %v2634 = vunpack.c.l.b16 %v2598
        %v2635 = vunpack.c.l.b16 %v2599
        %v2636 = vunpack.c.l.b16 %v2600
        %v2637 = vunpack.c.l.b16 %v2601
        %v2638 = vunpack.c.l.b16 %v2602
        %v2639 = vunpack.c.l.b16 %v2603
        %v2640 = vunpack.c.l.b16 %v2604
        %v2641 = vunpack.c.l.b16 %v2605
        %v2642 = vunpack.c.l.b16 %v2606
        %v2643 = vunpack.c.l.b16 %v2607
        %v2644 = vunpack.c.l.b16 %v2608
        %v2645 = vunpack.c.l.b16 %v2609
        %v2646 = vunpack.c.l.b16 %v2610
        %v2647 = vunpack.c.l.b16 %v2611
        %v2648 = vunpack.c.l.b16 %v2612
        %v2649 = vpack.c.b16 %v2634, %v2633
        %v2650 = vpack.c.b16 %v2636, %v2635
        %v2651 = vpack.c.b16 %v2638, %v2637
        %v2652 = vpack.c.b16 %v2640, %v2639
        %v2653 = vpack.c.b16 %v2642, %v2641
        %v2654 = vpack.c.b16 %v2644, %v2643
        %v2655 = vpack.c.b16 %v2646, %v2645
        %v2656 = vpack.c.b16 %v2648, %v2647
        %2665 = vmatpush.bf16.msra.mxu0 %v2656
        %2666 = vmatpush.bf16.msra.mxu0 %v2655
        %2667 = vmatpush.bf16.msra.mxu0 %v2654
        %2668 = vmatpush.bf16.msra.mxu0 %v2653
        %2669 = vmatpush.bf16.msra.mxu0 %v2652
        %2670 = vmatpush.bf16.msra.mxu0 %v2651
        %2671 = vmatpush.bf16.msra.mxu0 %v2650
        %2672 = vmatpush.bf16.msra.mxu0 %v2649
        %2673 = vmatmul.bf16.gmra.mxu0 %v2593
        %v2674 = vpop.f32.mrf.mxu0
        %v2675 = vadd.f32 %v2615, %v2674
        %v2676 = vpop.f32.mrf.mxu0
        %v2677 = vadd.f32 %v2615, %v2676
        %2678 = vmatmul.bf16.gmra.mxu0 %v2594
        %v2679 = vpop.f32.mrf.mxu0
        %v2680 = vadd.f32 %v2615, %v2679
        %v2681 = vpop.f32.mrf.mxu0
        %v2682 = vadd.f32 %v2615, %v2681
        %2683 = vmatmul.bf16.gmra.mxu0 %v2595
        %v2684 = vpop.f32.mrf.mxu0
        %v2685 = vadd.f32 %v2615, %v2684
        %v2686 = vpop.f32.mrf.mxu0
        %v2687 = vadd.f32 %v2615, %v2686
        %2688 = vmatmul.bf16.gmra.mxu0 %v2596
        %v2689 = vpop.f32.mrf.mxu0
        %v2690 = vadd.f32 %v2615, %v2689
        %v2691 = vpop.f32.mrf.mxu0
        %v2692 = vadd.f32 %v2615, %v2691
        %2693 = vdwg.mxu0
        %v2694 = vld [vmem:[%s305] sm:$0xff]
        %v2695 = vld [vmem:[%s305 + $0x8] sm:$0xff]
        %v2696 = vld [vmem:[%s305 + $0x10] sm:$0xff]
        %v2697 = vld [vmem:[%s305 + $0x18] sm:$0xff]
        %v2698 = vld [vmem:[%s305 + $0x20] sm:$0xff]
        %v2699 = vld [vmem:[%s305 + $0x28] sm:$0xff]
        %v2700 = vld [vmem:[%s305 + $0x30] sm:$0xff]
        %v2701 = vld [vmem:[%s305 + $0x38] sm:$0xff]
        %v2702 = vunpack.c.l.bf16 %v2694
        %v2703 = vunpack.c.h.bf16 %v2694
        %v2704 = vunpack.c.l.bf16 %v2695
        %v2705 = vunpack.c.h.bf16 %v2695
        %v2706 = vunpack.c.l.bf16 %v2696
        %v2707 = vunpack.c.h.bf16 %v2696
        %v2708 = vunpack.c.l.bf16 %v2697
        %v2709 = vunpack.c.h.bf16 %v2697
        %v2710 = vunpack.c.l.bf16 %v2698
        %v2711 = vunpack.c.h.bf16 %v2698
        %v2712 = vunpack.c.l.bf16 %v2699
        %v2713 = vunpack.c.h.bf16 %v2699
        %v2714 = vunpack.c.l.bf16 %v2700
        %v2715 = vunpack.c.h.bf16 %v2700
        %v2716 = vunpack.c.l.bf16 %v2701
        %v2717 = vunpack.c.h.bf16 %v2701
        %v2718 = vadd.f32 %v2702, 1.0
        %v2719 = vadd.f32 %v2704, 1.0
        %v2720 = vadd.f32 %v2706, 1.0
        %v2721 = vadd.f32 %v2708, 1.0
        %v2722 = vadd.f32 %v2710, 1.0
        %v2723 = vadd.f32 %v2712, 1.0
        %v2724 = vadd.f32 %v2714, 1.0
        %v2725 = vadd.f32 %v2716, 1.0
        %v2726 = vmul.f32 %v2675, %v2718
        %v2727 = vmul.f32 %v2677, %v2719
        %v2728 = vmul.f32 %v2680, %v2720
        %v2729 = vmul.f32 %v2682, %v2721
        %v2730 = vmul.f32 %v2685, %v2722
        %v2731 = vmul.f32 %v2687, %v2723
        %v2732 = vmul.f32 %v2690, %v2724
        %v2733 = vmul.f32 %v2692, %v2725
        %v2734 = vadd.f32 %v2726, %v2703
        %v2735 = vadd.f32 %v2727, %v2705
        %v2736 = vadd.f32 %v2728, %v2707
        %v2737 = vadd.f32 %v2729, %v2709
        %v2738 = vadd.f32 %v2730, %v2711
        %v2739 = vadd.f32 %v2731, %v2713
        %v2740 = vadd.f32 %v2732, %v2715
        %v2741 = vadd.f32 %v2733, %v2717
        %v2742 = vadd.f32 %v2734, %v345
        %v2743 = vadd.f32 %v2735, %v346
        %v2744 = vadd.f32 %v2736, %v347
        %v2745 = vadd.f32 %v2737, %v348
        %v2746 = vadd.f32 %v2738, %v349
        %v2747 = vadd.f32 %v2739, %v350
        %v2748 = vadd.f32 %v2740, %v351
        %v2749 = vadd.f32 %v2741, %v352
        %2750 = vst [vmem:[%s341] sm:$0xff] %v2742
        %2751 = vst [vmem:[%s341 + $0x8] sm:$0xff] %v2743
        %2752 = vst [vmem:[%s341 + $0x10] sm:$0xff] %v2744
        %2753 = vst [vmem:[%s341 + $0x18] sm:$0xff] %v2745
        %2754 = vst [vmem:[%s341 + $0x20] sm:$0xff] %v2746
        %2755 = vst [vmem:[%s341 + $0x28] sm:$0xff] %v2747
        %2756 = vst [vmem:[%s341 + $0x30] sm:$0xff] %v2748
        %2757 = vst [vmem:[%s341 + $0x38] sm:$0xff] %v2749
        %s2758 = sand.u32 %s192, 1
        %s2759 = scalar_lea.sflag [#allocation4], %s2758
        %s2760 = sand.u32 %s192, 1
        %s2761 = smul.addr %s2760, 64
        %s2762 = scalar_lea.vmem [#allocation7], %s2761
        // Predicated region
        $region57: #{tpu_custom_call.1} parent=47 // pred_check
          %p2763 = pneg %p202
        $region58: #{tpu_custom_call.1} parent=47 // pred_check_branch
          %2765 = sbr.rel (%p2763) target = $region60
        $region59: #{tpu_custom_call.1} parent=47 // pred_region
          %s2766 = smul.u32 8, %s27
          %2768 = vsyncadd %s2759, 0
          %s2769 = smul.addr %s2766, 8
          %s2770 = scalar_lea.hbm %s7, %s2769
          %s2771 = sshll.u32 %s2762, 4
          %s2772 = int_to_ptr.vmem [resolvable:$true] %s2771
          %s2773 = sshll.u32 %s2770, 4
          %s2774 = int_to_ptr.hbm [resolvable:$true] %s2773
          %2779 = dma.vmem_to_hbm [thread:$0]  %s2772, 1024, %s2774, %s2759, 128, 128, 8
        $region60: #{tpu_custom_call.1} parent=47 // pred_fallthru
          _
      $region48: #{tpu_custom_call.1} parent=5 // pred_fallthru
        _
      %p2780 = scmp.le.s32.totalorder 2, %s22
      // Predicated region
      $region61: #{tpu_custom_call.1} parent=5 // pred_check
        %p2781 = pneg %p2780
      $region62: #{tpu_custom_call.1} parent=5 // pred_check_branch
        %2783 = sbr.rel (%p2781) target = $region64
      $region63: #{tpu_custom_call.1} parent=5 // pred_region
        %s2784 = ssub.s32 %s22, 2
        // Predicated region
        $region65: #{tpu_custom_call.1} parent=63 // pred_check
          %p2785 = pneg %p208
        $region66: #{tpu_custom_call.1} parent=63 // pred_check_branch
          %2787 = sbr.rel (%p2785) target = $region68
        $region67: #{tpu_custom_call.1} parent=63 // pred_region
          %s2788 = sand.u32 %s193, 1
          %s2789 = scalar_lea.sflag [#allocation4], %s2788
          %s2790 = sand.u32 %s193, 1
          %s2791 = smul.addr %s2790, 64
          %s2792 = scalar_lea.vmem [#allocation7], %s2791
          %2794 = dma.done %s2789, 1024
        $region68: #{tpu_custom_call.1} parent=63 // pred_fallthru
          _
      $region64: #{tpu_custom_call.1} parent=5 // pred_fallthru
        _
    $region6: #{tpu_custom_call.1} parent=1 // loop_footer
      %s26 = sadd.s32 1, %s22
    $region7: #{tpu_custom_call.1} parent=1 // loop_footer_branch
      %21 = sbr.rel target = $region3
    $region8: #{tpu_custom_call.1} parent=1 // loop_exit
      _
    %2795 = vsyncpa [#allocation3], 1
    %s2796 = scalar_lea.sflag [#allocation3], 1
    %2797 = vsyncpa %s2796, 1
    %2798 = vsyncpa [#allocation6], 1
    %s2799 = scalar_lea.sflag [#allocation6], 1
    %2800 = vsyncpa %s2799, 1
    %2801 = vsyncpa [#allocation4], 1
    %s2802 = scalar_lea.sflag [#allocation4], 1
    %2803 = vsyncpa %s2802, 1

</llo_original>
